<compile_context>
chip_gen: v5e
topology: v5e:2x2
jax: 0.10.0
libtpu: 0.0.40
codegen_flags: <defaults>
</compile_context>

<pallas_src>
import functools
import numpy as np
import jax
import jax.numpy as jnp
from jax.experimental import pallas as pl
from jax.experimental.pallas import tpu as pltpu


# ----------------------------------------------------------------------------
# JAX-level sinusoidal positional embedding (used by the pure-JAX reference).
# TODO(synk): pos_embedding() is not defined in the provided source; a standard
#             transformer-style sin/cos embedding (summed over coordinate dims)
#             is used here (same formula is fused inside the kernel).
# ----------------------------------------------------------------------------
def pos_embedding(pos, dim):
    half = dim // 2
    freqs = jnp.exp(-jnp.log(10000.0) * jnp.arange(half, dtype=jnp.float32) / half)
    angles = pos[..., None].astype(jnp.float32) * freqs              # (..., C, half)
    emb = jnp.concatenate([jnp.sin(angles), jnp.cos(angles)], axis=-1)
    return jnp.sum(emb, axis=-2)                                      # (..., dim)


# ----------------------------------------------------------------------------
# Pallas kernel: one grid step == one block of `bb` graphs/samples.
#
# Weight stack layout (index into w_ref / b_ref):
#   0-2  branch GCN layers           3-5  trunk MLP layers
#   6-9  attn Wq / Wk / Wv / Wout    10-11 out-head layers (last layer is wout_ref, no bias)
# ----------------------------------------------------------------------------
def _deeponet_kernel(known_ref, adj_ref, test_ref, w_ref, b_ref, wout_ref, out_ref,
                     *, bb, n_nodes, n_test, hidden, coord_dim):
    N, T, H, C = n_nodes, n_test, hidden, coord_dim
    half = H // 2
    inv_sqrt_h = 1.0 / float(np.sqrt(H))

    def mm(a, b):   # row-stacked 2-D matmul, f32 accumulation on the MXU
        return jnp.dot(a, b, preferred_element_type=jnp.float32)

    def bmm(a, b, ca, cb):   # batched (over dim 0) matmul
        return jax.lax.dot_general(
            a, b, (((ca,), (cb,)), ((0,), (0,))),
            preferred_element_type=jnp.float32)

    def W(i):                 # static index -> free view of one (H, H) weight
        return w_ref[i]

    def Bv(i):                # static slice -> (1, H) bias row
        return b_ref[i:i + 1, :]

    # ---- fused positional embedding ------------------------------------------
    # cos(x) == sin(x + pi/2): one EUP transcendental per element instead of two.
    # The *100 input scaling is folded into the frequency table.
    jidx = jax.lax.broadcasted_iota(jnp.int32, (1, H), 1)
    is_sin = jidx < half
    jmod = jnp.where(is_sin, jidx, jidx - half).astype(jnp.float32)
    freq100 = 100.0 * jnp.exp((-float(np.log(10000.0)) / half) * jmod)    # (1, H)
    phase = jnp.where(is_sin, 0.0, float(np.pi / 2.0))                    # (1, H)

    def embed(coords):        # coords: (R, C) raw positions
        acc = jnp.zeros((coords.shape[0], H), jnp.float32)
        for cd in range(C):
            acc = acc + jnp.sin(coords[:, cd:cd + 1] * freq100 + phase)
        return acc

    f = embed(known_ref[...].reshape(bb * N, C))                      # (bb*N, H)
    c = embed(test_ref[...].reshape(bb * T, C))                       # (bb*T, H)
    adj = adj_ref[...]                                                # (bb, N, N)

    # ---- branch ("brunch"): 3-layer GCN over the whole block ------------------
    # TODO(synk): Node_Classification2 source not provided; implemented as a
    #             3-layer GCN: relu(A @ X @ W + b) x2, then linear last layer.
    def adj_mm(x_flat):       # per-graph aggregation as one batched dot_general
        y = bmm(adj, x_flat.reshape(bb, N, H), 2, 1)                  # (bb, N, H)
        return y.reshape(bb * N, H)

    f = jnp.maximum(adj_mm(mm(f, W(0))) + Bv(0), 0.0)
    f = jnp.maximum(adj_mm(mm(f, W(1))) + Bv(1), 0.0)
    f = adj_mm(mm(f, W(2))) + Bv(2)

    # ---- trunk MLP on all test points of the block at once --------------------
    c = jnp.maximum(mm(c, W(3)) + Bv(3), 0.0)
    c = jnp.maximum(mm(c, W(4)) + Bv(4), 0.0)
    c = mm(c, W(5)) + Bv(5)

    # ---- single-head attention (query = trunk feats, key/value = branch feats) -
    q = (mm(c, W(6)) + Bv(6)).reshape(bb, T, H)
    k = (mm(f, W(7)) + Bv(7)).reshape(bb, N, H)
    v = (mm(f, W(8)) + Bv(8)).reshape(bb, N, H)

    s = bmm(q, k, 2, 2) * inv_sqrt_h                                  # (bb, T, N)
    s = s - jnp.max(s, axis=-1, keepdims=True)
    p = jnp.exp(s)
    p = p * pl.reciprocal(jnp.sum(p, axis=-1, keepdims=True), approx=True)
    a = bmm(p, v, 2, 1).reshape(bb * T, H)                            # (bb*T, H)
    a = mm(a, W(9)) + Bv(9)                                           # attn out_proj

    # ---- out MLP: Lin-ReLU-Lin-ReLU-Lin(no bias, padded to OPAD lanes) --------
    y = jnp.maximum(mm(a, W(10)) + Bv(10), 0.0)
    y = jnp.maximum(mm(y, W(11)) + Bv(11), 0.0)
    y = mm(y, wout_ref[...])                                          # (bb*T, OPAD)

    out_ref[...] = y.astype(out_ref.dtype)                            # lane-dense store


# ----------------------------------------------------------------------------
# Wrapper
# ----------------------------------------------------------------------------
def node_deeponet_forward(known_pos, adj_norm, test_points, w_stack, b_stack, w_out,
                          hidden_size, out_feats, grid_blocks=None):
    B, N, C = known_pos.shape
    T = test_points.shape[1]
    H, O = hidden_size, out_feats
    OPAD = max(128, ((O + 127) // 128) * 128)        # lane-dense output slab

    # N and T should be multiples of 8 so in-kernel (bb,N,H)<->(bb*N,H) reshapes
    # stay sublane-tile aligned (free).
    assert N % 8 == 0 and T % 8 == 0, (N, T)

    if grid_blocks is None:
        # 2 parallel grid steps so both v7x TensorCores get work; 1 step if B is odd/1.
        grid_blocks = 2 if (B % 2 == 0 and B >= 2) else 1
    assert B % grid_blocks == 0, (B, grid_blocks)
    bb = B // grid_blocks

    w_out_p = jnp.pad(w_out.astype(jnp.float32), ((0, 0), (0, OPAD - O)))

    kernel = functools.partial(_deeponet_kernel, bb=bb, n_nodes=N, n_test=T,
                               hidden=H, coord_dim=C)

    out_flat = pl.pallas_call(
        kernel,
        out_shape=jax.ShapeDtypeStruct((B * T, OPAD), jnp.float32),
        grid=(grid_blocks,),
        in_specs=[
            pl.BlockSpec((bb, N, C), lambda g: (g, 0, 0)),   # known-node coords
            pl.BlockSpec((bb, N, N), lambda g: (g, 0, 0)),   # normalized adjacency
            pl.BlockSpec((bb, T, C), lambda g: (g, 0, 0)),   # test-point coords
            pl.BlockSpec((12, H, H), lambda g: (0, 0, 0)),   # packed H x H weights (resident)
            pl.BlockSpec((12, H), lambda g: (0, 0)),         # packed biases (resident)
            pl.BlockSpec((H, OPAD), lambda g: (0, 0)),       # final projection (padded, resident)
        ],
        out_specs=pl.BlockSpec((bb * T, OPAD), lambda g: (g, 0)),
        compiler_params=pltpu.CompilerParams(dimension_semantics=("parallel",)),
    )(known_pos.astype(jnp.float32), adj_norm.astype(jnp.float32),
      test_points.astype(jnp.float32), w_stack.astype(jnp.float32),
      b_stack.astype(jnp.float32), w_out_p)

    return out_flat[:, :O].reshape(B, T, O)


# ----------------------------------------------------------------------------
# Deterministic packed parameter init (shapes implied by NodeDeepOnet.__init__)
# ----------------------------------------------------------------------------
def init_weights(key, H, O):
    kw, kb, ko = jax.random.split(key, 3)
    wk = jax.random.split(kw, 12)
    bk = jax.random.split(kb, 12)
    w_stack = jnp.stack([jax.random.normal(wk[i], (H, H), jnp.float32) / np.sqrt(H)
                         for i in range(12)])                 # (12, H, H)
    b_stack = jnp.stack([jax.random.normal(bk[i], (H,), jnp.float32) * 0.01
                         for i in range(12)])                 # (12, H)
    w_out = jax.random.normal(ko, (H, O), jnp.float32) / np.sqrt(H)   # (H, O), no bias
    return w_stack, b_stack, w_out


def build_adjacency(key, B, N):
    # random symmetric adjacency + self loops, symmetric normalization D^-1/2 A D^-1/2
    a = (jax.random.uniform(key, (B, N, N)) < 0.3).astype(jnp.float32)
    a = jnp.maximum(a, jnp.transpose(a, (0, 2, 1)))
    a = jnp.maximum(a, jnp.eye(N, dtype=jnp.float32)[None])
    deg = jnp.sum(a, axis=-1)
    dinv = 1.0 / jnp.sqrt(deg)
    return a * dinv[:, :, None] * dinv[:, None, :]


# ----------------------------------------------------------------------------
# Pure-JAX reference of the same math (correctness check)
# ----------------------------------------------------------------------------
def reference_forward(known_pos, adj, test_points, w, b, w_out, H):
    ke = pos_embedding(known_pos * 100.0, H)
    te = pos_embedding(test_points * 100.0, H)

    def per_batch(a, f0, c0):
        f = jnp.maximum(a @ f0 @ w[0] + b[0], 0.0)
        f = jnp.maximum(a @ f @ w[1] + b[1], 0.0)
        f = a @ f @ w[2] + b[2]
        c = jnp.maximum(c0 @ w[3] + b[3], 0.0)
        c = jnp.maximum(c @ w[4] + b[4], 0.0)
        c = c @ w[5] + b[5]
        q = c @ w[6] + b[6]
        k = f @ w[7] + b[7]
        v = f @ w[8] + b[8]
        s = (q @ k.T) / np.sqrt(H)
        p = jax.nn.softmax(s, axis=-1)
        o = p @ v @ w[9] + b[9]
        y = jnp.maximum(o @ w[10] + b[10], 0.0)
        y = jnp.maximum(y @ w[11] + b[11], 0.0)
        return y @ w_out

    with jax.default_matmul_precision("highest"):
        return jax.vmap(per_batch)(adj, ke, te)


if __name__ == "__main__":
    B, N, T, C = 4, 16, 8, 2      # batch, known nodes per graph, test points, coord dim
    H, O = 32, 4                  # hidden_size, out_feats

    key = jax.random.PRNGKey(0)
    k_pos, k_test, k_adj, k_w = jax.random.split(key, 4)

    known_pos = jax.random.uniform(k_pos, (B, N, C), jnp.float32)    # graph.ndata['pos']
    test_points = jax.random.uniform(k_test, (B, T, C), jnp.float32)
    adj_norm = build_adjacency(k_adj, B, N)
    w_stack, b_stack, w_out = init_weights(k_w, H, O)

    out = node_deeponet_forward(known_pos, adj_norm, test_points,
                                w_stack, b_stack, w_out, H, O)
    out = jax.block_until_ready(out)

    ref = jax.block_until_ready(
        reference_forward(known_pos, adj_norm, test_points, w_stack, b_stack, w_out, H))

    assert out.shape == (B, T, O), out.shape
    assert bool(jnp.all(jnp.isfinite(out)))
    np.testing.assert_allclose(np.asarray(out), np.asarray(ref), rtol=1e-2, atol=1e-2)
    print("KERNEL_OK")
</pallas_src>

<mosaic_0001>
module attributes {stable_mosaic.version = 11 : i64} {
  func.func @_deeponet_kernel(%arg0: i32, %arg1: memref<2x16x2xf32, #tpu.memory_space<vmem>>, %arg2: memref<2x16x16xf32, #tpu.memory_space<vmem>>, %arg3: memref<2x8x2xf32, #tpu.memory_space<vmem>>, %arg4: memref<12x32x32xf32, #tpu.memory_space<vmem>>, %arg5: memref<12x32xf32, #tpu.memory_space<vmem>>, %arg6: memref<32x128xf32, #tpu.memory_space<vmem>>, %arg7: memref<16x128xf32, #tpu.memory_space<vmem>>) attributes {dimension_semantics = [#tpu.dimension_semantics<parallel>], iteration_bounds = array<i64: 2>, scalar_prefetch = 0 : i64, scratch_operands = 0 : i64, tpu.core_type = #tpu.core_type<tc>, window_params = [{transform_indices = @transform_0, window_bounds = array<i64: 2, 16, 2>}, {transform_indices = @transform_1, window_bounds = array<i64: 2, 16, 16>}, {transform_indices = @transform_2, window_bounds = array<i64: 2, 8, 2>}, {pipeline_mode = #tpu.pipeline_mode<synchronous>, transform_indices = @transform_3, window_bounds = array<i64: 12, 32, 32>}, {pipeline_mode = #tpu.pipeline_mode<synchronous>, transform_indices = @transform_4, window_bounds = array<i64: 12, 32>}, {pipeline_mode = #tpu.pipeline_mode<synchronous>, transform_indices = @transform_5, window_bounds = array<i64: 32, 128>}, {transform_indices = @transform_6, window_bounds = array<i64: 16, 128>}]} {
    %0 = tpu.iota {dimensions = array<i32: 1>} : vector<1x32xi32>
    %c16_i32 = arith.constant 16 : i32
    %1 = vector.broadcast %c16_i32 : i32 to vector<1x32xi32>
    %2 = arith.cmpi slt, %0, %1 : vector<1x32xi32>
    %c16_i32_0 = arith.constant 16 : i32
    %3 = vector.broadcast %c16_i32_0 : i32 to vector<1x32xi32>
    %4 = arith.subi %0, %3 : vector<1x32xi32>
    %5 = arith.select %2, %0, %4 : vector<1x32xi1>, vector<1x32xi32>
    %6 = arith.sitofp %5 : vector<1x32xi32> to vector<1x32xf32>
    %cst = arith.constant -0.575646281 : f32
    %7 = vector.broadcast %cst : f32 to vector<1x32xf32>
    %8 = arith.mulf %7, %6 : vector<1x32xf32>
    %9 = math.exp %8 : vector<1x32xf32>
    %cst_1 = arith.constant 1.000000e+02 : f32
    %10 = vector.broadcast %cst_1 : f32 to vector<1x32xf32>
    %11 = arith.mulf %10, %9 : vector<1x32xf32>
    %cst_2 = arith.constant 0.000000e+00 : f32
    %cst_3 = arith.constant 1.57079637 : f32
    %12 = vector.broadcast %cst_2 : f32 to vector<1x32xf32>
    %13 = vector.broadcast %cst_3 : f32 to vector<1x32xf32>
    %14 = arith.select %2, %12, %13 : vector<1x32xi1>, vector<1x32xf32>
    %c0 = arith.constant 0 : index
    %c0_4 = arith.constant 0 : index
    %c0_5 = arith.constant 0 : index
    %15 = vector.load %arg1[%c0, %c0_4, %c0_5] : memref<2x16x2xf32, #tpu.memory_space<vmem>>, vector<2x16x2xf32>
    %16 = vector.shape_cast %15 : vector<2x16x2xf32> to vector<32x2xf32>
    %cst_6 = arith.constant 0.000000e+00 : f32
    %17 = vector.broadcast %cst_6 : f32 to vector<32x32xf32>
    %18 = vector.extract_strided_slice %16 {offsets = [0, 0], sizes = [32, 1], strides = [1, 1]} : vector<32x2xf32> to vector<32x1xf32>
    %19 = vector.broadcast %18 : vector<32x1xf32> to vector<32x32xf32>
    %20 = vector.broadcast %11 : vector<1x32xf32> to vector<32x32xf32>
    %21 = arith.mulf %19, %20 : vector<32x32xf32>
    %22 = vector.broadcast %14 : vector<1x32xf32> to vector<32x32xf32>
    %23 = arith.addf %21, %22 : vector<32x32xf32>
    %24 = math.sin %23 : vector<32x32xf32>
    %25 = arith.addf %17, %24 : vector<32x32xf32>
    %26 = vector.extract_strided_slice %16 {offsets = [0, 1], sizes = [32, 1], strides = [1, 1]} : vector<32x2xf32> to vector<32x1xf32>
    %27 = vector.broadcast %26 : vector<32x1xf32> to vector<32x32xf32>
    %28 = vector.broadcast %11 : vector<1x32xf32> to vector<32x32xf32>
    %29 = arith.mulf %27, %28 : vector<32x32xf32>
    %30 = vector.broadcast %14 : vector<1x32xf32> to vector<32x32xf32>
    %31 = arith.addf %29, %30 : vector<32x32xf32>
    %32 = math.sin %31 : vector<32x32xf32>
    %33 = arith.addf %25, %32 : vector<32x32xf32>
    %c0_7 = arith.constant 0 : index
    %c0_8 = arith.constant 0 : index
    %c0_9 = arith.constant 0 : index
    %34 = vector.load %arg3[%c0_7, %c0_8, %c0_9] : memref<2x8x2xf32, #tpu.memory_space<vmem>>, vector<2x8x2xf32>
    %35 = vector.shape_cast %34 : vector<2x8x2xf32> to vector<16x2xf32>
    %cst_10 = arith.constant 0.000000e+00 : f32
    %36 = vector.broadcast %cst_10 : f32 to vector<16x32xf32>
    %37 = vector.extract_strided_slice %35 {offsets = [0, 0], sizes = [16, 1], strides = [1, 1]} : vector<16x2xf32> to vector<16x1xf32>
    %38 = vector.broadcast %37 : vector<16x1xf32> to vector<16x32xf32>
    %39 = vector.broadcast %11 : vector<1x32xf32> to vector<16x32xf32>
    %40 = arith.mulf %38, %39 : vector<16x32xf32>
    %41 = vector.broadcast %14 : vector<1x32xf32> to vector<16x32xf32>
    %42 = arith.addf %40, %41 : vector<16x32xf32>
    %43 = math.sin %42 : vector<16x32xf32>
    %44 = arith.addf %36, %43 : vector<16x32xf32>
    %45 = vector.extract_strided_slice %35 {offsets = [0, 1], sizes = [16, 1], strides = [1, 1]} : vector<16x2xf32> to vector<16x1xf32>
    %46 = vector.broadcast %45 : vector<16x1xf32> to vector<16x32xf32>
    %47 = vector.broadcast %11 : vector<1x32xf32> to vector<16x32xf32>
    %48 = arith.mulf %46, %47 : vector<16x32xf32>
    %49 = vector.broadcast %14 : vector<1x32xf32> to vector<16x32xf32>
    %50 = arith.addf %48, %49 : vector<16x32xf32>
    %51 = math.sin %50 : vector<16x32xf32>
    %52 = arith.addf %44, %51 : vector<16x32xf32>
    %c0_11 = arith.constant 0 : index
    %c0_12 = arith.constant 0 : index
    %c0_13 = arith.constant 0 : index
    %53 = vector.load %arg2[%c0_11, %c0_12, %c0_13] : memref<2x16x16xf32, #tpu.memory_space<vmem>>, vector<2x16x16xf32>
    %c0_14 = arith.constant 0 : index
    %c0_15 = arith.constant 0 : index
    %c0_16 = arith.constant 0 : index
    %54 = vector.load %arg4[%c0_14, %c0_15, %c0_16] : memref<12x32x32xf32, #tpu.memory_space<vmem>>, vector<1x32x32xf32>
    %55 = vector.shape_cast %54 : vector<1x32x32xf32> to vector<32x32xf32>
    %cst_17 = arith.constant dense<0.000000e+00> : vector<32x32xf32>
    %56 = tpu.matmul %33, %55, %cst_17 {dimension_numbers = #tpu.dot_dimension_numbers<[1], [0], [0], [1], [0, 0, 1, 1], [], []>} : vector<32x32xf32>, vector<32x32xf32>, vector<32x32xf32> -> vector<32x32xf32>
    %57 = vector.shape_cast %56 : vector<32x32xf32> to vector<2x16x32xf32>
    %cst_18 = arith.constant dense<0.000000e+00> : vector<2x16x32xf32>
    %58 = tpu.matmul %53, %57, %cst_18 {dimension_numbers = #tpu.dot_dimension_numbers<[2], [1], [1], [2], [0, 0, 0, 1, 1, 2], [0], [0]>} : vector<2x16x16xf32>, vector<2x16x32xf32>, vector<2x16x32xf32> -> vector<2x16x32xf32>
    %59 = vector.shape_cast %58 : vector<2x16x32xf32> to vector<32x32xf32>
    %c0_19 = arith.constant 0 : index
    %c0_20 = arith.constant 0 : index
    %60 = vector.load %arg5[%c0_19, %c0_20] : memref<12x32xf32, #tpu.memory_space<vmem>>, vector<1x32xf32>
    %61 = vector.broadcast %60 : vector<1x32xf32> to vector<32x32xf32>
    %62 = arith.addf %59, %61 : vector<32x32xf32>
    %cst_21 = arith.constant 0.000000e+00 : f32
    %63 = vector.broadcast %cst_21 : f32 to vector<32x32xf32>
    %64 = arith.maximumf %62, %63 : vector<32x32xf32>
    %c1 = arith.constant 1 : index
    %c0_22 = arith.constant 0 : index
    %c0_23 = arith.constant 0 : index
    %65 = vector.load %arg4[%c1, %c0_22, %c0_23] : memref<12x32x32xf32, #tpu.memory_space<vmem>>, vector<1x32x32xf32>
    %66 = vector.shape_cast %65 : vector<1x32x32xf32> to vector<32x32xf32>
    %cst_24 = arith.constant dense<0.000000e+00> : vector<32x32xf32>
    %67 = tpu.matmul %64, %66, %cst_24 {dimension_numbers = #tpu.dot_dimension_numbers<[1], [0], [0], [1], [0, 0, 1, 1], [], []>} : vector<32x32xf32>, vector<32x32xf32>, vector<32x32xf32> -> vector<32x32xf32>
    %68 = vector.shape_cast %67 : vector<32x32xf32> to vector<2x16x32xf32>
    %cst_25 = arith.constant dense<0.000000e+00> : vector<2x16x32xf32>
    %69 = tpu.matmul %53, %68, %cst_25 {dimension_numbers = #tpu.dot_dimension_numbers<[2], [1], [1], [2], [0, 0, 0, 1, 1, 2], [0], [0]>} : vector<2x16x16xf32>, vector<2x16x32xf32>, vector<2x16x32xf32> -> vector<2x16x32xf32>
    %70 = vector.shape_cast %69 : vector<2x16x32xf32> to vector<32x32xf32>
    %c1_26 = arith.constant 1 : index
    %c0_27 = arith.constant 0 : index
    %71 = vector.load %arg5[%c1_26, %c0_27] : memref<12x32xf32, #tpu.memory_space<vmem>>, vector<1x32xf32>
    %72 = vector.broadcast %71 : vector<1x32xf32> to vector<32x32xf32>
    %73 = arith.addf %70, %72 : vector<32x32xf32>
    %cst_28 = arith.constant 0.000000e+00 : f32
    %74 = vector.broadcast %cst_28 : f32 to vector<32x32xf32>
    %75 = arith.maximumf %73, %74 : vector<32x32xf32>
    %c2 = arith.constant 2 : index
    %c0_29 = arith.constant 0 : index
    %c0_30 = arith.constant 0 : index
    %76 = vector.load %arg4[%c2, %c0_29, %c0_30] : memref<12x32x32xf32, #tpu.memory_space<vmem>>, vector<1x32x32xf32>
    %77 = vector.shape_cast %76 : vector<1x32x32xf32> to vector<32x32xf32>
    %cst_31 = arith.constant dense<0.000000e+00> : vector<32x32xf32>
    %78 = tpu.matmul %75, %77, %cst_31 {dimension_numbers = #tpu.dot_dimension_numbers<[1], [0], [0], [1], [0, 0, 1, 1], [], []>} : vector<32x32xf32>, vector<32x32xf32>, vector<32x32xf32> -> vector<32x32xf32>
    %79 = vector.shape_cast %78 : vector<32x32xf32> to vector<2x16x32xf32>
    %cst_32 = arith.constant dense<0.000000e+00> : vector<2x16x32xf32>
    %80 = tpu.matmul %53, %79, %cst_32 {dimension_numbers = #tpu.dot_dimension_numbers<[2], [1], [1], [2], [0, 0, 0, 1, 1, 2], [0], [0]>} : vector<2x16x16xf32>, vector<2x16x32xf32>, vector<2x16x32xf32> -> vector<2x16x32xf32>
    %81 = vector.shape_cast %80 : vector<2x16x32xf32> to vector<32x32xf32>
    %c2_33 = arith.constant 2 : index
    %c0_34 = arith.constant 0 : index
    %82 = vector.load %arg5[%c2_33, %c0_34] : memref<12x32xf32, #tpu.memory_space<vmem>>, vector<1x32xf32>
    %83 = vector.broadcast %82 : vector<1x32xf32> to vector<32x32xf32>
    %84 = arith.addf %81, %83 : vector<32x32xf32>
    %c3 = arith.constant 3 : index
    %c0_35 = arith.constant 0 : index
    %c0_36 = arith.constant 0 : index
    %85 = vector.load %arg4[%c3, %c0_35, %c0_36] : memref<12x32x32xf32, #tpu.memory_space<vmem>>, vector<1x32x32xf32>
    %86 = vector.shape_cast %85 : vector<1x32x32xf32> to vector<32x32xf32>
    %cst_37 = arith.constant dense<0.000000e+00> : vector<16x32xf32>
    %87 = tpu.matmul %52, %86, %cst_37 {dimension_numbers = #tpu.dot_dimension_numbers<[1], [0], [0], [1], [0, 0, 1, 1], [], []>} : vector<16x32xf32>, vector<32x32xf32>, vector<16x32xf32> -> vector<16x32xf32>
    %c3_38 = arith.constant 3 : index
    %c0_39 = arith.constant 0 : index
    %88 = vector.load %arg5[%c3_38, %c0_39] : memref<12x32xf32, #tpu.memory_space<vmem>>, vector<1x32xf32>
    %89 = vector.broadcast %88 : vector<1x32xf32> to vector<16x32xf32>
    %90 = arith.addf %87, %89 : vector<16x32xf32>
    %cst_40 = arith.constant 0.000000e+00 : f32
    %91 = vector.broadcast %cst_40 : f32 to vector<16x32xf32>
    %92 = arith.maximumf %90, %91 : vector<16x32xf32>
    %c4 = arith.constant 4 : index
    %c0_41 = arith.constant 0 : index
    %c0_42 = arith.constant 0 : index
    %93 = vector.load %arg4[%c4, %c0_41, %c0_42] : memref<12x32x32xf32, #tpu.memory_space<vmem>>, vector<1x32x32xf32>
    %94 = vector.shape_cast %93 : vector<1x32x32xf32> to vector<32x32xf32>
    %cst_43 = arith.constant dense<0.000000e+00> : vector<16x32xf32>
    %95 = tpu.matmul %92, %94, %cst_43 {dimension_numbers = #tpu.dot_dimension_numbers<[1], [0], [0], [1], [0, 0, 1, 1], [], []>} : vector<16x32xf32>, vector<32x32xf32>, vector<16x32xf32> -> vector<16x32xf32>
    %c4_44 = arith.constant 4 : index
    %c0_45 = arith.constant 0 : index
    %96 = vector.load %arg5[%c4_44, %c0_45] : memref<12x32xf32, #tpu.memory_space<vmem>>, vector<1x32xf32>
    %97 = vector.broadcast %96 : vector<1x32xf32> to vector<16x32xf32>
    %98 = arith.addf %95, %97 : vector<16x32xf32>
    %cst_46 = arith.constant 0.000000e+00 : f32
    %99 = vector.broadcast %cst_46 : f32 to vector<16x32xf32>
    %100 = arith.maximumf %98, %99 : vector<16x32xf32>
    %c5 = arith.constant 5 : index
    %c0_47 = arith.constant 0 : index
    %c0_48 = arith.constant 0 : index
    %101 = vector.load %arg4[%c5, %c0_47, %c0_48] : memref<12x32x32xf32, #tpu.memory_space<vmem>>, vector<1x32x32xf32>
    %102 = vector.shape_cast %101 : vector<1x32x32xf32> to vector<32x32xf32>
    %cst_49 = arith.constant dense<0.000000e+00> : vector<16x32xf32>
    %103 = tpu.matmul %100, %102, %cst_49 {dimension_numbers = #tpu.dot_dimension_numbers<[1], [0], [0], [1], [0, 0, 1, 1], [], []>} : vector<16x32xf32>, vector<32x32xf32>, vector<16x32xf32> -> vector<16x32xf32>
    %c5_50 = arith.constant 5 : index
    %c0_51 = arith.constant 0 : index
    %104 = vector.load %arg5[%c5_50, %c0_51] : memref<12x32xf32, #tpu.memory_space<vmem>>, vector<1x32xf32>
    %105 = vector.broadcast %104 : vector<1x32xf32> to vector<16x32xf32>
    %106 = arith.addf %103, %105 : vector<16x32xf32>
    %c6 = arith.constant 6 : index
    %c0_52 = arith.constant 0 : index
    %c0_53 = arith.constant 0 : index
    %107 = vector.load %arg4[%c6, %c0_52, %c0_53] : memref<12x32x32xf32, #tpu.memory_space<vmem>>, vector<1x32x32xf32>
    %108 = vector.shape_cast %107 : vector<1x32x32xf32> to vector<32x32xf32>
    %cst_54 = arith.constant dense<0.000000e+00> : vector<16x32xf32>
    %109 = tpu.matmul %106, %108, %cst_54 {dimension_numbers = #tpu.dot_dimension_numbers<[1], [0], [0], [1], [0, 0, 1, 1], [], []>} : vector<16x32xf32>, vector<32x32xf32>, vector<16x32xf32> -> vector<16x32xf32>
    %c6_55 = arith.constant 6 : index
    %c0_56 = arith.constant 0 : index
    %110 = vector.load %arg5[%c6_55, %c0_56] : memref<12x32xf32, #tpu.memory_space<vmem>>, vector<1x32xf32>
    %111 = vector.broadcast %110 : vector<1x32xf32> to vector<16x32xf32>
    %112 = arith.addf %109, %111 : vector<16x32xf32>
    %113 = vector.shape_cast %112 : vector<16x32xf32> to vector<2x8x32xf32>
    %c7 = arith.constant 7 : index
    %c0_57 = arith.constant 0 : index
    %c0_58 = arith.constant 0 : index
    %114 = vector.load %arg4[%c7, %c0_57, %c0_58] : memref<12x32x32xf32, #tpu.memory_space<vmem>>, vector<1x32x32xf32>
    %115 = vector.shape_cast %114 : vector<1x32x32xf32> to vector<32x32xf32>
    %cst_59 = arith.constant dense<0.000000e+00> : vector<32x32xf32>
    %116 = tpu.matmul %84, %115, %cst_59 {dimension_numbers = #tpu.dot_dimension_numbers<[1], [0], [0], [1], [0, 0, 1, 1], [], []>} : vector<32x32xf32>, vector<32x32xf32>, vector<32x32xf32> -> vector<32x32xf32>
    %c7_60 = arith.constant 7 : index
    %c0_61 = arith.constant 0 : index
    %117 = vector.load %arg5[%c7_60, %c0_61] : memref<12x32xf32, #tpu.memory_space<vmem>>, vector<1x32xf32>
    %118 = vector.broadcast %117 : vector<1x32xf32> to vector<32x32xf32>
    %119 = arith.addf %116, %118 : vector<32x32xf32>
    %120 = vector.shape_cast %119 : vector<32x32xf32> to vector<2x16x32xf32>
    %c8 = arith.constant 8 : index
    %c0_62 = arith.constant 0 : index
    %c0_63 = arith.constant 0 : index
    %121 = vector.load %arg4[%c8, %c0_62, %c0_63] : memref<12x32x32xf32, #tpu.memory_space<vmem>>, vector<1x32x32xf32>
    %122 = vector.shape_cast %121 : vector<1x32x32xf32> to vector<32x32xf32>
    %cst_64 = arith.constant dense<0.000000e+00> : vector<32x32xf32>
    %123 = tpu.matmul %84, %122, %cst_64 {dimension_numbers = #tpu.dot_dimension_numbers<[1], [0], [0], [1], [0, 0, 1, 1], [], []>} : vector<32x32xf32>, vector<32x32xf32>, vector<32x32xf32> -> vector<32x32xf32>
    %c8_65 = arith.constant 8 : index
    %c0_66 = arith.constant 0 : index
    %124 = vector.load %arg5[%c8_65, %c0_66] : memref<12x32xf32, #tpu.memory_space<vmem>>, vector<1x32xf32>
    %125 = vector.broadcast %124 : vector<1x32xf32> to vector<32x32xf32>
    %126 = arith.addf %123, %125 : vector<32x32xf32>
    %127 = vector.shape_cast %126 : vector<32x32xf32> to vector<2x16x32xf32>
    %cst_67 = arith.constant dense<0.000000e+00> : vector<2x8x16xf32>
    %128 = tpu.matmul %113, %120, %cst_67 {dimension_numbers = #tpu.dot_dimension_numbers<[2], [2], [1], [1], [0, 0, 0, 1, 1, 1], [0], [0]>} : vector<2x8x32xf32>, vector<2x16x32xf32>, vector<2x8x16xf32> -> vector<2x8x16xf32>
    %cst_68 = arith.constant 0.176776692 : f32
    %129 = vector.broadcast %cst_68 : f32 to vector<2x8x16xf32>
    %130 = arith.mulf %128, %129 : vector<2x8x16xf32>
    %cst_69 = arith.constant dense<0xFF800000> : vector<2x8xf32>
    %131 = vector.multi_reduction <maximumf>, %130, %cst_69 [2] : vector<2x8x16xf32> to vector<2x8xf32>
    %132 = vector.shape_cast %131 : vector<2x8xf32> to vector<2x8x1xf32>
    %133 = vector.broadcast %132 : vector<2x8x1xf32> to vector<2x8x16xf32>
    %134 = arith.subf %130, %133 : vector<2x8x16xf32>
    %135 = math.exp %134 : vector<2x8x16xf32>
    %cst_70 = arith.constant dense<0.000000e+00> : vector<2x8xf32>
    %136 = vector.multi_reduction <add>, %135, %cst_70 [2] : vector<2x8x16xf32> to vector<2x8xf32>
    %137 = vector.shape_cast %136 : vector<2x8xf32> to vector<2x8x1xf32>
    %138 = tpu.reciprocal %137 {approx = true} : vector<2x8x1xf32> -> vector<2x8x1xf32>
    %139 = vector.broadcast %138 : vector<2x8x1xf32> to vector<2x8x16xf32>
    %140 = arith.mulf %135, %139 : vector<2x8x16xf32>
    %cst_71 = arith.constant dense<0.000000e+00> : vector<2x8x32xf32>
    %141 = tpu.matmul %140, %127, %cst_71 {dimension_numbers = #tpu.dot_dimension_numbers<[2], [1], [1], [2], [0, 0, 0, 1, 1, 2], [0], [0]>} : vector<2x8x16xf32>, vector<2x16x32xf32>, vector<2x8x32xf32> -> vector<2x8x32xf32>
    %142 = vector.shape_cast %141 : vector<2x8x32xf32> to vector<16x32xf32>
    %c9 = arith.constant 9 : index
    %c0_72 = arith.constant 0 : index
    %c0_73 = arith.constant 0 : index
    %143 = vector.load %arg4[%c9, %c0_72, %c0_73] : memref<12x32x32xf32, #tpu.memory_space<vmem>>, vector<1x32x32xf32>
    %144 = vector.shape_cast %143 : vector<1x32x32xf32> to vector<32x32xf32>
    %cst_74 = arith.constant dense<0.000000e+00> : vector<16x32xf32>
    %145 = tpu.matmul %142, %144, %cst_74 {dimension_numbers = #tpu.dot_dimension_numbers<[1], [0], [0], [1], [0, 0, 1, 1], [], []>} : vector<16x32xf32>, vector<32x32xf32>, vector<16x32xf32> -> vector<16x32xf32>
    %c9_75 = arith.constant 9 : index
    %c0_76 = arith.constant 0 : index
    %146 = vector.load %arg5[%c9_75, %c0_76] : memref<12x32xf32, #tpu.memory_space<vmem>>, vector<1x32xf32>
    %147 = vector.broadcast %146 : vector<1x32xf32> to vector<16x32xf32>
    %148 = arith.addf %145, %147 : vector<16x32xf32>
    %c10 = arith.constant 10 : index
    %c0_77 = arith.constant 0 : index
    %c0_78 = arith.constant 0 : index
    %149 = vector.load %arg4[%c10, %c0_77, %c0_78] : memref<12x32x32xf32, #tpu.memory_space<vmem>>, vector<1x32x32xf32>
    %150 = vector.shape_cast %149 : vector<1x32x32xf32> to vector<32x32xf32>
    %cst_79 = arith.constant dense<0.000000e+00> : vector<16x32xf32>
    %151 = tpu.matmul %148, %150, %cst_79 {dimension_numbers = #tpu.dot_dimension_numbers<[1], [0], [0], [1], [0, 0, 1, 1], [], []>} : vector<16x32xf32>, vector<32x32xf32>, vector<16x32xf32> -> vector<16x32xf32>
    %c10_80 = arith.constant 10 : index
    %c0_81 = arith.constant 0 : index
    %152 = vector.load %arg5[%c10_80, %c0_81] : memref<12x32xf32, #tpu.memory_space<vmem>>, vector<1x32xf32>
    %153 = vector.broadcast %152 : vector<1x32xf32> to vector<16x32xf32>
    %154 = arith.addf %151, %153 : vector<16x32xf32>
    %cst_82 = arith.constant 0.000000e+00 : f32
    %155 = vector.broadcast %cst_82 : f32 to vector<16x32xf32>
    %156 = arith.maximumf %154, %155 : vector<16x32xf32>
    %c11 = arith.constant 11 : index
    %c0_83 = arith.constant 0 : index
    %c0_84 = arith.constant 0 : index
    %157 = vector.load %arg4[%c11, %c0_83, %c0_84] : memref<12x32x32xf32, #tpu.memory_space<vmem>>, vector<1x32x32xf32>
    %158 = vector.shape_cast %157 : vector<1x32x32xf32> to vector<32x32xf32>
    %cst_85 = arith.constant dense<0.000000e+00> : vector<16x32xf32>
    %159 = tpu.matmul %156, %158, %cst_85 {dimension_numbers = #tpu.dot_dimension_numbers<[1], [0], [0], [1], [0, 0, 1, 1], [], []>} : vector<16x32xf32>, vector<32x32xf32>, vector<16x32xf32> -> vector<16x32xf32>
    %c11_86 = arith.constant 11 : index
    %c0_87 = arith.constant 0 : index
    %160 = vector.load %arg5[%c11_86, %c0_87] : memref<12x32xf32, #tpu.memory_space<vmem>>, vector<1x32xf32>
    %161 = vector.broadcast %160 : vector<1x32xf32> to vector<16x32xf32>
    %162 = arith.addf %159, %161 : vector<16x32xf32>
    %cst_88 = arith.constant 0.000000e+00 : f32
    %163 = vector.broadcast %cst_88 : f32 to vector<16x32xf32>
    %164 = arith.maximumf %162, %163 : vector<16x32xf32>
    %c0_89 = arith.constant 0 : index
    %c0_90 = arith.constant 0 : index
    %165 = vector.load %arg6[%c0_89, %c0_90] : memref<32x128xf32, #tpu.memory_space<vmem>>, vector<32x128xf32>
    %cst_91 = arith.constant dense<0.000000e+00> : vector<16x128xf32>
    %166 = tpu.matmul %164, %165, %cst_91 {dimension_numbers = #tpu.dot_dimension_numbers<[1], [0], [0], [1], [0, 0, 1, 1], [], []>} : vector<16x32xf32>, vector<32x128xf32>, vector<16x128xf32> -> vector<16x128xf32>
    %c0_92 = arith.constant 0 : index
    %c0_93 = arith.constant 0 : index
    %167 = vector.load %arg7[%c0_92, %c0_93] : memref<16x128xf32, #tpu.memory_space<vmem>>, vector<16x128xf32>
    tpu.vector_store %arg7[%c0_92, %c0_93], %166 {strides = array<i32>} : memref<16x128xf32, #tpu.memory_space<vmem>>, vector<16x128xf32>,
    return
  }
  func.func @transform_0(%arg0: i32) -> (i32, i32, i32) {
    %c0_i32 = arith.constant 0 : i32
    %c0_i32_0 = arith.constant 0 : i32
    %c0_i32_1 = arith.constant 0 : i32
    return %arg0, %c0_i32, %c0_i32_0 : i32, i32, i32
  }
  func.func @transform_1(%arg0: i32) -> (i32, i32, i32) {
    %c0_i32 = arith.constant 0 : i32
    %c0_i32_0 = arith.constant 0 : i32
    %c0_i32_1 = arith.constant 0 : i32
    return %arg0, %c0_i32, %c0_i32_0 : i32, i32, i32
  }
  func.func @transform_2(%arg0: i32) -> (i32, i32, i32) {
    %c0_i32 = arith.constant 0 : i32
    %c0_i32_0 = arith.constant 0 : i32
    %c0_i32_1 = arith.constant 0 : i32
    return %arg0, %c0_i32, %c0_i32_0 : i32, i32, i32
  }
  func.func @transform_3(%arg0: i32) -> (i32, i32, i32) {
    %c0_i32 = arith.constant 0 : i32
    %c0_i32_0 = arith.constant 0 : i32
    %c0_i32_1 = arith.constant 0 : i32
    %c0_i32_2 = arith.constant 0 : i32
    return %c0_i32, %c0_i32_0, %c0_i32_1 : i32, i32, i32
  }
  func.func @transform_4(%arg0: i32) -> (i32, i32) {
    %c0_i32 = arith.constant 0 : i32
    %c0_i32_0 = arith.constant 0 : i32
    %c0_i32_1 = arith.constant 0 : i32
    return %c0_i32, %c0_i32_0 : i32, i32
  }
  func.func @transform_5(%arg0: i32) -> (i32, i32) {
    %c0_i32 = arith.constant 0 : i32
    %c0_i32_0 = arith.constant 0 : i32
    %c0_i32_1 = arith.constant 0 : i32
    return %c0_i32, %c0_i32_0 : i32, i32
  }
  func.func @transform_6(%arg0: i32) -> (i32, i32) {
    %c0_i32 = arith.constant 0 : i32
    %c0_i32_0 = arith.constant 0 : i32
    return %arg0, %c0_i32 : i32, i32
  }
}

</mosaic_0001>

<llo_original>
// kernel: tpu_custom_call.1
$region0: #{tpu_custom_call.1}
  #allocation0 [shape = 'u32[]', space=smem, size = 0x4, offset = 0x4, fixed_abs, tag = 'smem constant byte address 0x4 - core index']
  #allocation1 [shape = 'u32[72,128]{1,0:T(1,128)}', space=vmem, size = 0x9000, scoped, tag = 'internal scratch']
  %s0 = inlined_call_operand.vmem [shape: f32[4,16,2], index: 0, kind: input, shape index: {}]
  %s1 = inlined_call_operand.vmem [shape: f32[4,16,16], index: 1, kind: input, shape index: {}]
  %s2 = inlined_call_operand.vmem [shape: f32[4,8,2], index: 2, kind: input, shape index: {}]
  %s3 = inlined_call_operand.hbm [shape: f32[12,32,32], index: 3, kind: input, shape index: {}]
  %s4 = inlined_call_operand.hbm [shape: f32[12,32], index: 4, kind: input, shape index: {}]
  %s5 = inlined_call_operand.vmem [shape: f32[32,128], index: 5, kind: input, shape index: {}]
  %s6 = inlined_call_operand.hbm [shape: f32[32,128], index: 6, kind: output, shape index: {}]
  %s7 = sld [smem:[#allocation0]]
  $region65: #{tpu_custom_call.1} parent=0
    _
  %s9 = ssub.s32 1, %s7
  %s10 = scalar_select 0, %s9, %s7
  $region1: #{tpu_custom_call.1} parent=0
    #allocation2 [shape = 'u8[196608]{0}', space=vmem, size = 0x30000, scoped, tag = 'input window, operand 3, single buffered']
    #allocation3 [shape = 's32[2]{0}', space=sflag, size = 0x8, scoped, tag = 'scoped memory for tpu_custom_call.1']
    #allocation4 [shape = 's32[2]{0}', space=sflag, size = 0x8, scoped, tag = 'scoped memory for tpu_custom_call.1']
    #allocation5 [shape = 'u8[8192]{0}', space=vmem, size = 0x2000, scoped, tag = 'input window, operand 4, single buffered']
    #allocation6 [shape = 's32[1]{0}', space=sflag, size = 0x4, scoped, tag = 'scoped memory for tpu_custom_call.1']
    #allocation7 [shape = 'u8[16384]{0}', space=vmem, size = 0x4000, scoped, tag = 'output window, operand 0']
    %11 = vsyncpa [#allocation3], 0
    %12 = vsyncpa [#allocation6], 0
    %13 = vsyncpa [#allocation4], 0
    %s14 = scalar_lea.sflag [#allocation4], 1
    %15 = vsyncpa %s14, 0
    loop: start=0, step=1, limit=4
    $region2: #{tpu_custom_call.1} parent=1 // loop_pre_header
      _
    $region3: #{tpu_custom_call.1} parent=1 // loop_header
      %s17 = sphi 0, %s21
      %p18 = scmp.ge.s32.totalorder %s17, 4
      %s27 = sphi 0, %s29
      %s30 = sphi 0, %s27
      %s31 = sphi 0, %s30
      %s47 = sphi 0, %s31
      %s53 = sphi 0, %s55
      %s56 = sphi 0, %s53
      %s57 = sphi 0, %s56
      %s73 = sphi 0, %s57
      %s79 = sphi 0, %s81
      %s82 = sphi 0, %s79
      %s83 = sphi 0, %s82
      %s99 = sphi 0, %s83
      %s103 = sphi 0, %s103
      %s105 = sphi 0, %s103
      %s106 = sphi 0, %s105
      %s120 = sphi 0, %s106
      %s124 = sphi 0, %s124
      %s126 = sphi 0, %s124
      %s127 = sphi 0, %s126
      %s141 = sphi 0, %s127
      %s145 = sphi 0, %s145
      %s147 = sphi 0, %s145
      %s148 = sphi 0, %s147
      %s162 = sphi 0, %s148
      %s168 = sphi 0, %s170
      %s171 = sphi 0, %s168
      %s172 = sphi 0, %s171
      %s188 = sphi 0, %s172
    $region4: #{tpu_custom_call.1} parent=1 // loop_header_branch
      %20 = sbr.rel (%p18) target = $region8
    $region5: #{tpu_custom_call.1} parent=1 // loop_body
      %s22 = ssub.s32 %s17, 1
      %s23 = ssub.s32 %s17, 2
      %s24 = sadd.s32 %s17, 1
      %s25 = ssub.s32 %s17, %s24
      %p26 = scmp.eq.s32.totalorder %s25, 0
      %s28 = sadd.s32 %s27, 1
      %s29 = scalar_select %p26, %s27, %s28
      %p32 = pneg %p26
      %p33 = scmp.eq.s32.totalorder %s17, 1
      %p34 = por %p32, %p33
      %p35 = scmp.ne.s32.totalorder %s27, %s30
      %p36 = scmp.eq.s32.totalorder %s17, 0
      %p37 = por %p35, %p36
      %p38 = scmp.ne.s32.totalorder %s27, %s30
      %p39 = scmp.eq.s32.totalorder %s22, 1
      %p40 = por %p38, %p39
      %p41 = scmp.ne.s32.totalorder %s30, %s31
      %p42 = scmp.eq.s32.totalorder %s22, 0
      %p43 = por %p41, %p42
      %p44 = scmp.ne.s32.totalorder %s30, %s31
      %p45 = scmp.eq.s32.totalorder %s23, 1
      %p46 = por %p44, %p45
      %p48 = scmp.ne.s32.totalorder %s31, %s47
      %p49 = scmp.eq.s32.totalorder %s23, 0
      %p50 = por %p48, %p49
      %s51 = ssub.s32 %s17, %s24
      %p52 = scmp.eq.s32.totalorder %s51, 0
      %s54 = sadd.s32 %s53, 1
      %s55 = scalar_select %p52, %s53, %s54
      %p58 = pneg %p52
      %p59 = scmp.eq.s32.totalorder %s17, 1
      %p60 = por %p58, %p59
      %p61 = scmp.ne.s32.totalorder %s53, %s56
      %p62 = scmp.eq.s32.totalorder %s17, 0
      %p63 = por %p61, %p62
      %p64 = scmp.ne.s32.totalorder %s53, %s56
      %p65 = scmp.eq.s32.totalorder %s22, 1
      %p66 = por %p64, %p65
      %p67 = scmp.ne.s32.totalorder %s56, %s57
      %p68 = scmp.eq.s32.totalorder %s22, 0
      %p69 = por %p67, %p68
      %p70 = scmp.ne.s32.totalorder %s56, %s57
      %p71 = scmp.eq.s32.totalorder %s23, 1
      %p72 = por %p70, %p71
      %p74 = scmp.ne.s32.totalorder %s57, %s73
      %p75 = scmp.eq.s32.totalorder %s23, 0
      %p76 = por %p74, %p75
      %s77 = ssub.s32 %s17, %s24
      %p78 = scmp.eq.s32.totalorder %s77, 0
      %s80 = sadd.s32 %s79, 1
      %s81 = scalar_select %p78, %s79, %s80
      %p84 = pneg %p78
      %p85 = scmp.eq.s32.totalorder %s17, 1
      %p86 = por %p84, %p85
      %p87 = scmp.ne.s32.totalorder %s79, %s82
      %p88 = scmp.eq.s32.totalorder %s17, 0
      %p89 = por %p87, %p88
      %p90 = scmp.ne.s32.totalorder %s79, %s82
      %p91 = scmp.eq.s32.totalorder %s22, 1
      %p92 = por %p90, %p91
      %p93 = scmp.ne.s32.totalorder %s82, %s83
      %p94 = scmp.eq.s32.totalorder %s22, 0
      %p95 = por %p93, %p94
      %p96 = scmp.ne.s32.totalorder %s82, %s83
      %p97 = scmp.eq.s32.totalorder %s23, 1
      %p98 = por %p96, %p97
      %p100 = scmp.ne.s32.totalorder %s83, %s99
      %p101 = scmp.eq.s32.totalorder %s23, 0
      %p102 = por %p100, %p101
      %s104 = sadd.s32 %s103, 1
      %p107 = scmp.eq.s32.totalorder %s17, 1
      %p108 = scmp.ne.s32.totalorder %s103, %s105
      %p109 = scmp.eq.s32.totalorder %s17, 0
      %p110 = por %p108, %p109
      %p111 = scmp.ne.s32.totalorder %s103, %s105
      %p112 = scmp.eq.s32.totalorder %s22, 1
      %p113 = por %p111, %p112
      %p114 = scmp.ne.s32.totalorder %s105, %s106
      %p115 = scmp.eq.s32.totalorder %s22, 0
      %p116 = por %p114, %p115
      %p117 = scmp.ne.s32.totalorder %s105, %s106
      %p118 = scmp.eq.s32.totalorder %s23, 1
      %p119 = por %p117, %p118
      %p121 = scmp.ne.s32.totalorder %s106, %s120
      %p122 = scmp.eq.s32.totalorder %s23, 0
      %p123 = por %p121, %p122
      %s125 = sadd.s32 %s124, 1
      %p128 = scmp.eq.s32.totalorder %s17, 1
      %p129 = scmp.ne.s32.totalorder %s124, %s126
      %p130 = scmp.eq.s32.totalorder %s17, 0
      %p131 = por %p129, %p130
      %p132 = scmp.ne.s32.totalorder %s124, %s126
      %p133 = scmp.eq.s32.totalorder %s22, 1
      %p134 = por %p132, %p133
      %p135 = scmp.ne.s32.totalorder %s126, %s127
      %p136 = scmp.eq.s32.totalorder %s22, 0
      %p137 = por %p135, %p136
      %p138 = scmp.ne.s32.totalorder %s126, %s127
      %p139 = scmp.eq.s32.totalorder %s23, 1
      %p140 = por %p138, %p139
      %p142 = scmp.ne.s32.totalorder %s127, %s141
      %p143 = scmp.eq.s32.totalorder %s23, 0
      %p144 = por %p142, %p143
      %s146 = sadd.s32 %s145, 1
      %p149 = scmp.eq.s32.totalorder %s17, 1
      %p150 = scmp.ne.s32.totalorder %s145, %s147
      %p151 = scmp.eq.s32.totalorder %s17, 0
      %p152 = por %p150, %p151
      %p153 = scmp.ne.s32.totalorder %s145, %s147
      %p154 = scmp.eq.s32.totalorder %s22, 1
      %p155 = por %p153, %p154
      %p156 = scmp.ne.s32.totalorder %s147, %s148
      %p157 = scmp.eq.s32.totalorder %s22, 0
      %p158 = por %p156, %p157
      %p159 = scmp.ne.s32.totalorder %s147, %s148
      %p160 = scmp.eq.s32.totalorder %s23, 1
      %p161 = por %p159, %p160
      %p163 = scmp.ne.s32.totalorder %s148, %s162
      %p164 = scmp.eq.s32.totalorder %s23, 0
      %p165 = por %p163, %p164
      %s166 = ssub.s32 %s17, %s24
      %p167 = scmp.eq.s32.totalorder %s166, 0
      %s169 = sadd.s32 %s168, 1
      %s170 = scalar_select %p167, %s168, %s169
      %p173 = pneg %p167
      %p174 = scmp.eq.s32.totalorder %s17, 1
      %p175 = por %p173, %p174
      %p176 = scmp.ne.s32.totalorder %s168, %s171
      %p177 = scmp.eq.s32.totalorder %s17, 0
      %p178 = por %p176, %p177
      %p179 = scmp.ne.s32.totalorder %s168, %s171
      %p180 = scmp.eq.s32.totalorder %s22, 1
      %p181 = por %p179, %p180
      %p182 = scmp.ne.s32.totalorder %s171, %s172
      %p183 = scmp.eq.s32.totalorder %s22, 0
      %p184 = por %p182, %p183
      %p185 = scmp.ne.s32.totalorder %s171, %s172
      %p186 = scmp.eq.s32.totalorder %s23, 1
      %p187 = por %p185, %p186
      %p189 = scmp.ne.s32.totalorder %s172, %s188
      %p190 = scmp.eq.s32.totalorder %s23, 0
      %p191 = por %p189, %p190
      %p192 = scmp.le.s32.totalorder 1, %s17
      %p193 = scmp.lt.s32.totalorder %s17, 3
      %p194 = pnand %p192, %p193
      %p195 = pneg %p194
      // Predicated region
      $region9: #{tpu_custom_call.1} parent=5 // pred_check
        _
      $region10: #{tpu_custom_call.1} parent=5 // pred_check_branch
        %197 = sbr.rel (%p194) target = $region12
      $region11: #{tpu_custom_call.1} parent=5 // pred_region
        %s198 = ssub.s32 %s17, 1
        // Predicated region
        $region13: #{tpu_custom_call.1} parent=11 // pred_check
          %p199 = pneg %p116
        $region14: #{tpu_custom_call.1} parent=11 // pred_check_branch
          %201 = sbr.rel (%p199) target = $region16
        $region15: #{tpu_custom_call.1} parent=11 // pred_region
          %203 = vsyncadd [#allocation3], 0
          %s204 = sshll.u32 %s3, 4
          %s205 = int_to_ptr.hbm [resolvable:$true] %s204
          %s206 = sshll.u32 [#allocation2], 4
          %s207 = int_to_ptr.vmem [resolvable:$true] %s206
          %212 = dma.hbm_to_vmem [thread:$0]  %s205, 6144, %s207, [#allocation3], 128, 128, 8
        $region16: #{tpu_custom_call.1} parent=11 // pred_fallthru
          _
        // Predicated region
        $region17: #{tpu_custom_call.1} parent=11 // pred_check
          %p213 = pneg %p137
        $region18: #{tpu_custom_call.1} parent=11 // pred_check_branch
          %215 = sbr.rel (%p213) target = $region20
        $region19: #{tpu_custom_call.1} parent=11 // pred_region
          %217 = vsyncadd [#allocation6], 0
          %s218 = sshll.u32 %s4, 4
          %s219 = int_to_ptr.hbm [resolvable:$true] %s218
          %s220 = sshll.u32 [#allocation5], 4
          %s221 = int_to_ptr.vmem [resolvable:$true] %s220
          %226 = dma.hbm_to_vmem [thread:$0]  %s219, 256, %s221, [#allocation6], 128, 128, 8
        $region20: #{tpu_custom_call.1} parent=11 // pred_fallthru
          _
        // Predicated region
        $region21: #{tpu_custom_call.1} parent=11 // pred_check
          %p227 = pneg %p158
        $region22: #{tpu_custom_call.1} parent=11 // pred_check_branch
          %229 = sbr.rel (%p227) target = $region24
        $region23: #{tpu_custom_call.1} parent=11 // pred_region
          _
        $region24: #{tpu_custom_call.1} parent=11 // pred_fallthru
          _
      $region12: #{tpu_custom_call.1} parent=5 // pred_fallthru
        _
      %p230 = scmp.lt.s32.totalorder %s17, 2
      // Predicated region
      $region25: #{tpu_custom_call.1} parent=5 // pred_check
        %p231 = pneg %p230
      $region26: #{tpu_custom_call.1} parent=5 // pred_check_branch
        %233 = sbr.rel (%p231) target = $region28
      $region27: #{tpu_custom_call.1} parent=5 // pred_region
        // Predicated region
        $region29: #{tpu_custom_call.1} parent=27 // pred_check
          %p234 = pneg %p37
        $region30: #{tpu_custom_call.1} parent=27 // pred_check_branch
          %236 = sbr.rel (%p234) target = $region32
        $region31: #{tpu_custom_call.1} parent=27 // pred_region
          %s237 = smul.u32 2, %s17
          %p238 = scmp.lt.s32.totalorder %s237, 3
          %s239 = scalar_select %p238, %s237, 3
          %s240 = smul.addr %s239, 2
          %s241 = smul.addr %s240, 8
          %s242 = scalar_lea.vmem %s0, %s241
          %s243 = smul.u32 2, %s17
        $region32: #{tpu_custom_call.1} parent=27 // pred_fallthru
          _
        // Predicated region
        $region33: #{tpu_custom_call.1} parent=27 // pred_check
          %p244 = pneg %p63
        $region34: #{tpu_custom_call.1} parent=27 // pred_check_branch
          %246 = sbr.rel (%p244) target = $region36
        $region35: #{tpu_custom_call.1} parent=27 // pred_region
          %s247 = smul.u32 2, %s17
          %p248 = scmp.lt.s32.totalorder %s247, 3
          %s249 = scalar_select %p248, %s247, 3
          %s250 = smul.addr %s249, 2
          %s251 = smul.addr %s250, 8
          %s252 = scalar_lea.vmem %s1, %s251
          %s253 = smul.u32 2, %s17
        $region36: #{tpu_custom_call.1} parent=27 // pred_fallthru
          _
        // Predicated region
        $region37: #{tpu_custom_call.1} parent=27 // pred_check
          %p254 = pneg %p89
        $region38: #{tpu_custom_call.1} parent=27 // pred_check_branch
          %256 = sbr.rel (%p254) target = $region40
        $region39: #{tpu_custom_call.1} parent=27 // pred_region
          %s257 = smul.u32 2, %s17
          %p258 = scmp.lt.s32.totalorder %s257, 3
          %s259 = scalar_select %p258, %s257, 3
          %s260 = smul.addr %s259, 8
          %s261 = scalar_lea.vmem %s2, %s260
          %s262 = smul.u32 2, %s17
        $region40: #{tpu_custom_call.1} parent=27 // pred_fallthru
          _
      $region28: #{tpu_custom_call.1} parent=5 // pred_fallthru
        _
      %p263 = scmp.le.s32.totalorder 1, %s17
      %p264 = scmp.lt.s32.totalorder %s17, 3
      %p265 = pnand %p263, %p264
      %p266 = pneg %p265
      // Predicated region
      $region41: #{tpu_custom_call.1} parent=5 // pred_check
        _
      $region42: #{tpu_custom_call.1} parent=5 // pred_check_branch
        %268 = sbr.rel (%p265) target = $region44
      $region43: #{tpu_custom_call.1} parent=5 // pred_region
        %s269 = ssub.s32 %s17, 1
        // Predicated region
        $region45: #{tpu_custom_call.1} parent=43 // pred_check
          %p270 = pneg %p116
        $region46: #{tpu_custom_call.1} parent=43 // pred_check_branch
          %272 = sbr.rel (%p270) target = $region48
        $region47: #{tpu_custom_call.1} parent=43 // pred_region
          %274 = dma.done [#allocation3], 6144
        $region48: #{tpu_custom_call.1} parent=43 // pred_fallthru
          _
        // Predicated region
        $region49: #{tpu_custom_call.1} parent=43 // pred_check
          %p275 = pneg %p137
        $region50: #{tpu_custom_call.1} parent=43 // pred_check_branch
          %277 = sbr.rel (%p275) target = $region52
        $region51: #{tpu_custom_call.1} parent=43 // pred_region
          %279 = dma.done [#allocation6], 256
        $region52: #{tpu_custom_call.1} parent=43 // pred_fallthru
          _
        %s280 = smul.u32 2, %s22
        %p281 = scmp.lt.s32.totalorder %s280, 3
        %s282 = scalar_select %p281, %s280, 3
        %s283 = smul.addr %s282, 2
        %s284 = smul.addr %s283, 8
        %s285 = scalar_lea.vmem %s0, %s284
        %p286 = pneg %p43
        %p287 = pneg %p40
        %s288 = smul.u32 2, %s22
        %p289 = scmp.lt.s32.totalorder %s288, 3
        %s290 = scalar_select %p289, %s288, 3
        %s291 = smul.addr %s290, 2
        %s292 = smul.addr %s291, 8
        %s293 = scalar_lea.vmem %s1, %s292
        %p294 = pneg %p69
        %p295 = pneg %p66
        %s296 = smul.u32 2, %s22
        %p297 = scmp.lt.s32.totalorder %s296, 3
        %s298 = scalar_select %p297, %s296, 3
        %s299 = smul.addr %s298, 8
        %s300 = scalar_lea.vmem %s2, %s299
        %p301 = pneg %p95
        %p302 = pneg %p92
        %p303 = pneg %p116
        %p304 = pneg %p113
        %p305 = pneg %p137
        %p306 = pneg %p134
        %p307 = pneg %p158
        %p308 = pneg %p155
        %p309 = pneg %p184
        %p310 = pneg %p181
        %s311 = sand.u32 %s171, 1
        %s312 = scalar_lea.sflag [#allocation4], %s311
        %s313 = sand.u32 %s171, 1
        %s314 = smul.addr %s313, 16
        %s315 = scalar_lea.vmem [#allocation7], %s314
        %s316 = smul.u32 2, %s22
        %p317 = scmp.lt.s32.totalorder %s316, 3
        %s318 = scalar_select %p317, %s316, 3
        %s319 = smul.addr %s318, 2
        %s320 = smul.addr %s319, 8
        %s321 = scalar_lea.vmem %s0, %s320
        %s322 = smul.u32 2, %s22
        %s323 = smul.u32 2, %s22
        %p324 = scmp.lt.s32.totalorder %s323, 3
        %s325 = scalar_select %p324, %s323, 3
        %s326 = smul.addr %s325, 2
        %s327 = smul.addr %s326, 8
        %s328 = scalar_lea.vmem %s1, %s327
        %s329 = smul.u32 2, %s22
        %s330 = smul.u32 2, %s22
        %p331 = scmp.lt.s32.totalorder %s330, 3
        %s332 = scalar_select %p331, %s330, 3
        %s333 = smul.addr %s332, 8
        %s334 = scalar_lea.vmem %s2, %s333
        %s335 = smul.u32 2, %s22
        %s336 = smul.u32 2, %s22
        %v337 = vlaneseq
        %v338 = vand.u32 %v337, 127
        %vm339 = vcmp.lt.s32.totalorder %v338, 16
        %v340 = vsub.s32 %v338, 16
        %v341 = vsel %vm339, %v338, %v340
        %v342 = vcvt.s32.f32 %v341
        %v343 = vmul.f32 %v342, -0.5756463
        %v344 = vmul.f32 %v343, 1.442695
        %v345 = vpow.pop %v344
        %v346 = vmul.f32 %v345, 100.0
        %v347 = vsel %vm339, 0.0, 1.5707964
        %v348 = vld [vmem:[%s321] sm:$0xff]
        %v349 = vld [vmem:[%s321 + $0x8] sm:$0xff]
        %v350 = vld [vmem:[%s321 + $0x10] sm:$0xff]
        %v351 = vld [vmem:[%s321 + $0x18] sm:$0xff]
        %353 = vset.pattern.permute.xlu0 0
        %354 = vperm.xlu0 %353, %v348
        %v355 = vpop.permute.xlu0 %354
        %358 = vset.pattern.permute.xlu0 0
        %359 = vperm.xlu0 %358, %v349
        %v360 = vpop.permute.xlu0 %359
        %363 = vset.pattern.permute.xlu0 0
        %364 = vperm.xlu0 %363, %v350
        %v365 = vpop.permute.xlu0 %364
        %368 = vset.pattern.permute.xlu0 0
        %369 = vperm.xlu0 %368, %v351
        %v370 = vpop.permute.xlu0 %369
        %v372 = vmul.f32 %v355, %v346
        %v373 = vmul.f32 %v360, %v346
        %v374 = vmul.f32 %v365, %v346
        %v375 = vmul.f32 %v370, %v346
        %v376 = vadd.f32 %v372, %v347
        %v377 = vadd.f32 %v373, %v347
        %v378 = vadd.f32 %v374, %v347
        %v379 = vadd.f32 %v375, %v347
        %v380 = vand.u32 2147483647, %v376
        %vm381 = vcmp.le.f32.partialorder %v380, 0.7853982
        %vm382 = vcmp.lt.s32.totalorder %v376, 0
        %v383 = vand.u32 %v376, 2139095040
        %v384 = vshrl.u32 %v383, 23
        %v385 = vsub.s32 %v384, 127
        %v386 = vand.u32 2147483647, %v376
        %v387 = vand.u32 %v386, 8388607
        %v388 = vor.u32 %v387, 8388608
        %v389 = vsub.s32 0, %v388
        %v390 = vadd.s32 %v385, 1
        %vm391 = vcmp.gt.s32.totalorder %v390, 0
        %v392 = vsel %vm391, %v390, 0
        %v393 = vshrl.u32 %v392, 5
        %v394 = vand.u32 %v392, 31
        %v395 = vsub.s32 32, %v394
        %v396 = vshrl.u32 683565275, %v395
        %v397 = vshll.u32 683565275, %v394
        %v398 = vshrl.u32 2475754826, %v395
        %v399 = vor.u32 %v397, %v398
        %v400 = vshll.u32 2475754826, %v394
        %v401 = vshrl.u32 2131351028, %v395
        %v402 = vor.u32 %v400, %v401
        %v403 = vshll.u32 2131351028, %v394
        %v404 = vshrl.u32 2102212464, %v395
        %v405 = vor.u32 %v403, %v404
        %v406 = vshll.u32 2102212464, %v394
        %v407 = vshrl.u32 920167782, %v395
        %v408 = vor.u32 %v406, %v407
        %v409 = vshll.u32 920167782, %v394
        %v410 = vshrl.u32 1326507024, %v395
        %v411 = vor.u32 %v409, %v410
        %vm412 = vcmp.lt.s32.totalorder %v393, 1
        %vm413 = vcmp.lt.s32.totalorder %v393, 2
        %vm414 = vcmp.lt.s32.totalorder %v393, 3
        %vm415 = vcmp.lt.s32.totalorder %v393, 4
        %v416 = vsel %vm412, %v396, %v399
        %v417 = vsel %vm415, %v405, 2102212464
        %v418 = vsel %vm414, %v402, %v417
        %v419 = vsel %vm413, %v416, %v418
        %v420 = vsel %vm412, %v399, %v402
        %v421 = vsel %vm415, %v408, 920167782
        %v422 = vsel %vm414, %v405, %v421
        %v423 = vsel %vm413, %v420, %v422
        %v424 = vsel %vm412, %v402, %v405
        %v425 = vsel %vm415, %v411, 1326507024
        %v426 = vsel %vm414, %v408, %v425
        %v427 = vsel %vm413, %v424, %v426
        %v428 = vshll.u32 %v388, 8
        %v429 = vand.u32 %v428, 65535
        %v430 = vshrl.u32 %v428, 16
        %v431 = vand.u32 %v427, 65535
        %v432 = vshrl.u32 %v427, 16
        %v433 = vmul.u32 %v429, %v431
        %v434 = vmul.u32 %v429, %v432
        %v435 = vmul.u32 %v430, %v431
        %v436 = vmul.u32 %v430, %v432
        %v437 = vshll.u32 %v434, 16
        %v438 = vshrl.u32 %v434, 16
        %v439 = vshll.u32 %v435, 16
        %v440 = vshrl.u32 %v435, 16
        %vm441 = vc.u32 %v433, %v437
        %v442 = vsel %vm441, 1, 0
        %v443 = vadd.s32 %v433, %v437
        %v444 = vadd.s32 %v436, %v442
        %vm445 = vc.u32 %v443, %v439
        %v446 = vsel %vm445, 1, 0
        %v447 = vadd.s32 %v443, %v439
        %v448 = vadd.s32 %v444, %v446
        %v449 = vadd.s32 %v448, %v438
        %v450 = vadd.s32 %v449, %v440
        %v451 = vand.u32 %v428, 65535
        %v452 = vshrl.u32 %v428, 16
        %v453 = vand.u32 %v423, 65535
        %v454 = vshrl.u32 %v423, 16
        %v455 = vmul.u32 %v451, %v453
        %v456 = vmul.u32 %v451, %v454
        %v457 = vmul.u32 %v452, %v453
        %v458 = vmul.u32 %v452, %v454
        %v459 = vshll.u32 %v456, 16
        %v460 = vshrl.u32 %v456, 16
        %v461 = vshll.u32 %v457, 16
        %v462 = vshrl.u32 %v457, 16
        %vm463 = vc.u32 %v455, %v459
        %v464 = vsel %vm463, 1, 0
        %v465 = vadd.s32 %v455, %v459
        %v466 = vadd.s32 %v458, %v464
        %vm467 = vc.u32 %v465, %v461
        %v468 = vsel %vm467, 1, 0
        %v469 = vadd.s32 %v465, %v461
        %v470 = vadd.s32 %v466, %v468
        %v471 = vadd.s32 %v470, %v460
        %v472 = vadd.s32 %v471, %v462
        %v473 = vmul.u32 %v428, %v419
        %v474 = vadd.s32 %v450, %v469
        %vm475 = vc.u32 %v450, %v469
        %v476 = vadd.s32 %v472, 1
        %v477 = vsel %vm475, %v476, %v472
        %v478 = vadd.s32 %v473, %v477
        %v479 = vadd.s32 %v478, 536870912
        %v480 = vshrl.u32 %v479, 30
        %v481 = vshll.u32 %v480, 30
        %v482 = vsub.s32 %v478, %v481
        %vm483 = vcmp.lt.s32.totalorder %v482, 0
        %v484 = vsub.s32 0, %v482
        %v485 = vsel %vm483, %v484, %v482
        %v486 = vclz %v485
        %v487 = vsub.s32 %v486, 2
        %vm488 = vcmp.gt.s32.totalorder 0, %v487
        %v489 = vsel %vm488, 0, %v487
        %v490 = vsub.s32 32, %v489
        %v491 = vshll.u32 %v482, %v489
        %v492 = vshrl.u32 %v474, %v490
        %v493 = vor.u32 %v491, %v492
        %v494 = vsub.s32 4294967266, %v489
        %v495 = vadd.s32 %v494, 127
        %v496 = vshll.u32 %v495, 23
        %v497 = vor.u32 4788187, %v496
        %v498 = vand.u32 2147483647, %v497
        %v500 = vcvt.s32.f32 %v493
        %v501 = vmul.f32 %v500, %v498
        %v502 = vxor.u32 %v501, 2147483648
        %v503 = vsel %vm382, %v502, %v501
        %v504 = vsub.s32 4, %v480
        %v505 = vsel %vm382, %v504, %v480
        %v506 = vsel %vm381, %v376, %v503
        %v507 = vsel %vm381, 0, %v505
        %v508 = vmul.f32 %v506, %v506
        %v509 = vmul.f32 %v508, -0.001358992
        %v510 = vadd.f32 %v509, 0.041655596
        %v511 = vmul.f32 %v508, %v510
        %v512 = vadd.f32 %v511, -0.4999988
        %v513 = vmul.f32 %v508, %v512
        %v514 = vadd.f32 1.0, %v513
        %v515 = vmul.f32 %v506, %v506
        %v516 = vmul.f32 %v515, -0.00019511016
        %v517 = vadd.f32 %v516, 0.008332121
        %v518 = vmul.f32 %v515, %v517
        %v519 = vadd.f32 %v518, -0.16666654
        %v520 = vmul.f32 %v515, %v519
        %v521 = vadd.f32 %v520, 1.0
        %v522 = vmul.f32 %v521, %v506
        %vm523 = vweird.f32 %v376
        %v524 = vadd.s32 %v507, 3
        %v525 = vand.u32 %v524, 3
        %vm526 = vcmp.lt.s32.totalorder %v525, 2
        %vm527 = vcmp.eq.s32.totalorder %v525, 0
        %v528 = vxor.u32 %v522, 2147483648
        %v529 = vsel %vm527, %v514, %v528
        %vm530 = vcmp.eq.s32.totalorder %v525, 2
        %v531 = vxor.u32 %v514, 2147483648
        %v532 = vsel %vm530, %v531, %v522
        %v533 = vsel %vm526, %v529, %v532
        %v534 = vsel %vm523, nan, %v533
        %v535 = vand.u32 2147483647, %v377
        %vm536 = vcmp.le.f32.partialorder %v535, 0.7853982
        %vm537 = vcmp.lt.s32.totalorder %v377, 0
        %v538 = vand.u32 %v377, 2139095040
        %v539 = vshrl.u32 %v538, 23
        %v540 = vsub.s32 %v539, 127
        %v541 = vand.u32 2147483647, %v377
        %v542 = vand.u32 %v541, 8388607
        %v543 = vor.u32 %v542, 8388608
        %v544 = vsub.s32 0, %v543
        %v545 = vadd.s32 %v540, 1
        %vm546 = vcmp.gt.s32.totalorder %v545, 0
        %v547 = vsel %vm546, %v545, 0
        %v548 = vshrl.u32 %v547, 5
        %v549 = vand.u32 %v547, 31
        %v550 = vsub.s32 32, %v549
        %v551 = vshrl.u32 683565275, %v550
        %v552 = vshll.u32 683565275, %v549
        %v553 = vshrl.u32 2475754826, %v550
        %v554 = vor.u32 %v552, %v553
        %v555 = vshll.u32 2475754826, %v549
        %v556 = vshrl.u32 2131351028, %v550
        %v557 = vor.u32 %v555, %v556
        %v558 = vshll.u32 2131351028, %v549
        %v559 = vshrl.u32 2102212464, %v550
        %v560 = vor.u32 %v558, %v559
        %v561 = vshll.u32 2102212464, %v549
        %v562 = vshrl.u32 920167782, %v550
        %v563 = vor.u32 %v561, %v562
        %v564 = vshll.u32 920167782, %v549
        %v565 = vshrl.u32 1326507024, %v550
        %v566 = vor.u32 %v564, %v565
        %vm567 = vcmp.lt.s32.totalorder %v548, 1
        %vm568 = vcmp.lt.s32.totalorder %v548, 2
        %vm569 = vcmp.lt.s32.totalorder %v548, 3
        %vm570 = vcmp.lt.s32.totalorder %v548, 4
        %v571 = vsel %vm567, %v551, %v554
        %v572 = vsel %vm570, %v560, 2102212464
        %v573 = vsel %vm569, %v557, %v572
        %v574 = vsel %vm568, %v571, %v573
        %v575 = vsel %vm567, %v554, %v557
        %v576 = vsel %vm570, %v563, 920167782
        %v577 = vsel %vm569, %v560, %v576
        %v578 = vsel %vm568, %v575, %v577
        %v579 = vsel %vm567, %v557, %v560
        %v580 = vsel %vm570, %v566, 1326507024
        %v581 = vsel %vm569, %v563, %v580
        %v582 = vsel %vm568, %v579, %v581
        %v583 = vshll.u32 %v543, 8
        %v584 = vand.u32 %v583, 65535
        %v585 = vshrl.u32 %v583, 16
        %v586 = vand.u32 %v582, 65535
        %v587 = vshrl.u32 %v582, 16
        %v588 = vmul.u32 %v584, %v586
        %v589 = vmul.u32 %v584, %v587
        %v590 = vmul.u32 %v585, %v586
        %v591 = vmul.u32 %v585, %v587
        %v592 = vshll.u32 %v589, 16
        %v593 = vshrl.u32 %v589, 16
        %v594 = vshll.u32 %v590, 16
        %v595 = vshrl.u32 %v590, 16
        %vm596 = vc.u32 %v588, %v592
        %v597 = vsel %vm596, 1, 0
        %v598 = vadd.s32 %v588, %v592
        %v599 = vadd.s32 %v591, %v597
        %vm600 = vc.u32 %v598, %v594
        %v601 = vsel %vm600, 1, 0
        %v602 = vadd.s32 %v598, %v594
        %v603 = vadd.s32 %v599, %v601
        %v604 = vadd.s32 %v603, %v593
        %v605 = vadd.s32 %v604, %v595
        %v606 = vand.u32 %v583, 65535
        %v607 = vshrl.u32 %v583, 16
        %v608 = vand.u32 %v578, 65535
        %v609 = vshrl.u32 %v578, 16
        %v610 = vmul.u32 %v606, %v608
        %v611 = vmul.u32 %v606, %v609
        %v612 = vmul.u32 %v607, %v608
        %v613 = vmul.u32 %v607, %v609
        %v614 = vshll.u32 %v611, 16
        %v615 = vshrl.u32 %v611, 16
        %v616 = vshll.u32 %v612, 16
        %v617 = vshrl.u32 %v612, 16
        %vm618 = vc.u32 %v610, %v614
        %v619 = vsel %vm618, 1, 0
        %v620 = vadd.s32 %v610, %v614
        %v621 = vadd.s32 %v613, %v619
        %vm622 = vc.u32 %v620, %v616
        %v623 = vsel %vm622, 1, 0
        %v624 = vadd.s32 %v620, %v616
        %v625 = vadd.s32 %v621, %v623
        %v626 = vadd.s32 %v625, %v615
        %v627 = vadd.s32 %v626, %v617
        %v628 = vmul.u32 %v583, %v574
        %v629 = vadd.s32 %v605, %v624
        %vm630 = vc.u32 %v605, %v624
        %v631 = vadd.s32 %v627, 1
        %v632 = vsel %vm630, %v631, %v627
        %v633 = vadd.s32 %v628, %v632
        %v634 = vadd.s32 %v633, 536870912
        %v635 = vshrl.u32 %v634, 30
        %v636 = vshll.u32 %v635, 30
        %v637 = vsub.s32 %v633, %v636
        %vm638 = vcmp.lt.s32.totalorder %v637, 0
        %v639 = vsub.s32 0, %v637
        %v640 = vsel %vm638, %v639, %v637
        %v641 = vclz %v640
        %v642 = vsub.s32 %v641, 2
        %vm643 = vcmp.gt.s32.totalorder 0, %v642
        %v644 = vsel %vm643, 0, %v642
        %v645 = vsub.s32 32, %v644
        %v646 = vshll.u32 %v637, %v644
        %v647 = vshrl.u32 %v629, %v645
        %v648 = vor.u32 %v646, %v647
        %v649 = vsub.s32 4294967266, %v644
        %v650 = vadd.s32 %v649, 127
        %v651 = vshll.u32 %v650, 23
        %v652 = vor.u32 4788187, %v651
        %v653 = vand.u32 2147483647, %v652
        %v655 = vcvt.s32.f32 %v648
        %v656 = vmul.f32 %v655, %v653
        %v657 = vxor.u32 %v656, 2147483648
        %v658 = vsel %vm537, %v657, %v656
        %v659 = vsub.s32 4, %v635
        %v660 = vsel %vm537, %v659, %v635
        %v661 = vsel %vm536, %v377, %v658
        %v662 = vsel %vm536, 0, %v660
        %v663 = vmul.f32 %v661, %v661
        %v664 = vmul.f32 %v663, -0.001358992
        %v665 = vadd.f32 %v664, 0.041655596
        %v666 = vmul.f32 %v663, %v665
        %v667 = vadd.f32 %v666, -0.4999988
        %v668 = vmul.f32 %v663, %v667
        %v669 = vadd.f32 1.0, %v668
        %v670 = vmul.f32 %v661, %v661
        %v671 = vmul.f32 %v670, -0.00019511016
        %v672 = vadd.f32 %v671, 0.008332121
        %v673 = vmul.f32 %v670, %v672
        %v674 = vadd.f32 %v673, -0.16666654
        %v675 = vmul.f32 %v670, %v674
        %v676 = vadd.f32 %v675, 1.0
        %v677 = vmul.f32 %v676, %v661
        %vm678 = vweird.f32 %v377
        %v679 = vadd.s32 %v662, 3
        %v680 = vand.u32 %v679, 3
        %vm681 = vcmp.lt.s32.totalorder %v680, 2
        %vm682 = vcmp.eq.s32.totalorder %v680, 0
        %v683 = vxor.u32 %v677, 2147483648
        %v684 = vsel %vm682, %v669, %v683
        %vm685 = vcmp.eq.s32.totalorder %v680, 2
        %v686 = vxor.u32 %v669, 2147483648
        %v687 = vsel %vm685, %v686, %v677
        %v688 = vsel %vm681, %v684, %v687
        %v689 = vsel %vm678, nan, %v688
        %v690 = vand.u32 2147483647, %v378
        %vm691 = vcmp.le.f32.partialorder %v690, 0.7853982
        %vm692 = vcmp.lt.s32.totalorder %v378, 0
        %v693 = vand.u32 %v378, 2139095040
        %v694 = vshrl.u32 %v693, 23
        %v695 = vsub.s32 %v694, 127
        %v696 = vand.u32 2147483647, %v378
        %v697 = vand.u32 %v696, 8388607
        %v698 = vor.u32 %v697, 8388608
        %v699 = vsub.s32 0, %v698
        %v700 = vadd.s32 %v695, 1
        %vm701 = vcmp.gt.s32.totalorder %v700, 0
        %v702 = vsel %vm701, %v700, 0
        %v703 = vshrl.u32 %v702, 5
        %v704 = vand.u32 %v702, 31
        %v705 = vsub.s32 32, %v704
        %v706 = vshrl.u32 683565275, %v705
        %v707 = vshll.u32 683565275, %v704
        %v708 = vshrl.u32 2475754826, %v705
        %v709 = vor.u32 %v707, %v708
        %v710 = vshll.u32 2475754826, %v704
        %v711 = vshrl.u32 2131351028, %v705
        %v712 = vor.u32 %v710, %v711
        %v713 = vshll.u32 2131351028, %v704
        %v714 = vshrl.u32 2102212464, %v705
        %v715 = vor.u32 %v713, %v714
        %v716 = vshll.u32 2102212464, %v704
        %v717 = vshrl.u32 920167782, %v705
        %v718 = vor.u32 %v716, %v717
        %v719 = vshll.u32 920167782, %v704
        %v720 = vshrl.u32 1326507024, %v705
        %v721 = vor.u32 %v719, %v720
        %vm722 = vcmp.lt.s32.totalorder %v703, 1
        %vm723 = vcmp.lt.s32.totalorder %v703, 2
        %vm724 = vcmp.lt.s32.totalorder %v703, 3
        %vm725 = vcmp.lt.s32.totalorder %v703, 4
        %v726 = vsel %vm722, %v706, %v709
        %v727 = vsel %vm725, %v715, 2102212464
        %v728 = vsel %vm724, %v712, %v727
        %v729 = vsel %vm723, %v726, %v728
        %v730 = vsel %vm722, %v709, %v712
        %v731 = vsel %vm725, %v718, 920167782
        %v732 = vsel %vm724, %v715, %v731
        %v733 = vsel %vm723, %v730, %v732
        %v734 = vsel %vm722, %v712, %v715
        %v735 = vsel %vm725, %v721, 1326507024
        %v736 = vsel %vm724, %v718, %v735
        %v737 = vsel %vm723, %v734, %v736
        %v738 = vshll.u32 %v698, 8
        %v739 = vand.u32 %v738, 65535
        %v740 = vshrl.u32 %v738, 16
        %v741 = vand.u32 %v737, 65535
        %v742 = vshrl.u32 %v737, 16
        %v743 = vmul.u32 %v739, %v741
        %v744 = vmul.u32 %v739, %v742
        %v745 = vmul.u32 %v740, %v741
        %v746 = vmul.u32 %v740, %v742
        %v747 = vshll.u32 %v744, 16
        %v748 = vshrl.u32 %v744, 16
        %v749 = vshll.u32 %v745, 16
        %v750 = vshrl.u32 %v745, 16
        %vm751 = vc.u32 %v743, %v747
        %v752 = vsel %vm751, 1, 0
        %v753 = vadd.s32 %v743, %v747
        %v754 = vadd.s32 %v746, %v752
        %vm755 = vc.u32 %v753, %v749
        %v756 = vsel %vm755, 1, 0
        %v757 = vadd.s32 %v753, %v749
        %v758 = vadd.s32 %v754, %v756
        %v759 = vadd.s32 %v758, %v748
        %v760 = vadd.s32 %v759, %v750
        %v761 = vand.u32 %v738, 65535
        %v762 = vshrl.u32 %v738, 16
        %v763 = vand.u32 %v733, 65535
        %v764 = vshrl.u32 %v733, 16
        %v765 = vmul.u32 %v761, %v763
        %v766 = vmul.u32 %v761, %v764
        %v767 = vmul.u32 %v762, %v763
        %v768 = vmul.u32 %v762, %v764
        %v769 = vshll.u32 %v766, 16
        %v770 = vshrl.u32 %v766, 16
        %v771 = vshll.u32 %v767, 16
        %v772 = vshrl.u32 %v767, 16
        %vm773 = vc.u32 %v765, %v769
        %v774 = vsel %vm773, 1, 0
        %v775 = vadd.s32 %v765, %v769
        %v776 = vadd.s32 %v768, %v774
        %vm777 = vc.u32 %v775, %v771
        %v778 = vsel %vm777, 1, 0
        %v779 = vadd.s32 %v775, %v771
        %v780 = vadd.s32 %v776, %v778
        %v781 = vadd.s32 %v780, %v770
        %v782 = vadd.s32 %v781, %v772
        %v783 = vmul.u32 %v738, %v729
        %v784 = vadd.s32 %v760, %v779
        %vm785 = vc.u32 %v760, %v779
        %v786 = vadd.s32 %v782, 1
        %v787 = vsel %vm785, %v786, %v782
        %v788 = vadd.s32 %v783, %v787
        %v789 = vadd.s32 %v788, 536870912
        %v790 = vshrl.u32 %v789, 30
        %v791 = vshll.u32 %v790, 30
        %v792 = vsub.s32 %v788, %v791
        %vm793 = vcmp.lt.s32.totalorder %v792, 0
        %v794 = vsub.s32 0, %v792
        %v795 = vsel %vm793, %v794, %v792
        %v796 = vclz %v795
        %v797 = vsub.s32 %v796, 2
        %vm798 = vcmp.gt.s32.totalorder 0, %v797
        %v799 = vsel %vm798, 0, %v797
        %v800 = vsub.s32 32, %v799
        %v801 = vshll.u32 %v792, %v799
        %v802 = vshrl.u32 %v784, %v800
        %v803 = vor.u32 %v801, %v802
        %v804 = vsub.s32 4294967266, %v799
        %v805 = vadd.s32 %v804, 127
        %v806 = vshll.u32 %v805, 23
        %v807 = vor.u32 4788187, %v806
        %v808 = vand.u32 2147483647, %v807
        %v810 = vcvt.s32.f32 %v803
        %v811 = vmul.f32 %v810, %v808
        %v812 = vxor.u32 %v811, 2147483648
        %v813 = vsel %vm692, %v812, %v811
        %v814 = vsub.s32 4, %v790
        %v815 = vsel %vm692, %v814, %v790
        %v816 = vsel %vm691, %v378, %v813
        %v817 = vsel %vm691, 0, %v815
        %v818 = vmul.f32 %v816, %v816
        %v819 = vmul.f32 %v818, -0.001358992
        %v820 = vadd.f32 %v819, 0.041655596
        %v821 = vmul.f32 %v818, %v820
        %v822 = vadd.f32 %v821, -0.4999988
        %v823 = vmul.f32 %v818, %v822
        %v824 = vadd.f32 1.0, %v823
        %v825 = vmul.f32 %v816, %v816
        %v826 = vmul.f32 %v825, -0.00019511016
        %v827 = vadd.f32 %v826, 0.008332121
        %v828 = vmul.f32 %v825, %v827
        %v829 = vadd.f32 %v828, -0.16666654
        %v830 = vmul.f32 %v825, %v829
        %v831 = vadd.f32 %v830, 1.0
        %v832 = vmul.f32 %v831, %v816
        %vm833 = vweird.f32 %v378
        %v834 = vadd.s32 %v817, 3
        %v835 = vand.u32 %v834, 3
        %vm836 = vcmp.lt.s32.totalorder %v835, 2
        %vm837 = vcmp.eq.s32.totalorder %v835, 0
        %v838 = vxor.u32 %v832, 2147483648
        %v839 = vsel %vm837, %v824, %v838
        %vm840 = vcmp.eq.s32.totalorder %v835, 2
        %v841 = vxor.u32 %v824, 2147483648
        %v842 = vsel %vm840, %v841, %v832
        %v843 = vsel %vm836, %v839, %v842
        %v844 = vsel %vm833, nan, %v843
        %v845 = vand.u32 2147483647, %v379
        %vm846 = vcmp.le.f32.partialorder %v845, 0.7853982
        %vm847 = vcmp.lt.s32.totalorder %v379, 0
        %v848 = vand.u32 %v379, 2139095040
        %v849 = vshrl.u32 %v848, 23
        %v850 = vsub.s32 %v849, 127
        %v851 = vand.u32 2147483647, %v379
        %v852 = vand.u32 %v851, 8388607
        %v853 = vor.u32 %v852, 8388608
        %v854 = vsub.s32 0, %v853
        %v855 = vadd.s32 %v850, 1
        %vm856 = vcmp.gt.s32.totalorder %v855, 0
        %v857 = vsel %vm856, %v855, 0
        %v858 = vshrl.u32 %v857, 5
        %v859 = vand.u32 %v857, 31
        %v860 = vsub.s32 32, %v859
        %v861 = vshrl.u32 683565275, %v860
        %v862 = vshll.u32 683565275, %v859
        %v863 = vshrl.u32 2475754826, %v860
        %v864 = vor.u32 %v862, %v863
        %v865 = vshll.u32 2475754826, %v859
        %v866 = vshrl.u32 2131351028, %v860
        %v867 = vor.u32 %v865, %v866
        %v868 = vshll.u32 2131351028, %v859
        %v869 = vshrl.u32 2102212464, %v860
        %v870 = vor.u32 %v868, %v869
        %v871 = vshll.u32 2102212464, %v859
        %v872 = vshrl.u32 920167782, %v860
        %v873 = vor.u32 %v871, %v872
        %v874 = vshll.u32 920167782, %v859
        %v875 = vshrl.u32 1326507024, %v860
        %v876 = vor.u32 %v874, %v875
        %vm877 = vcmp.lt.s32.totalorder %v858, 1
        %vm878 = vcmp.lt.s32.totalorder %v858, 2
        %vm879 = vcmp.lt.s32.totalorder %v858, 3
        %vm880 = vcmp.lt.s32.totalorder %v858, 4
        %v881 = vsel %vm877, %v861, %v864
        %v882 = vsel %vm880, %v870, 2102212464
        %v883 = vsel %vm879, %v867, %v882
        %v884 = vsel %vm878, %v881, %v883
        %v885 = vsel %vm877, %v864, %v867
        %v886 = vsel %vm880, %v873, 920167782
        %v887 = vsel %vm879, %v870, %v886
        %v888 = vsel %vm878, %v885, %v887
        %v889 = vsel %vm877, %v867, %v870
        %v890 = vsel %vm880, %v876, 1326507024
        %v891 = vsel %vm879, %v873, %v890
        %v892 = vsel %vm878, %v889, %v891
        %v893 = vshll.u32 %v853, 8
        %v894 = vand.u32 %v893, 65535
        %v895 = vshrl.u32 %v893, 16
        %v896 = vand.u32 %v892, 65535
        %v897 = vshrl.u32 %v892, 16
        %v898 = vmul.u32 %v894, %v896
        %v899 = vmul.u32 %v894, %v897
        %v900 = vmul.u32 %v895, %v896
        %v901 = vmul.u32 %v895, %v897
        %v902 = vshll.u32 %v899, 16
        %v903 = vshrl.u32 %v899, 16
        %v904 = vshll.u32 %v900, 16
        %v905 = vshrl.u32 %v900, 16
        %vm906 = vc.u32 %v898, %v902
        %v907 = vsel %vm906, 1, 0
        %v908 = vadd.s32 %v898, %v902
        %v909 = vadd.s32 %v901, %v907
        %vm910 = vc.u32 %v908, %v904
        %v911 = vsel %vm910, 1, 0
        %v912 = vadd.s32 %v908, %v904
        %v913 = vadd.s32 %v909, %v911
        %v914 = vadd.s32 %v913, %v903
        %v915 = vadd.s32 %v914, %v905
        %v916 = vand.u32 %v893, 65535
        %v917 = vshrl.u32 %v893, 16
        %v918 = vand.u32 %v888, 65535
        %v919 = vshrl.u32 %v888, 16
        %v920 = vmul.u32 %v916, %v918
        %v921 = vmul.u32 %v916, %v919
        %v922 = vmul.u32 %v917, %v918
        %v923 = vmul.u32 %v917, %v919
        %v924 = vshll.u32 %v921, 16
        %v925 = vshrl.u32 %v921, 16
        %v926 = vshll.u32 %v922, 16
        %v927 = vshrl.u32 %v922, 16
        %vm928 = vc.u32 %v920, %v924
        %v929 = vsel %vm928, 1, 0
        %v930 = vadd.s32 %v920, %v924
        %v931 = vadd.s32 %v923, %v929
        %vm932 = vc.u32 %v930, %v926
        %v933 = vsel %vm932, 1, 0
        %v934 = vadd.s32 %v930, %v926
        %v935 = vadd.s32 %v931, %v933
        %v936 = vadd.s32 %v935, %v925
        %v937 = vadd.s32 %v936, %v927
        %v938 = vmul.u32 %v893, %v884
        %v939 = vadd.s32 %v915, %v934
        %vm940 = vc.u32 %v915, %v934
        %v941 = vadd.s32 %v937, 1
        %v942 = vsel %vm940, %v941, %v937
        %v943 = vadd.s32 %v938, %v942
        %v944 = vadd.s32 %v943, 536870912
        %v945 = vshrl.u32 %v944, 30
        %v946 = vshll.u32 %v945, 30
        %v947 = vsub.s32 %v943, %v946
        %vm948 = vcmp.lt.s32.totalorder %v947, 0
        %v949 = vsub.s32 0, %v947
        %v950 = vsel %vm948, %v949, %v947
        %v951 = vclz %v950
        %v952 = vsub.s32 %v951, 2
        %vm953 = vcmp.gt.s32.totalorder 0, %v952
        %v954 = vsel %vm953, 0, %v952
        %v955 = vsub.s32 32, %v954
        %v956 = vshll.u32 %v947, %v954
        %v957 = vshrl.u32 %v939, %v955
        %v958 = vor.u32 %v956, %v957
        %v959 = vsub.s32 4294967266, %v954
        %v960 = vadd.s32 %v959, 127
        %v961 = vshll.u32 %v960, 23
        %v962 = vor.u32 4788187, %v961
        %v963 = vand.u32 2147483647, %v962
        %v965 = vcvt.s32.f32 %v958
        %v966 = vmul.f32 %v965, %v963
        %v967 = vxor.u32 %v966, 2147483648
        %v968 = vsel %vm847, %v967, %v966
        %v969 = vsub.s32 4, %v945
        %v970 = vsel %vm847, %v969, %v945
        %v971 = vsel %vm846, %v379, %v968
        %v972 = vsel %vm846, 0, %v970
        %v973 = vmul.f32 %v971, %v971
        %v974 = vmul.f32 %v973, -0.001358992
        %v975 = vadd.f32 %v974, 0.041655596
        %v976 = vmul.f32 %v973, %v975
        %v977 = vadd.f32 %v976, -0.4999988
        %v978 = vmul.f32 %v973, %v977
        %v979 = vadd.f32 1.0, %v978
        %v980 = vmul.f32 %v971, %v971
        %v981 = vmul.f32 %v980, -0.00019511016
        %v982 = vadd.f32 %v981, 0.008332121
        %v983 = vmul.f32 %v980, %v982
        %v984 = vadd.f32 %v983, -0.16666654
        %v985 = vmul.f32 %v980, %v984
        %v986 = vadd.f32 %v985, 1.0
        %v987 = vmul.f32 %v986, %v971
        %vm988 = vweird.f32 %v379
        %v989 = vadd.s32 %v972, 3
        %v990 = vand.u32 %v989, 3
        %vm991 = vcmp.lt.s32.totalorder %v990, 2
        %vm992 = vcmp.eq.s32.totalorder %v990, 0
        %v993 = vxor.u32 %v987, 2147483648
        %v994 = vsel %vm992, %v979, %v993
        %vm995 = vcmp.eq.s32.totalorder %v990, 2
        %v996 = vxor.u32 %v979, 2147483648
        %v997 = vsel %vm995, %v996, %v987
        %v998 = vsel %vm991, %v994, %v997
        %v999 = vsel %vm988, nan, %v998
        %v1000 = vadd.f32 %v534, 0.0
        %v1001 = vadd.f32 %v689, 0.0
        %v1002 = vadd.f32 %v844, 0.0
        %v1003 = vadd.f32 %v999, 0.0
        %1004 = vset.pattern.permute.xlu0 1
        %1005 = vperm.xlu0 %1004, %v348
        %v1006 = vpop.permute.xlu0 %1005
        %1008 = vset.pattern.permute.xlu0 1
        %1009 = vperm.xlu0 %1008, %v349
        %v1010 = vpop.permute.xlu0 %1009
        %1012 = vset.pattern.permute.xlu0 1
        %1013 = vperm.xlu0 %1012, %v350
        %v1014 = vpop.permute.xlu0 %1013
        %1016 = vset.pattern.permute.xlu0 1
        %1017 = vperm.xlu0 %1016, %v351
        %v1018 = vpop.permute.xlu0 %1017
        %v1020 = vmul.f32 %v1006, %v346
        %v1021 = vmul.f32 %v1010, %v346
        %v1022 = vmul.f32 %v1014, %v346
        %v1023 = vmul.f32 %v1018, %v346
        %v1024 = vadd.f32 %v1020, %v347
        %v1025 = vadd.f32 %v1021, %v347
        %v1026 = vadd.f32 %v1022, %v347
        %v1027 = vadd.f32 %v1023, %v347
        %v1028 = vand.u32 2147483647, %v1024
        %vm1029 = vcmp.le.f32.partialorder %v1028, 0.7853982
        %vm1030 = vcmp.lt.s32.totalorder %v1024, 0
        %v1031 = vand.u32 %v1024, 2139095040
        %v1032 = vshrl.u32 %v1031, 23
        %v1033 = vsub.s32 %v1032, 127
        %v1034 = vand.u32 2147483647, %v1024
        %v1035 = vand.u32 %v1034, 8388607
        %v1036 = vor.u32 %v1035, 8388608
        %v1037 = vsub.s32 0, %v1036
        %v1038 = vadd.s32 %v1033, 1
        %vm1039 = vcmp.gt.s32.totalorder %v1038, 0
        %v1040 = vsel %vm1039, %v1038, 0
        %v1041 = vshrl.u32 %v1040, 5
        %v1042 = vand.u32 %v1040, 31
        %v1043 = vsub.s32 32, %v1042
        %v1044 = vshrl.u32 683565275, %v1043
        %v1045 = vshll.u32 683565275, %v1042
        %v1046 = vshrl.u32 2475754826, %v1043
        %v1047 = vor.u32 %v1045, %v1046
        %v1048 = vshll.u32 2475754826, %v1042
        %v1049 = vshrl.u32 2131351028, %v1043
        %v1050 = vor.u32 %v1048, %v1049
        %v1051 = vshll.u32 2131351028, %v1042
        %v1052 = vshrl.u32 2102212464, %v1043
        %v1053 = vor.u32 %v1051, %v1052
        %v1054 = vshll.u32 2102212464, %v1042
        %v1055 = vshrl.u32 920167782, %v1043
        %v1056 = vor.u32 %v1054, %v1055
        %v1057 = vshll.u32 920167782, %v1042
        %v1058 = vshrl.u32 1326507024, %v1043
        %v1059 = vor.u32 %v1057, %v1058
        %vm1060 = vcmp.lt.s32.totalorder %v1041, 1
        %vm1061 = vcmp.lt.s32.totalorder %v1041, 2
        %vm1062 = vcmp.lt.s32.totalorder %v1041, 3
        %vm1063 = vcmp.lt.s32.totalorder %v1041, 4
        %v1064 = vsel %vm1060, %v1044, %v1047
        %v1065 = vsel %vm1063, %v1053, 2102212464
        %v1066 = vsel %vm1062, %v1050, %v1065
        %v1067 = vsel %vm1061, %v1064, %v1066
        %v1068 = vsel %vm1060, %v1047, %v1050
        %v1069 = vsel %vm1063, %v1056, 920167782
        %v1070 = vsel %vm1062, %v1053, %v1069
        %v1071 = vsel %vm1061, %v1068, %v1070
        %v1072 = vsel %vm1060, %v1050, %v1053
        %v1073 = vsel %vm1063, %v1059, 1326507024
        %v1074 = vsel %vm1062, %v1056, %v1073
        %v1075 = vsel %vm1061, %v1072, %v1074
        %v1076 = vshll.u32 %v1036, 8
        %v1077 = vand.u32 %v1076, 65535
        %v1078 = vshrl.u32 %v1076, 16
        %v1079 = vand.u32 %v1075, 65535
        %v1080 = vshrl.u32 %v1075, 16
        %v1081 = vmul.u32 %v1077, %v1079
        %v1082 = vmul.u32 %v1077, %v1080
        %v1083 = vmul.u32 %v1078, %v1079
        %v1084 = vmul.u32 %v1078, %v1080
        %v1085 = vshll.u32 %v1082, 16
        %v1086 = vshrl.u32 %v1082, 16
        %v1087 = vshll.u32 %v1083, 16
        %v1088 = vshrl.u32 %v1083, 16
        %vm1089 = vc.u32 %v1081, %v1085
        %v1090 = vsel %vm1089, 1, 0
        %v1091 = vadd.s32 %v1081, %v1085
        %v1092 = vadd.s32 %v1084, %v1090
        %vm1093 = vc.u32 %v1091, %v1087
        %v1094 = vsel %vm1093, 1, 0
        %v1095 = vadd.s32 %v1091, %v1087
        %v1096 = vadd.s32 %v1092, %v1094
        %v1097 = vadd.s32 %v1096, %v1086
        %v1098 = vadd.s32 %v1097, %v1088
        %v1099 = vand.u32 %v1076, 65535
        %v1100 = vshrl.u32 %v1076, 16
        %v1101 = vand.u32 %v1071, 65535
        %v1102 = vshrl.u32 %v1071, 16
        %v1103 = vmul.u32 %v1099, %v1101
        %v1104 = vmul.u32 %v1099, %v1102
        %v1105 = vmul.u32 %v1100, %v1101
        %v1106 = vmul.u32 %v1100, %v1102
        %v1107 = vshll.u32 %v1104, 16
        %v1108 = vshrl.u32 %v1104, 16
        %v1109 = vshll.u32 %v1105, 16
        %v1110 = vshrl.u32 %v1105, 16
        %vm1111 = vc.u32 %v1103, %v1107
        %v1112 = vsel %vm1111, 1, 0
        %v1113 = vadd.s32 %v1103, %v1107
        %v1114 = vadd.s32 %v1106, %v1112
        %vm1115 = vc.u32 %v1113, %v1109
        %v1116 = vsel %vm1115, 1, 0
        %v1117 = vadd.s32 %v1113, %v1109
        %v1118 = vadd.s32 %v1114, %v1116
        %v1119 = vadd.s32 %v1118, %v1108
        %v1120 = vadd.s32 %v1119, %v1110
        %v1121 = vmul.u32 %v1076, %v1067
        %v1122 = vadd.s32 %v1098, %v1117
        %vm1123 = vc.u32 %v1098, %v1117
        %v1124 = vadd.s32 %v1120, 1
        %v1125 = vsel %vm1123, %v1124, %v1120
        %v1126 = vadd.s32 %v1121, %v1125
        %v1127 = vadd.s32 %v1126, 536870912
        %v1128 = vshrl.u32 %v1127, 30
        %v1129 = vshll.u32 %v1128, 30
        %v1130 = vsub.s32 %v1126, %v1129
        %vm1131 = vcmp.lt.s32.totalorder %v1130, 0
        %v1132 = vsub.s32 0, %v1130
        %v1133 = vsel %vm1131, %v1132, %v1130
        %v1134 = vclz %v1133
        %v1135 = vsub.s32 %v1134, 2
        %vm1136 = vcmp.gt.s32.totalorder 0, %v1135
        %v1137 = vsel %vm1136, 0, %v1135
        %v1138 = vsub.s32 32, %v1137
        %v1139 = vshll.u32 %v1130, %v1137
        %v1140 = vshrl.u32 %v1122, %v1138
        %v1141 = vor.u32 %v1139, %v1140
        %v1142 = vsub.s32 4294967266, %v1137
        %v1143 = vadd.s32 %v1142, 127
        %v1144 = vshll.u32 %v1143, 23
        %v1145 = vor.u32 4788187, %v1144
        %v1146 = vand.u32 2147483647, %v1145
        %v1148 = vcvt.s32.f32 %v1141
        %v1149 = vmul.f32 %v1148, %v1146
        %v1150 = vxor.u32 %v1149, 2147483648
        %v1151 = vsel %vm1030, %v1150, %v1149
        %v1152 = vsub.s32 4, %v1128
        %v1153 = vsel %vm1030, %v1152, %v1128
        %v1154 = vsel %vm1029, %v1024, %v1151
        %v1155 = vsel %vm1029, 0, %v1153
        %v1156 = vmul.f32 %v1154, %v1154
        %v1157 = vmul.f32 %v1156, -0.001358992
        %v1158 = vadd.f32 %v1157, 0.041655596
        %v1159 = vmul.f32 %v1156, %v1158
        %v1160 = vadd.f32 %v1159, -0.4999988
        %v1161 = vmul.f32 %v1156, %v1160
        %v1162 = vadd.f32 1.0, %v1161
        %v1163 = vmul.f32 %v1154, %v1154
        %v1164 = vmul.f32 %v1163, -0.00019511016
        %v1165 = vadd.f32 %v1164, 0.008332121
        %v1166 = vmul.f32 %v1163, %v1165
        %v1167 = vadd.f32 %v1166, -0.16666654
        %v1168 = vmul.f32 %v1163, %v1167
        %v1169 = vadd.f32 %v1168, 1.0
        %v1170 = vmul.f32 %v1169, %v1154
        %vm1171 = vweird.f32 %v1024
        %v1172 = vadd.s32 %v1155, 3
        %v1173 = vand.u32 %v1172, 3
        %vm1174 = vcmp.lt.s32.totalorder %v1173, 2
        %vm1175 = vcmp.eq.s32.totalorder %v1173, 0
        %v1176 = vxor.u32 %v1170, 2147483648
        %v1177 = vsel %vm1175, %v1162, %v1176
        %vm1178 = vcmp.eq.s32.totalorder %v1173, 2
        %v1179 = vxor.u32 %v1162, 2147483648
        %v1180 = vsel %vm1178, %v1179, %v1170
        %v1181 = vsel %vm1174, %v1177, %v1180
        %v1182 = vsel %vm1171, nan, %v1181
        %v1183 = vand.u32 2147483647, %v1025
        %vm1184 = vcmp.le.f32.partialorder %v1183, 0.7853982
        %vm1185 = vcmp.lt.s32.totalorder %v1025, 0
        %v1186 = vand.u32 %v1025, 2139095040
        %v1187 = vshrl.u32 %v1186, 23
        %v1188 = vsub.s32 %v1187, 127
        %v1189 = vand.u32 2147483647, %v1025
        %v1190 = vand.u32 %v1189, 8388607
        %v1191 = vor.u32 %v1190, 8388608
        %v1192 = vsub.s32 0, %v1191
        %v1193 = vadd.s32 %v1188, 1
        %vm1194 = vcmp.gt.s32.totalorder %v1193, 0
        %v1195 = vsel %vm1194, %v1193, 0
        %v1196 = vshrl.u32 %v1195, 5
        %v1197 = vand.u32 %v1195, 31
        %v1198 = vsub.s32 32, %v1197
        %v1199 = vshrl.u32 683565275, %v1198
        %v1200 = vshll.u32 683565275, %v1197
        %v1201 = vshrl.u32 2475754826, %v1198
        %v1202 = vor.u32 %v1200, %v1201
        %v1203 = vshll.u32 2475754826, %v1197
        %v1204 = vshrl.u32 2131351028, %v1198
        %v1205 = vor.u32 %v1203, %v1204
        %v1206 = vshll.u32 2131351028, %v1197
        %v1207 = vshrl.u32 2102212464, %v1198
        %v1208 = vor.u32 %v1206, %v1207
        %v1209 = vshll.u32 2102212464, %v1197
        %v1210 = vshrl.u32 920167782, %v1198
        %v1211 = vor.u32 %v1209, %v1210
        %v1212 = vshll.u32 920167782, %v1197
        %v1213 = vshrl.u32 1326507024, %v1198
        %v1214 = vor.u32 %v1212, %v1213
        %vm1215 = vcmp.lt.s32.totalorder %v1196, 1
        %vm1216 = vcmp.lt.s32.totalorder %v1196, 2
        %vm1217 = vcmp.lt.s32.totalorder %v1196, 3
        %vm1218 = vcmp.lt.s32.totalorder %v1196, 4
        %v1219 = vsel %vm1215, %v1199, %v1202
        %v1220 = vsel %vm1218, %v1208, 2102212464
        %v1221 = vsel %vm1217, %v1205, %v1220
        %v1222 = vsel %vm1216, %v1219, %v1221
        %v1223 = vsel %vm1215, %v1202, %v1205
        %v1224 = vsel %vm1218, %v1211, 920167782
        %v1225 = vsel %vm1217, %v1208, %v1224
        %v1226 = vsel %vm1216, %v1223, %v1225
        %v1227 = vsel %vm1215, %v1205, %v1208
        %v1228 = vsel %vm1218, %v1214, 1326507024
        %v1229 = vsel %vm1217, %v1211, %v1228
        %v1230 = vsel %vm1216, %v1227, %v1229
        %v1231 = vshll.u32 %v1191, 8
        %v1232 = vand.u32 %v1231, 65535
        %v1233 = vshrl.u32 %v1231, 16
        %v1234 = vand.u32 %v1230, 65535
        %v1235 = vshrl.u32 %v1230, 16
        %v1236 = vmul.u32 %v1232, %v1234
        %v1237 = vmul.u32 %v1232, %v1235
        %v1238 = vmul.u32 %v1233, %v1234
        %v1239 = vmul.u32 %v1233, %v1235
        %v1240 = vshll.u32 %v1237, 16
        %v1241 = vshrl.u32 %v1237, 16
        %v1242 = vshll.u32 %v1238, 16
        %v1243 = vshrl.u32 %v1238, 16
        %vm1244 = vc.u32 %v1236, %v1240
        %v1245 = vsel %vm1244, 1, 0
        %v1246 = vadd.s32 %v1236, %v1240
        %v1247 = vadd.s32 %v1239, %v1245
        %vm1248 = vc.u32 %v1246, %v1242
        %v1249 = vsel %vm1248, 1, 0
        %v1250 = vadd.s32 %v1246, %v1242
        %v1251 = vadd.s32 %v1247, %v1249
        %v1252 = vadd.s32 %v1251, %v1241
        %v1253 = vadd.s32 %v1252, %v1243
        %v1254 = vand.u32 %v1231, 65535
        %v1255 = vshrl.u32 %v1231, 16
        %v1256 = vand.u32 %v1226, 65535
        %v1257 = vshrl.u32 %v1226, 16
        %v1258 = vmul.u32 %v1254, %v1256
        %v1259 = vmul.u32 %v1254, %v1257
        %v1260 = vmul.u32 %v1255, %v1256
        %v1261 = vmul.u32 %v1255, %v1257
        %v1262 = vshll.u32 %v1259, 16
        %v1263 = vshrl.u32 %v1259, 16
        %v1264 = vshll.u32 %v1260, 16
        %v1265 = vshrl.u32 %v1260, 16
        %vm1266 = vc.u32 %v1258, %v1262
        %v1267 = vsel %vm1266, 1, 0
        %v1268 = vadd.s32 %v1258, %v1262
        %v1269 = vadd.s32 %v1261, %v1267
        %vm1270 = vc.u32 %v1268, %v1264
        %v1271 = vsel %vm1270, 1, 0
        %v1272 = vadd.s32 %v1268, %v1264
        %v1273 = vadd.s32 %v1269, %v1271
        %v1274 = vadd.s32 %v1273, %v1263
        %v1275 = vadd.s32 %v1274, %v1265
        %v1276 = vmul.u32 %v1231, %v1222
        %v1277 = vadd.s32 %v1253, %v1272
        %vm1278 = vc.u32 %v1253, %v1272
        %v1279 = vadd.s32 %v1275, 1
        %v1280 = vsel %vm1278, %v1279, %v1275
        %v1281 = vadd.s32 %v1276, %v1280
        %v1282 = vadd.s32 %v1281, 536870912
        %v1283 = vshrl.u32 %v1282, 30
        %v1284 = vshll.u32 %v1283, 30
        %v1285 = vsub.s32 %v1281, %v1284
        %vm1286 = vcmp.lt.s32.totalorder %v1285, 0
        %v1287 = vsub.s32 0, %v1285
        %v1288 = vsel %vm1286, %v1287, %v1285
        %v1289 = vclz %v1288
        %v1290 = vsub.s32 %v1289, 2
        %vm1291 = vcmp.gt.s32.totalorder 0, %v1290
        %v1292 = vsel %vm1291, 0, %v1290
        %v1293 = vsub.s32 32, %v1292
        %v1294 = vshll.u32 %v1285, %v1292
        %v1295 = vshrl.u32 %v1277, %v1293
        %v1296 = vor.u32 %v1294, %v1295
        %v1297 = vsub.s32 4294967266, %v1292
        %v1298 = vadd.s32 %v1297, 127
        %v1299 = vshll.u32 %v1298, 23
        %v1300 = vor.u32 4788187, %v1299
        %v1301 = vand.u32 2147483647, %v1300
        %v1303 = vcvt.s32.f32 %v1296
        %v1304 = vmul.f32 %v1303, %v1301
        %v1305 = vxor.u32 %v1304, 2147483648
        %v1306 = vsel %vm1185, %v1305, %v1304
        %v1307 = vsub.s32 4, %v1283
        %v1308 = vsel %vm1185, %v1307, %v1283
        %v1309 = vsel %vm1184, %v1025, %v1306
        %v1310 = vsel %vm1184, 0, %v1308
        %v1311 = vmul.f32 %v1309, %v1309
        %v1312 = vmul.f32 %v1311, -0.001358992
        %v1313 = vadd.f32 %v1312, 0.041655596
        %v1314 = vmul.f32 %v1311, %v1313
        %v1315 = vadd.f32 %v1314, -0.4999988
        %v1316 = vmul.f32 %v1311, %v1315
        %v1317 = vadd.f32 1.0, %v1316
        %v1318 = vmul.f32 %v1309, %v1309
        %v1319 = vmul.f32 %v1318, -0.00019511016
        %v1320 = vadd.f32 %v1319, 0.008332121
        %v1321 = vmul.f32 %v1318, %v1320
        %v1322 = vadd.f32 %v1321, -0.16666654
        %v1323 = vmul.f32 %v1318, %v1322
        %v1324 = vadd.f32 %v1323, 1.0
        %v1325 = vmul.f32 %v1324, %v1309
        %vm1326 = vweird.f32 %v1025
        %v1327 = vadd.s32 %v1310, 3
        %v1328 = vand.u32 %v1327, 3
        %vm1329 = vcmp.lt.s32.totalorder %v1328, 2
        %vm1330 = vcmp.eq.s32.totalorder %v1328, 0
        %v1331 = vxor.u32 %v1325, 2147483648
        %v1332 = vsel %vm1330, %v1317, %v1331
        %vm1333 = vcmp.eq.s32.totalorder %v1328, 2
        %v1334 = vxor.u32 %v1317, 2147483648
        %v1335 = vsel %vm1333, %v1334, %v1325
        %v1336 = vsel %vm1329, %v1332, %v1335
        %v1337 = vsel %vm1326, nan, %v1336
        %v1338 = vand.u32 2147483647, %v1026
        %vm1339 = vcmp.le.f32.partialorder %v1338, 0.7853982
        %vm1340 = vcmp.lt.s32.totalorder %v1026, 0
        %v1341 = vand.u32 %v1026, 2139095040
        %v1342 = vshrl.u32 %v1341, 23
        %v1343 = vsub.s32 %v1342, 127
        %v1344 = vand.u32 2147483647, %v1026
        %v1345 = vand.u32 %v1344, 8388607
        %v1346 = vor.u32 %v1345, 8388608
        %v1347 = vsub.s32 0, %v1346
        %v1348 = vadd.s32 %v1343, 1
        %vm1349 = vcmp.gt.s32.totalorder %v1348, 0
        %v1350 = vsel %vm1349, %v1348, 0
        %v1351 = vshrl.u32 %v1350, 5
        %v1352 = vand.u32 %v1350, 31
        %v1353 = vsub.s32 32, %v1352
        %v1354 = vshrl.u32 683565275, %v1353
        %v1355 = vshll.u32 683565275, %v1352
        %v1356 = vshrl.u32 2475754826, %v1353
        %v1357 = vor.u32 %v1355, %v1356
        %v1358 = vshll.u32 2475754826, %v1352
        %v1359 = vshrl.u32 2131351028, %v1353
        %v1360 = vor.u32 %v1358, %v1359
        %v1361 = vshll.u32 2131351028, %v1352
        %v1362 = vshrl.u32 2102212464, %v1353
        %v1363 = vor.u32 %v1361, %v1362
        %v1364 = vshll.u32 2102212464, %v1352
        %v1365 = vshrl.u32 920167782, %v1353
        %v1366 = vor.u32 %v1364, %v1365
        %v1367 = vshll.u32 920167782, %v1352
        %v1368 = vshrl.u32 1326507024, %v1353
        %v1369 = vor.u32 %v1367, %v1368
        %vm1370 = vcmp.lt.s32.totalorder %v1351, 1
        %vm1371 = vcmp.lt.s32.totalorder %v1351, 2
        %vm1372 = vcmp.lt.s32.totalorder %v1351, 3
        %vm1373 = vcmp.lt.s32.totalorder %v1351, 4
        %v1374 = vsel %vm1370, %v1354, %v1357
        %v1375 = vsel %vm1373, %v1363, 2102212464
        %v1376 = vsel %vm1372, %v1360, %v1375
        %v1377 = vsel %vm1371, %v1374, %v1376
        %v1378 = vsel %vm1370, %v1357, %v1360
        %v1379 = vsel %vm1373, %v1366, 920167782
        %v1380 = vsel %vm1372, %v1363, %v1379
        %v1381 = vsel %vm1371, %v1378, %v1380
        %v1382 = vsel %vm1370, %v1360, %v1363
        %v1383 = vsel %vm1373, %v1369, 1326507024
        %v1384 = vsel %vm1372, %v1366, %v1383
        %v1385 = vsel %vm1371, %v1382, %v1384
        %v1386 = vshll.u32 %v1346, 8
        %v1387 = vand.u32 %v1386, 65535
        %v1388 = vshrl.u32 %v1386, 16
        %v1389 = vand.u32 %v1385, 65535
        %v1390 = vshrl.u32 %v1385, 16
        %v1391 = vmul.u32 %v1387, %v1389
        %v1392 = vmul.u32 %v1387, %v1390
        %v1393 = vmul.u32 %v1388, %v1389
        %v1394 = vmul.u32 %v1388, %v1390
        %v1395 = vshll.u32 %v1392, 16
        %v1396 = vshrl.u32 %v1392, 16
        %v1397 = vshll.u32 %v1393, 16
        %v1398 = vshrl.u32 %v1393, 16
        %vm1399 = vc.u32 %v1391, %v1395
        %v1400 = vsel %vm1399, 1, 0
        %v1401 = vadd.s32 %v1391, %v1395
        %v1402 = vadd.s32 %v1394, %v1400
        %vm1403 = vc.u32 %v1401, %v1397
        %v1404 = vsel %vm1403, 1, 0
        %v1405 = vadd.s32 %v1401, %v1397
        %v1406 = vadd.s32 %v1402, %v1404
        %v1407 = vadd.s32 %v1406, %v1396
        %v1408 = vadd.s32 %v1407, %v1398
        %v1409 = vand.u32 %v1386, 65535
        %v1410 = vshrl.u32 %v1386, 16
        %v1411 = vand.u32 %v1381, 65535
        %v1412 = vshrl.u32 %v1381, 16
        %v1413 = vmul.u32 %v1409, %v1411
        %v1414 = vmul.u32 %v1409, %v1412
        %v1415 = vmul.u32 %v1410, %v1411
        %v1416 = vmul.u32 %v1410, %v1412
        %v1417 = vshll.u32 %v1414, 16
        %v1418 = vshrl.u32 %v1414, 16
        %v1419 = vshll.u32 %v1415, 16
        %v1420 = vshrl.u32 %v1415, 16
        %vm1421 = vc.u32 %v1413, %v1417
        %v1422 = vsel %vm1421, 1, 0
        %v1423 = vadd.s32 %v1413, %v1417
        %v1424 = vadd.s32 %v1416, %v1422
        %vm1425 = vc.u32 %v1423, %v1419
        %v1426 = vsel %vm1425, 1, 0
        %v1427 = vadd.s32 %v1423, %v1419
        %v1428 = vadd.s32 %v1424, %v1426
        %v1429 = vadd.s32 %v1428, %v1418
        %v1430 = vadd.s32 %v1429, %v1420
        %v1431 = vmul.u32 %v1386, %v1377
        %v1432 = vadd.s32 %v1408, %v1427
        %vm1433 = vc.u32 %v1408, %v1427
        %v1434 = vadd.s32 %v1430, 1
        %v1435 = vsel %vm1433, %v1434, %v1430
        %v1436 = vadd.s32 %v1431, %v1435
        %v1437 = vadd.s32 %v1436, 536870912
        %v1438 = vshrl.u32 %v1437, 30
        %v1439 = vshll.u32 %v1438, 30
        %v1440 = vsub.s32 %v1436, %v1439
        %vm1441 = vcmp.lt.s32.totalorder %v1440, 0
        %v1442 = vsub.s32 0, %v1440
        %v1443 = vsel %vm1441, %v1442, %v1440
        %v1444 = vclz %v1443
        %v1445 = vsub.s32 %v1444, 2
        %vm1446 = vcmp.gt.s32.totalorder 0, %v1445
        %v1447 = vsel %vm1446, 0, %v1445
        %v1448 = vsub.s32 32, %v1447
        %v1449 = vshll.u32 %v1440, %v1447
        %v1450 = vshrl.u32 %v1432, %v1448
        %v1451 = vor.u32 %v1449, %v1450
        %v1452 = vsub.s32 4294967266, %v1447
        %v1453 = vadd.s32 %v1452, 127
        %v1454 = vshll.u32 %v1453, 23
        %v1455 = vor.u32 4788187, %v1454
        %v1456 = vand.u32 2147483647, %v1455
        %v1458 = vcvt.s32.f32 %v1451
        %v1459 = vmul.f32 %v1458, %v1456
        %v1460 = vxor.u32 %v1459, 2147483648
        %v1461 = vsel %vm1340, %v1460, %v1459
        %v1462 = vsub.s32 4, %v1438
        %v1463 = vsel %vm1340, %v1462, %v1438
        %v1464 = vsel %vm1339, %v1026, %v1461
        %v1465 = vsel %vm1339, 0, %v1463
        %v1466 = vmul.f32 %v1464, %v1464
        %v1467 = vmul.f32 %v1466, -0.001358992
        %v1468 = vadd.f32 %v1467, 0.041655596
        %v1469 = vmul.f32 %v1466, %v1468
        %v1470 = vadd.f32 %v1469, -0.4999988
        %v1471 = vmul.f32 %v1466, %v1470
        %v1472 = vadd.f32 1.0, %v1471
        %v1473 = vmul.f32 %v1464, %v1464
        %v1474 = vmul.f32 %v1473, -0.00019511016
        %v1475 = vadd.f32 %v1474, 0.008332121
        %v1476 = vmul.f32 %v1473, %v1475
        %v1477 = vadd.f32 %v1476, -0.16666654
        %v1478 = vmul.f32 %v1473, %v1477
        %v1479 = vadd.f32 %v1478, 1.0
        %v1480 = vmul.f32 %v1479, %v1464
        %vm1481 = vweird.f32 %v1026
        %v1482 = vadd.s32 %v1465, 3
        %v1483 = vand.u32 %v1482, 3
        %vm1484 = vcmp.lt.s32.totalorder %v1483, 2
        %vm1485 = vcmp.eq.s32.totalorder %v1483, 0
        %v1486 = vxor.u32 %v1480, 2147483648
        %v1487 = vsel %vm1485, %v1472, %v1486
        %vm1488 = vcmp.eq.s32.totalorder %v1483, 2
        %v1489 = vxor.u32 %v1472, 2147483648
        %v1490 = vsel %vm1488, %v1489, %v1480
        %v1491 = vsel %vm1484, %v1487, %v1490
        %v1492 = vsel %vm1481, nan, %v1491
        %v1493 = vand.u32 2147483647, %v1027
        %vm1494 = vcmp.le.f32.partialorder %v1493, 0.7853982
        %vm1495 = vcmp.lt.s32.totalorder %v1027, 0
        %v1496 = vand.u32 %v1027, 2139095040
        %v1497 = vshrl.u32 %v1496, 23
        %v1498 = vsub.s32 %v1497, 127
        %v1499 = vand.u32 2147483647, %v1027
        %v1500 = vand.u32 %v1499, 8388607
        %v1501 = vor.u32 %v1500, 8388608
        %v1502 = vsub.s32 0, %v1501
        %v1503 = vadd.s32 %v1498, 1
        %vm1504 = vcmp.gt.s32.totalorder %v1503, 0
        %v1505 = vsel %vm1504, %v1503, 0
        %v1506 = vshrl.u32 %v1505, 5
        %v1507 = vand.u32 %v1505, 31
        %v1508 = vsub.s32 32, %v1507
        %v1509 = vshrl.u32 683565275, %v1508
        %v1510 = vshll.u32 683565275, %v1507
        %v1511 = vshrl.u32 2475754826, %v1508
        %v1512 = vor.u32 %v1510, %v1511
        %v1513 = vshll.u32 2475754826, %v1507
        %v1514 = vshrl.u32 2131351028, %v1508
        %v1515 = vor.u32 %v1513, %v1514
        %v1516 = vshll.u32 2131351028, %v1507
        %v1517 = vshrl.u32 2102212464, %v1508
        %v1518 = vor.u32 %v1516, %v1517
        %v1519 = vshll.u32 2102212464, %v1507
        %v1520 = vshrl.u32 920167782, %v1508
        %v1521 = vor.u32 %v1519, %v1520
        %v1522 = vshll.u32 920167782, %v1507
        %v1523 = vshrl.u32 1326507024, %v1508
        %v1524 = vor.u32 %v1522, %v1523
        %vm1525 = vcmp.lt.s32.totalorder %v1506, 1
        %vm1526 = vcmp.lt.s32.totalorder %v1506, 2
        %vm1527 = vcmp.lt.s32.totalorder %v1506, 3
        %vm1528 = vcmp.lt.s32.totalorder %v1506, 4
        %v1529 = vsel %vm1525, %v1509, %v1512
        %v1530 = vsel %vm1528, %v1518, 2102212464
        %v1531 = vsel %vm1527, %v1515, %v1530
        %v1532 = vsel %vm1526, %v1529, %v1531
        %v1533 = vsel %vm1525, %v1512, %v1515
        %v1534 = vsel %vm1528, %v1521, 920167782
        %v1535 = vsel %vm1527, %v1518, %v1534
        %v1536 = vsel %vm1526, %v1533, %v1535
        %v1537 = vsel %vm1525, %v1515, %v1518
        %v1538 = vsel %vm1528, %v1524, 1326507024
        %v1539 = vsel %vm1527, %v1521, %v1538
        %v1540 = vsel %vm1526, %v1537, %v1539
        %v1541 = vshll.u32 %v1501, 8
        %v1542 = vand.u32 %v1541, 65535
        %v1543 = vshrl.u32 %v1541, 16
        %v1544 = vand.u32 %v1540, 65535
        %v1545 = vshrl.u32 %v1540, 16
        %v1546 = vmul.u32 %v1542, %v1544
        %v1547 = vmul.u32 %v1542, %v1545
        %v1548 = vmul.u32 %v1543, %v1544
        %v1549 = vmul.u32 %v1543, %v1545
        %v1550 = vshll.u32 %v1547, 16
        %v1551 = vshrl.u32 %v1547, 16
        %v1552 = vshll.u32 %v1548, 16
        %v1553 = vshrl.u32 %v1548, 16
        %vm1554 = vc.u32 %v1546, %v1550
        %v1555 = vsel %vm1554, 1, 0
        %v1556 = vadd.s32 %v1546, %v1550
        %v1557 = vadd.s32 %v1549, %v1555
        %vm1558 = vc.u32 %v1556, %v1552
        %v1559 = vsel %vm1558, 1, 0
        %v1560 = vadd.s32 %v1556, %v1552
        %v1561 = vadd.s32 %v1557, %v1559
        %v1562 = vadd.s32 %v1561, %v1551
        %v1563 = vadd.s32 %v1562, %v1553
        %v1564 = vand.u32 %v1541, 65535
        %v1565 = vshrl.u32 %v1541, 16
        %v1566 = vand.u32 %v1536, 65535
        %v1567 = vshrl.u32 %v1536, 16
        %v1568 = vmul.u32 %v1564, %v1566
        %v1569 = vmul.u32 %v1564, %v1567
        %v1570 = vmul.u32 %v1565, %v1566
        %v1571 = vmul.u32 %v1565, %v1567
        %v1572 = vshll.u32 %v1569, 16
        %v1573 = vshrl.u32 %v1569, 16
        %v1574 = vshll.u32 %v1570, 16
        %v1575 = vshrl.u32 %v1570, 16
        %vm1576 = vc.u32 %v1568, %v1572
        %v1577 = vsel %vm1576, 1, 0
        %v1578 = vadd.s32 %v1568, %v1572
        %v1579 = vadd.s32 %v1571, %v1577
        %vm1580 = vc.u32 %v1578, %v1574
        %v1581 = vsel %vm1580, 1, 0
        %v1582 = vadd.s32 %v1578, %v1574
        %v1583 = vadd.s32 %v1579, %v1581
        %v1584 = vadd.s32 %v1583, %v1573
        %v1585 = vadd.s32 %v1584, %v1575
        %v1586 = vmul.u32 %v1541, %v1532
        %v1587 = vadd.s32 %v1563, %v1582
        %vm1588 = vc.u32 %v1563, %v1582
        %v1589 = vadd.s32 %v1585, 1
        %v1590 = vsel %vm1588, %v1589, %v1585
        %v1591 = vadd.s32 %v1586, %v1590
        %v1592 = vadd.s32 %v1591, 536870912
        %v1593 = vshrl.u32 %v1592, 30
        %v1594 = vshll.u32 %v1593, 30
        %v1595 = vsub.s32 %v1591, %v1594
        %vm1596 = vcmp.lt.s32.totalorder %v1595, 0
        %v1597 = vsub.s32 0, %v1595
        %v1598 = vsel %vm1596, %v1597, %v1595
        %v1599 = vclz %v1598
        %v1600 = vsub.s32 %v1599, 2
        %vm1601 = vcmp.gt.s32.totalorder 0, %v1600
        %v1602 = vsel %vm1601, 0, %v1600
        %v1603 = vsub.s32 32, %v1602
        %v1604 = vshll.u32 %v1595, %v1602
        %v1605 = vshrl.u32 %v1587, %v1603
        %v1606 = vor.u32 %v1604, %v1605
        %v1607 = vsub.s32 4294967266, %v1602
        %v1608 = vadd.s32 %v1607, 127
        %v1609 = vshll.u32 %v1608, 23
        %v1610 = vor.u32 4788187, %v1609
        %v1611 = vand.u32 2147483647, %v1610
        %v1613 = vcvt.s32.f32 %v1606
        %v1614 = vmul.f32 %v1613, %v1611
        %v1615 = vxor.u32 %v1614, 2147483648
        %v1616 = vsel %vm1495, %v1615, %v1614
        %v1617 = vsub.s32 4, %v1593
        %v1618 = vsel %vm1495, %v1617, %v1593
        %v1619 = vsel %vm1494, %v1027, %v1616
        %v1620 = vsel %vm1494, 0, %v1618
        %v1621 = vmul.f32 %v1619, %v1619
        %v1622 = vmul.f32 %v1621, -0.001358992
        %v1623 = vadd.f32 %v1622, 0.041655596
        %v1624 = vmul.f32 %v1621, %v1623
        %v1625 = vadd.f32 %v1624, -0.4999988
        %v1626 = vmul.f32 %v1621, %v1625
        %v1627 = vadd.f32 1.0, %v1626
        %v1628 = vmul.f32 %v1619, %v1619
        %v1629 = vmul.f32 %v1628, -0.00019511016
        %v1630 = vadd.f32 %v1629, 0.008332121
        %v1631 = vmul.f32 %v1628, %v1630
        %v1632 = vadd.f32 %v1631, -0.16666654
        %v1633 = vmul.f32 %v1628, %v1632
        %v1634 = vadd.f32 %v1633, 1.0
        %v1635 = vmul.f32 %v1634, %v1619
        %vm1636 = vweird.f32 %v1027
        %v1637 = vadd.s32 %v1620, 3
        %v1638 = vand.u32 %v1637, 3
        %vm1639 = vcmp.lt.s32.totalorder %v1638, 2
        %vm1640 = vcmp.eq.s32.totalorder %v1638, 0
        %v1641 = vxor.u32 %v1635, 2147483648
        %v1642 = vsel %vm1640, %v1627, %v1641
        %vm1643 = vcmp.eq.s32.totalorder %v1638, 2
        %v1644 = vxor.u32 %v1627, 2147483648
        %v1645 = vsel %vm1643, %v1644, %v1635
        %v1646 = vsel %vm1639, %v1642, %v1645
        %v1647 = vsel %vm1636, nan, %v1646
        %v1648 = vadd.f32 %v1000, %v1182
        %v1649 = vadd.f32 %v1001, %v1337
        %v1650 = vadd.f32 %v1002, %v1492
        %v1651 = vadd.f32 %v1003, %v1647
        %v1652 = vld [vmem:[%s334] sm:$0xff]
        %v1653 = vld [vmem:[%s334 + $0x8] sm:$0xff]
        %1655 = vset.pattern.permute.xlu0 0
        %1656 = vperm.xlu0 %1655, %v1652
        %v1657 = vpop.permute.xlu0 %1656
        %1660 = vset.pattern.permute.xlu0 0
        %1661 = vperm.xlu0 %1660, %v1653
        %v1662 = vpop.permute.xlu0 %1661
        %v1664 = vmul.f32 %v1657, %v346
        %v1665 = vmul.f32 %v1662, %v346
        %v1666 = vadd.f32 %v1664, %v347
        %v1667 = vadd.f32 %v1665, %v347
        %v1668 = vand.u32 2147483647, %v1666
        %vm1669 = vcmp.le.f32.partialorder %v1668, 0.7853982
        %vm1670 = vcmp.lt.s32.totalorder %v1666, 0
        %v1671 = vand.u32 %v1666, 2139095040
        %v1672 = vshrl.u32 %v1671, 23
        %v1673 = vsub.s32 %v1672, 127
        %v1674 = vand.u32 2147483647, %v1666
        %v1675 = vand.u32 %v1674, 8388607
        %v1676 = vor.u32 %v1675, 8388608
        %v1677 = vsub.s32 0, %v1676
        %v1678 = vadd.s32 %v1673, 1
        %vm1679 = vcmp.gt.s32.totalorder %v1678, 0
        %v1680 = vsel %vm1679, %v1678, 0
        %v1681 = vshrl.u32 %v1680, 5
        %v1682 = vand.u32 %v1680, 31
        %v1683 = vsub.s32 32, %v1682
        %v1684 = vshrl.u32 683565275, %v1683
        %v1685 = vshll.u32 683565275, %v1682
        %v1686 = vshrl.u32 2475754826, %v1683
        %v1687 = vor.u32 %v1685, %v1686
        %v1688 = vshll.u32 2475754826, %v1682
        %v1689 = vshrl.u32 2131351028, %v1683
        %v1690 = vor.u32 %v1688, %v1689
        %v1691 = vshll.u32 2131351028, %v1682
        %v1692 = vshrl.u32 2102212464, %v1683
        %v1693 = vor.u32 %v1691, %v1692
        %v1694 = vshll.u32 2102212464, %v1682
        %v1695 = vshrl.u32 920167782, %v1683
        %v1696 = vor.u32 %v1694, %v1695
        %v1697 = vshll.u32 920167782, %v1682
        %v1698 = vshrl.u32 1326507024, %v1683
        %v1699 = vor.u32 %v1697, %v1698
        %vm1700 = vcmp.lt.s32.totalorder %v1681, 1
        %vm1701 = vcmp.lt.s32.totalorder %v1681, 2
        %vm1702 = vcmp.lt.s32.totalorder %v1681, 3
        %vm1703 = vcmp.lt.s32.totalorder %v1681, 4
        %v1704 = vsel %vm1700, %v1684, %v1687
        %v1705 = vsel %vm1703, %v1693, 2102212464
        %v1706 = vsel %vm1702, %v1690, %v1705
        %v1707 = vsel %vm1701, %v1704, %v1706
        %v1708 = vsel %vm1700, %v1687, %v1690
        %v1709 = vsel %vm1703, %v1696, 920167782
        %v1710 = vsel %vm1702, %v1693, %v1709
        %v1711 = vsel %vm1701, %v1708, %v1710
        %v1712 = vsel %vm1700, %v1690, %v1693
        %v1713 = vsel %vm1703, %v1699, 1326507024
        %v1714 = vsel %vm1702, %v1696, %v1713
        %v1715 = vsel %vm1701, %v1712, %v1714
        %v1716 = vshll.u32 %v1676, 8
        %v1717 = vand.u32 %v1716, 65535
        %v1718 = vshrl.u32 %v1716, 16
        %v1719 = vand.u32 %v1715, 65535
        %v1720 = vshrl.u32 %v1715, 16
        %v1721 = vmul.u32 %v1717, %v1719
        %v1722 = vmul.u32 %v1717, %v1720
        %v1723 = vmul.u32 %v1718, %v1719
        %v1724 = vmul.u32 %v1718, %v1720
        %v1725 = vshll.u32 %v1722, 16
        %v1726 = vshrl.u32 %v1722, 16
        %v1727 = vshll.u32 %v1723, 16
        %v1728 = vshrl.u32 %v1723, 16
        %vm1729 = vc.u32 %v1721, %v1725
        %v1730 = vsel %vm1729, 1, 0
        %v1731 = vadd.s32 %v1721, %v1725
        %v1732 = vadd.s32 %v1724, %v1730
        %vm1733 = vc.u32 %v1731, %v1727
        %v1734 = vsel %vm1733, 1, 0
        %v1735 = vadd.s32 %v1731, %v1727
        %v1736 = vadd.s32 %v1732, %v1734
        %v1737 = vadd.s32 %v1736, %v1726
        %v1738 = vadd.s32 %v1737, %v1728
        %v1739 = vand.u32 %v1716, 65535
        %v1740 = vshrl.u32 %v1716, 16
        %v1741 = vand.u32 %v1711, 65535
        %v1742 = vshrl.u32 %v1711, 16
        %v1743 = vmul.u32 %v1739, %v1741
        %v1744 = vmul.u32 %v1739, %v1742
        %v1745 = vmul.u32 %v1740, %v1741
        %v1746 = vmul.u32 %v1740, %v1742
        %v1747 = vshll.u32 %v1744, 16
        %v1748 = vshrl.u32 %v1744, 16
        %v1749 = vshll.u32 %v1745, 16
        %v1750 = vshrl.u32 %v1745, 16
        %vm1751 = vc.u32 %v1743, %v1747
        %v1752 = vsel %vm1751, 1, 0
        %v1753 = vadd.s32 %v1743, %v1747
        %v1754 = vadd.s32 %v1746, %v1752
        %vm1755 = vc.u32 %v1753, %v1749
        %v1756 = vsel %vm1755, 1, 0
        %v1757 = vadd.s32 %v1753, %v1749
        %v1758 = vadd.s32 %v1754, %v1756
        %v1759 = vadd.s32 %v1758, %v1748
        %v1760 = vadd.s32 %v1759, %v1750
        %v1761 = vmul.u32 %v1716, %v1707
        %v1762 = vadd.s32 %v1738, %v1757
        %vm1763 = vc.u32 %v1738, %v1757
        %v1764 = vadd.s32 %v1760, 1
        %v1765 = vsel %vm1763, %v1764, %v1760
        %v1766 = vadd.s32 %v1761, %v1765
        %v1767 = vadd.s32 %v1766, 536870912
        %v1768 = vshrl.u32 %v1767, 30
        %v1769 = vshll.u32 %v1768, 30
        %v1770 = vsub.s32 %v1766, %v1769
        %vm1771 = vcmp.lt.s32.totalorder %v1770, 0
        %v1772 = vsub.s32 0, %v1770
        %v1773 = vsel %vm1771, %v1772, %v1770
        %v1774 = vclz %v1773
        %v1775 = vsub.s32 %v1774, 2
        %vm1776 = vcmp.gt.s32.totalorder 0, %v1775
        %v1777 = vsel %vm1776, 0, %v1775
        %v1778 = vsub.s32 32, %v1777
        %v1779 = vshll.u32 %v1770, %v1777
        %v1780 = vshrl.u32 %v1762, %v1778
        %v1781 = vor.u32 %v1779, %v1780
        %v1782 = vsub.s32 4294967266, %v1777
        %v1783 = vadd.s32 %v1782, 127
        %v1784 = vshll.u32 %v1783, 23
        %v1785 = vor.u32 4788187, %v1784
        %v1786 = vand.u32 2147483647, %v1785
        %v1788 = vcvt.s32.f32 %v1781
        %v1789 = vmul.f32 %v1788, %v1786
        %v1790 = vxor.u32 %v1789, 2147483648
        %v1791 = vsel %vm1670, %v1790, %v1789
        %v1792 = vsub.s32 4, %v1768
        %v1793 = vsel %vm1670, %v1792, %v1768
        %v1794 = vsel %vm1669, %v1666, %v1791
        %v1795 = vsel %vm1669, 0, %v1793
        %v1796 = vmul.f32 %v1794, %v1794
        %v1797 = vmul.f32 %v1796, -0.001358992
        %v1798 = vadd.f32 %v1797, 0.041655596
        %v1799 = vmul.f32 %v1796, %v1798
        %v1800 = vadd.f32 %v1799, -0.4999988
        %v1801 = vmul.f32 %v1796, %v1800
        %v1802 = vadd.f32 1.0, %v1801
        %v1803 = vmul.f32 %v1794, %v1794
        %v1804 = vmul.f32 %v1803, -0.00019511016
        %v1805 = vadd.f32 %v1804, 0.008332121
        %v1806 = vmul.f32 %v1803, %v1805
        %v1807 = vadd.f32 %v1806, -0.16666654
        %v1808 = vmul.f32 %v1803, %v1807
        %v1809 = vadd.f32 %v1808, 1.0
        %v1810 = vmul.f32 %v1809, %v1794
        %vm1811 = vweird.f32 %v1666
        %v1812 = vadd.s32 %v1795, 3
        %v1813 = vand.u32 %v1812, 3
        %vm1814 = vcmp.lt.s32.totalorder %v1813, 2
        %vm1815 = vcmp.eq.s32.totalorder %v1813, 0
        %v1816 = vxor.u32 %v1810, 2147483648
        %v1817 = vsel %vm1815, %v1802, %v1816
        %vm1818 = vcmp.eq.s32.totalorder %v1813, 2
        %v1819 = vxor.u32 %v1802, 2147483648
        %v1820 = vsel %vm1818, %v1819, %v1810
        %v1821 = vsel %vm1814, %v1817, %v1820
        %v1822 = vsel %vm1811, nan, %v1821
        %v1823 = vand.u32 2147483647, %v1667
        %vm1824 = vcmp.le.f32.partialorder %v1823, 0.7853982
        %vm1825 = vcmp.lt.s32.totalorder %v1667, 0
        %v1826 = vand.u32 %v1667, 2139095040
        %v1827 = vshrl.u32 %v1826, 23
        %v1828 = vsub.s32 %v1827, 127
        %v1829 = vand.u32 2147483647, %v1667
        %v1830 = vand.u32 %v1829, 8388607
        %v1831 = vor.u32 %v1830, 8388608
        %v1832 = vsub.s32 0, %v1831
        %v1833 = vadd.s32 %v1828, 1
        %vm1834 = vcmp.gt.s32.totalorder %v1833, 0
        %v1835 = vsel %vm1834, %v1833, 0
        %v1836 = vshrl.u32 %v1835, 5
        %v1837 = vand.u32 %v1835, 31
        %v1838 = vsub.s32 32, %v1837
        %v1839 = vshrl.u32 683565275, %v1838
        %v1840 = vshll.u32 683565275, %v1837
        %v1841 = vshrl.u32 2475754826, %v1838
        %v1842 = vor.u32 %v1840, %v1841
        %v1843 = vshll.u32 2475754826, %v1837
        %v1844 = vshrl.u32 2131351028, %v1838
        %v1845 = vor.u32 %v1843, %v1844
        %v1846 = vshll.u32 2131351028, %v1837
        %v1847 = vshrl.u32 2102212464, %v1838
        %v1848 = vor.u32 %v1846, %v1847
        %v1849 = vshll.u32 2102212464, %v1837
        %v1850 = vshrl.u32 920167782, %v1838
        %v1851 = vor.u32 %v1849, %v1850
        %v1852 = vshll.u32 920167782, %v1837
        %v1853 = vshrl.u32 1326507024, %v1838
        %v1854 = vor.u32 %v1852, %v1853
        %vm1855 = vcmp.lt.s32.totalorder %v1836, 1
        %vm1856 = vcmp.lt.s32.totalorder %v1836, 2
        %vm1857 = vcmp.lt.s32.totalorder %v1836, 3
        %vm1858 = vcmp.lt.s32.totalorder %v1836, 4
        %v1859 = vsel %vm1855, %v1839, %v1842
        %v1860 = vsel %vm1858, %v1848, 2102212464
        %v1861 = vsel %vm1857, %v1845, %v1860
        %v1862 = vsel %vm1856, %v1859, %v1861
        %v1863 = vsel %vm1855, %v1842, %v1845
        %v1864 = vsel %vm1858, %v1851, 920167782
        %v1865 = vsel %vm1857, %v1848, %v1864
        %v1866 = vsel %vm1856, %v1863, %v1865
        %v1867 = vsel %vm1855, %v1845, %v1848
        %v1868 = vsel %vm1858, %v1854, 1326507024
        %v1869 = vsel %vm1857, %v1851, %v1868
        %v1870 = vsel %vm1856, %v1867, %v1869
        %v1871 = vshll.u32 %v1831, 8
        %v1872 = vand.u32 %v1871, 65535
        %v1873 = vshrl.u32 %v1871, 16
        %v1874 = vand.u32 %v1870, 65535
        %v1875 = vshrl.u32 %v1870, 16
        %v1876 = vmul.u32 %v1872, %v1874
        %v1877 = vmul.u32 %v1872, %v1875
        %v1878 = vmul.u32 %v1873, %v1874
        %v1879 = vmul.u32 %v1873, %v1875
        %v1880 = vshll.u32 %v1877, 16
        %v1881 = vshrl.u32 %v1877, 16
        %v1882 = vshll.u32 %v1878, 16
        %v1883 = vshrl.u32 %v1878, 16
        %vm1884 = vc.u32 %v1876, %v1880
        %v1885 = vsel %vm1884, 1, 0
        %v1886 = vadd.s32 %v1876, %v1880
        %v1887 = vadd.s32 %v1879, %v1885
        %vm1888 = vc.u32 %v1886, %v1882
        %v1889 = vsel %vm1888, 1, 0
        %v1890 = vadd.s32 %v1886, %v1882
        %v1891 = vadd.s32 %v1887, %v1889
        %v1892 = vadd.s32 %v1891, %v1881
        %v1893 = vadd.s32 %v1892, %v1883
        %v1894 = vand.u32 %v1871, 65535
        %v1895 = vshrl.u32 %v1871, 16
        %v1896 = vand.u32 %v1866, 65535
        %v1897 = vshrl.u32 %v1866, 16
        %v1898 = vmul.u32 %v1894, %v1896
        %v1899 = vmul.u32 %v1894, %v1897
        %v1900 = vmul.u32 %v1895, %v1896
        %v1901 = vmul.u32 %v1895, %v1897
        %v1902 = vshll.u32 %v1899, 16
        %v1903 = vshrl.u32 %v1899, 16
        %v1904 = vshll.u32 %v1900, 16
        %v1905 = vshrl.u32 %v1900, 16
        %vm1906 = vc.u32 %v1898, %v1902
        %v1907 = vsel %vm1906, 1, 0
        %v1908 = vadd.s32 %v1898, %v1902
        %v1909 = vadd.s32 %v1901, %v1907
        %vm1910 = vc.u32 %v1908, %v1904
        %v1911 = vsel %vm1910, 1, 0
        %v1912 = vadd.s32 %v1908, %v1904
        %v1913 = vadd.s32 %v1909, %v1911
        %v1914 = vadd.s32 %v1913, %v1903
        %v1915 = vadd.s32 %v1914, %v1905
        %v1916 = vmul.u32 %v1871, %v1862
        %v1917 = vadd.s32 %v1893, %v1912
        %vm1918 = vc.u32 %v1893, %v1912
        %v1919 = vadd.s32 %v1915, 1
        %v1920 = vsel %vm1918, %v1919, %v1915
        %v1921 = vadd.s32 %v1916, %v1920
        %v1922 = vadd.s32 %v1921, 536870912
        %v1923 = vshrl.u32 %v1922, 30
        %v1924 = vshll.u32 %v1923, 30
        %v1925 = vsub.s32 %v1921, %v1924
        %vm1926 = vcmp.lt.s32.totalorder %v1925, 0
        %v1927 = vsub.s32 0, %v1925
        %v1928 = vsel %vm1926, %v1927, %v1925
        %v1929 = vclz %v1928
        %v1930 = vsub.s32 %v1929, 2
        %vm1931 = vcmp.gt.s32.totalorder 0, %v1930
        %v1932 = vsel %vm1931, 0, %v1930
        %v1933 = vsub.s32 32, %v1932
        %v1934 = vshll.u32 %v1925, %v1932
        %v1935 = vshrl.u32 %v1917, %v1933
        %v1936 = vor.u32 %v1934, %v1935
        %v1937 = vsub.s32 4294967266, %v1932
        %v1938 = vadd.s32 %v1937, 127
        %v1939 = vshll.u32 %v1938, 23
        %v1940 = vor.u32 4788187, %v1939
        %v1941 = vand.u32 2147483647, %v1940
        %v1943 = vcvt.s32.f32 %v1936
        %v1944 = vmul.f32 %v1943, %v1941
        %v1945 = vxor.u32 %v1944, 2147483648
        %v1946 = vsel %vm1825, %v1945, %v1944
        %v1947 = vsub.s32 4, %v1923
        %v1948 = vsel %vm1825, %v1947, %v1923
        %v1949 = vsel %vm1824, %v1667, %v1946
        %v1950 = vsel %vm1824, 0, %v1948
        %v1951 = vmul.f32 %v1949, %v1949
        %v1952 = vmul.f32 %v1951, -0.001358992
        %v1953 = vadd.f32 %v1952, 0.041655596
        %v1954 = vmul.f32 %v1951, %v1953
        %v1955 = vadd.f32 %v1954, -0.4999988
        %v1956 = vmul.f32 %v1951, %v1955
        %v1957 = vadd.f32 1.0, %v1956
        %v1958 = vmul.f32 %v1949, %v1949
        %v1959 = vmul.f32 %v1958, -0.00019511016
        %v1960 = vadd.f32 %v1959, 0.008332121
        %v1961 = vmul.f32 %v1958, %v1960
        %v1962 = vadd.f32 %v1961, -0.16666654
        %v1963 = vmul.f32 %v1958, %v1962
        %v1964 = vadd.f32 %v1963, 1.0
        %v1965 = vmul.f32 %v1964, %v1949
        %vm1966 = vweird.f32 %v1667
        %v1967 = vadd.s32 %v1950, 3
        %v1968 = vand.u32 %v1967, 3
        %vm1969 = vcmp.lt.s32.totalorder %v1968, 2
        %vm1970 = vcmp.eq.s32.totalorder %v1968, 0
        %v1971 = vxor.u32 %v1965, 2147483648
        %v1972 = vsel %vm1970, %v1957, %v1971
        %vm1973 = vcmp.eq.s32.totalorder %v1968, 2
        %v1974 = vxor.u32 %v1957, 2147483648
        %v1975 = vsel %vm1973, %v1974, %v1965
        %v1976 = vsel %vm1969, %v1972, %v1975
        %v1977 = vsel %vm1966, nan, %v1976
        %v1978 = vadd.f32 %v1822, 0.0
        %v1979 = vadd.f32 %v1977, 0.0
        %1980 = vset.pattern.permute.xlu0 1
        %1981 = vperm.xlu0 %1980, %v1652
        %v1982 = vpop.permute.xlu0 %1981
        %1984 = vset.pattern.permute.xlu0 1
        %1985 = vperm.xlu0 %1984, %v1653
        %v1986 = vpop.permute.xlu0 %1985
        %v1988 = vmul.f32 %v1982, %v346
        %v1989 = vmul.f32 %v1986, %v346
        %v1990 = vadd.f32 %v1988, %v347
        %v1991 = vadd.f32 %v1989, %v347
        %v1992 = vand.u32 2147483647, %v1990
        %vm1993 = vcmp.le.f32.partialorder %v1992, 0.7853982
        %vm1994 = vcmp.lt.s32.totalorder %v1990, 0
        %v1995 = vand.u32 %v1990, 2139095040
        %v1996 = vshrl.u32 %v1995, 23
        %v1997 = vsub.s32 %v1996, 127
        %v1998 = vand.u32 2147483647, %v1990
        %v1999 = vand.u32 %v1998, 8388607
        %v2000 = vor.u32 %v1999, 8388608
        %v2001 = vsub.s32 0, %v2000
        %v2002 = vadd.s32 %v1997, 1
        %vm2003 = vcmp.gt.s32.totalorder %v2002, 0
        %v2004 = vsel %vm2003, %v2002, 0
        %v2005 = vshrl.u32 %v2004, 5
        %v2006 = vand.u32 %v2004, 31
        %v2007 = vsub.s32 32, %v2006
        %v2008 = vshrl.u32 683565275, %v2007
        %v2009 = vshll.u32 683565275, %v2006
        %v2010 = vshrl.u32 2475754826, %v2007
        %v2011 = vor.u32 %v2009, %v2010
        %v2012 = vshll.u32 2475754826, %v2006
        %v2013 = vshrl.u32 2131351028, %v2007
        %v2014 = vor.u32 %v2012, %v2013
        %v2015 = vshll.u32 2131351028, %v2006
        %v2016 = vshrl.u32 2102212464, %v2007
        %v2017 = vor.u32 %v2015, %v2016
        %v2018 = vshll.u32 2102212464, %v2006
        %v2019 = vshrl.u32 920167782, %v2007
        %v2020 = vor.u32 %v2018, %v2019
        %v2021 = vshll.u32 920167782, %v2006
        %v2022 = vshrl.u32 1326507024, %v2007
        %v2023 = vor.u32 %v2021, %v2022
        %vm2024 = vcmp.lt.s32.totalorder %v2005, 1
        %vm2025 = vcmp.lt.s32.totalorder %v2005, 2
        %vm2026 = vcmp.lt.s32.totalorder %v2005, 3
        %vm2027 = vcmp.lt.s32.totalorder %v2005, 4
        %v2028 = vsel %vm2024, %v2008, %v2011
        %v2029 = vsel %vm2027, %v2017, 2102212464
        %v2030 = vsel %vm2026, %v2014, %v2029
        %v2031 = vsel %vm2025, %v2028, %v2030
        %v2032 = vsel %vm2024, %v2011, %v2014
        %v2033 = vsel %vm2027, %v2020, 920167782
        %v2034 = vsel %vm2026, %v2017, %v2033
        %v2035 = vsel %vm2025, %v2032, %v2034
        %v2036 = vsel %vm2024, %v2014, %v2017
        %v2037 = vsel %vm2027, %v2023, 1326507024
        %v2038 = vsel %vm2026, %v2020, %v2037
        %v2039 = vsel %vm2025, %v2036, %v2038
        %v2040 = vshll.u32 %v2000, 8
        %v2041 = vand.u32 %v2040, 65535
        %v2042 = vshrl.u32 %v2040, 16
        %v2043 = vand.u32 %v2039, 65535
        %v2044 = vshrl.u32 %v2039, 16
        %v2045 = vmul.u32 %v2041, %v2043
        %v2046 = vmul.u32 %v2041, %v2044
        %v2047 = vmul.u32 %v2042, %v2043
        %v2048 = vmul.u32 %v2042, %v2044
        %v2049 = vshll.u32 %v2046, 16
        %v2050 = vshrl.u32 %v2046, 16
        %v2051 = vshll.u32 %v2047, 16
        %v2052 = vshrl.u32 %v2047, 16
        %vm2053 = vc.u32 %v2045, %v2049
        %v2054 = vsel %vm2053, 1, 0
        %v2055 = vadd.s32 %v2045, %v2049
        %v2056 = vadd.s32 %v2048, %v2054
        %vm2057 = vc.u32 %v2055, %v2051
        %v2058 = vsel %vm2057, 1, 0
        %v2059 = vadd.s32 %v2055, %v2051
        %v2060 = vadd.s32 %v2056, %v2058
        %v2061 = vadd.s32 %v2060, %v2050
        %v2062 = vadd.s32 %v2061, %v2052
        %v2063 = vand.u32 %v2040, 65535
        %v2064 = vshrl.u32 %v2040, 16
        %v2065 = vand.u32 %v2035, 65535
        %v2066 = vshrl.u32 %v2035, 16
        %v2067 = vmul.u32 %v2063, %v2065
        %v2068 = vmul.u32 %v2063, %v2066
        %v2069 = vmul.u32 %v2064, %v2065
        %v2070 = vmul.u32 %v2064, %v2066
        %v2071 = vshll.u32 %v2068, 16
        %v2072 = vshrl.u32 %v2068, 16
        %v2073 = vshll.u32 %v2069, 16
        %v2074 = vshrl.u32 %v2069, 16
        %vm2075 = vc.u32 %v2067, %v2071
        %v2076 = vsel %vm2075, 1, 0
        %v2077 = vadd.s32 %v2067, %v2071
        %v2078 = vadd.s32 %v2070, %v2076
        %vm2079 = vc.u32 %v2077, %v2073
        %v2080 = vsel %vm2079, 1, 0
        %v2081 = vadd.s32 %v2077, %v2073
        %v2082 = vadd.s32 %v2078, %v2080
        %v2083 = vadd.s32 %v2082, %v2072
        %v2084 = vadd.s32 %v2083, %v2074
        %v2085 = vmul.u32 %v2040, %v2031
        %v2086 = vadd.s32 %v2062, %v2081
        %vm2087 = vc.u32 %v2062, %v2081
        %v2088 = vadd.s32 %v2084, 1
        %v2089 = vsel %vm2087, %v2088, %v2084
        %v2090 = vadd.s32 %v2085, %v2089
        %v2091 = vadd.s32 %v2090, 536870912
        %v2092 = vshrl.u32 %v2091, 30
        %v2093 = vshll.u32 %v2092, 30
        %v2094 = vsub.s32 %v2090, %v2093
        %vm2095 = vcmp.lt.s32.totalorder %v2094, 0
        %v2096 = vsub.s32 0, %v2094
        %v2097 = vsel %vm2095, %v2096, %v2094
        %v2098 = vclz %v2097
        %v2099 = vsub.s32 %v2098, 2
        %vm2100 = vcmp.gt.s32.totalorder 0, %v2099
        %v2101 = vsel %vm2100, 0, %v2099
        %v2102 = vsub.s32 32, %v2101
        %v2103 = vshll.u32 %v2094, %v2101
        %v2104 = vshrl.u32 %v2086, %v2102
        %v2105 = vor.u32 %v2103, %v2104
        %v2106 = vsub.s32 4294967266, %v2101
        %v2107 = vadd.s32 %v2106, 127
        %v2108 = vshll.u32 %v2107, 23
        %v2109 = vor.u32 4788187, %v2108
        %v2110 = vand.u32 2147483647, %v2109
        %v2112 = vcvt.s32.f32 %v2105
        %v2113 = vmul.f32 %v2112, %v2110
        %v2114 = vxor.u32 %v2113, 2147483648
        %v2115 = vsel %vm1994, %v2114, %v2113
        %v2116 = vsub.s32 4, %v2092
        %v2117 = vsel %vm1994, %v2116, %v2092
        %v2118 = vsel %vm1993, %v1990, %v2115
        %v2119 = vsel %vm1993, 0, %v2117
        %v2120 = vmul.f32 %v2118, %v2118
        %v2121 = vmul.f32 %v2120, -0.001358992
        %v2122 = vadd.f32 %v2121, 0.041655596
        %v2123 = vmul.f32 %v2120, %v2122
        %v2124 = vadd.f32 %v2123, -0.4999988
        %v2125 = vmul.f32 %v2120, %v2124
        %v2126 = vadd.f32 1.0, %v2125
        %v2127 = vmul.f32 %v2118, %v2118
        %v2128 = vmul.f32 %v2127, -0.00019511016
        %v2129 = vadd.f32 %v2128, 0.008332121
        %v2130 = vmul.f32 %v2127, %v2129
        %v2131 = vadd.f32 %v2130, -0.16666654
        %v2132 = vmul.f32 %v2127, %v2131
        %v2133 = vadd.f32 %v2132, 1.0
        %v2134 = vmul.f32 %v2133, %v2118
        %vm2135 = vweird.f32 %v1990
        %v2136 = vadd.s32 %v2119, 3
        %v2137 = vand.u32 %v2136, 3
        %vm2138 = vcmp.lt.s32.totalorder %v2137, 2
        %vm2139 = vcmp.eq.s32.totalorder %v2137, 0
        %v2140 = vxor.u32 %v2134, 2147483648
        %v2141 = vsel %vm2139, %v2126, %v2140
        %vm2142 = vcmp.eq.s32.totalorder %v2137, 2
        %v2143 = vxor.u32 %v2126, 2147483648
        %v2144 = vsel %vm2142, %v2143, %v2134
        %v2145 = vsel %vm2138, %v2141, %v2144
        %v2146 = vsel %vm2135, nan, %v2145
        %v2147 = vand.u32 2147483647, %v1991
        %vm2148 = vcmp.le.f32.partialorder %v2147, 0.7853982
        %vm2149 = vcmp.lt.s32.totalorder %v1991, 0
        %v2150 = vand.u32 %v1991, 2139095040
        %v2151 = vshrl.u32 %v2150, 23
        %v2152 = vsub.s32 %v2151, 127
        %v2153 = vand.u32 2147483647, %v1991
        %v2154 = vand.u32 %v2153, 8388607
        %v2155 = vor.u32 %v2154, 8388608
        %v2156 = vsub.s32 0, %v2155
        %v2157 = vadd.s32 %v2152, 1
        %vm2158 = vcmp.gt.s32.totalorder %v2157, 0
        %v2159 = vsel %vm2158, %v2157, 0
        %v2160 = vshrl.u32 %v2159, 5
        %v2161 = vand.u32 %v2159, 31
        %v2162 = vsub.s32 32, %v2161
        %v2163 = vshrl.u32 683565275, %v2162
        %v2164 = vshll.u32 683565275, %v2161
        %v2165 = vshrl.u32 2475754826, %v2162
        %v2166 = vor.u32 %v2164, %v2165
        %v2167 = vshll.u32 2475754826, %v2161
        %v2168 = vshrl.u32 2131351028, %v2162
        %v2169 = vor.u32 %v2167, %v2168
        %v2170 = vshll.u32 2131351028, %v2161
        %v2171 = vshrl.u32 2102212464, %v2162
        %v2172 = vor.u32 %v2170, %v2171
        %v2173 = vshll.u32 2102212464, %v2161
        %v2174 = vshrl.u32 920167782, %v2162
        %v2175 = vor.u32 %v2173, %v2174
        %v2176 = vshll.u32 920167782, %v2161
        %v2177 = vshrl.u32 1326507024, %v2162
        %v2178 = vor.u32 %v2176, %v2177
        %vm2179 = vcmp.lt.s32.totalorder %v2160, 1
        %vm2180 = vcmp.lt.s32.totalorder %v2160, 2
        %vm2181 = vcmp.lt.s32.totalorder %v2160, 3
        %vm2182 = vcmp.lt.s32.totalorder %v2160, 4
        %v2183 = vsel %vm2179, %v2163, %v2166
        %v2184 = vsel %vm2182, %v2172, 2102212464
        %v2185 = vsel %vm2181, %v2169, %v2184
        %v2186 = vsel %vm2180, %v2183, %v2185
        %v2187 = vsel %vm2179, %v2166, %v2169
        %v2188 = vsel %vm2182, %v2175, 920167782
        %v2189 = vsel %vm2181, %v2172, %v2188
        %v2190 = vsel %vm2180, %v2187, %v2189
        %v2191 = vsel %vm2179, %v2169, %v2172
        %v2192 = vsel %vm2182, %v2178, 1326507024
        %v2193 = vsel %vm2181, %v2175, %v2192
        %v2194 = vsel %vm2180, %v2191, %v2193
        %v2195 = vshll.u32 %v2155, 8
        %v2196 = vand.u32 %v2195, 65535
        %v2197 = vshrl.u32 %v2195, 16
        %v2198 = vand.u32 %v2194, 65535
        %v2199 = vshrl.u32 %v2194, 16
        %v2200 = vmul.u32 %v2196, %v2198
        %v2201 = vmul.u32 %v2196, %v2199
        %v2202 = vmul.u32 %v2197, %v2198
        %v2203 = vmul.u32 %v2197, %v2199
        %v2204 = vshll.u32 %v2201, 16
        %v2205 = vshrl.u32 %v2201, 16
        %v2206 = vshll.u32 %v2202, 16
        %v2207 = vshrl.u32 %v2202, 16
        %vm2208 = vc.u32 %v2200, %v2204
        %v2209 = vsel %vm2208, 1, 0
        %v2210 = vadd.s32 %v2200, %v2204
        %v2211 = vadd.s32 %v2203, %v2209
        %vm2212 = vc.u32 %v2210, %v2206
        %v2213 = vsel %vm2212, 1, 0
        %v2214 = vadd.s32 %v2210, %v2206
        %v2215 = vadd.s32 %v2211, %v2213
        %v2216 = vadd.s32 %v2215, %v2205
        %v2217 = vadd.s32 %v2216, %v2207
        %v2218 = vand.u32 %v2195, 65535
        %v2219 = vshrl.u32 %v2195, 16
        %v2220 = vand.u32 %v2190, 65535
        %v2221 = vshrl.u32 %v2190, 16
        %v2222 = vmul.u32 %v2218, %v2220
        %v2223 = vmul.u32 %v2218, %v2221
        %v2224 = vmul.u32 %v2219, %v2220
        %v2225 = vmul.u32 %v2219, %v2221
        %v2226 = vshll.u32 %v2223, 16
        %v2227 = vshrl.u32 %v2223, 16
        %v2228 = vshll.u32 %v2224, 16
        %v2229 = vshrl.u32 %v2224, 16
        %vm2230 = vc.u32 %v2222, %v2226
        %v2231 = vsel %vm2230, 1, 0
        %v2232 = vadd.s32 %v2222, %v2226
        %v2233 = vadd.s32 %v2225, %v2231
        %vm2234 = vc.u32 %v2232, %v2228
        %v2235 = vsel %vm2234, 1, 0
        %v2236 = vadd.s32 %v2232, %v2228
        %v2237 = vadd.s32 %v2233, %v2235
        %v2238 = vadd.s32 %v2237, %v2227
        %v2239 = vadd.s32 %v2238, %v2229
        %v2240 = vmul.u32 %v2195, %v2186
        %v2241 = vadd.s32 %v2217, %v2236
        %vm2242 = vc.u32 %v2217, %v2236
        %v2243 = vadd.s32 %v2239, 1
        %v2244 = vsel %vm2242, %v2243, %v2239
        %v2245 = vadd.s32 %v2240, %v2244
        %v2246 = vadd.s32 %v2245, 536870912
        %v2247 = vshrl.u32 %v2246, 30
        %v2248 = vshll.u32 %v2247, 30
        %v2249 = vsub.s32 %v2245, %v2248
        %vm2250 = vcmp.lt.s32.totalorder %v2249, 0
        %v2251 = vsub.s32 0, %v2249
        %v2252 = vsel %vm2250, %v2251, %v2249
        %v2253 = vclz %v2252
        %v2254 = vsub.s32 %v2253, 2
        %vm2255 = vcmp.gt.s32.totalorder 0, %v2254
        %v2256 = vsel %vm2255, 0, %v2254
        %v2257 = vsub.s32 32, %v2256
        %v2258 = vshll.u32 %v2249, %v2256
        %v2259 = vshrl.u32 %v2241, %v2257
        %v2260 = vor.u32 %v2258, %v2259
        %v2261 = vsub.s32 4294967266, %v2256
        %v2262 = vadd.s32 %v2261, 127
        %v2263 = vshll.u32 %v2262, 23
        %v2264 = vor.u32 4788187, %v2263
        %v2265 = vand.u32 2147483647, %v2264
        %v2267 = vcvt.s32.f32 %v2260
        %v2268 = vmul.f32 %v2267, %v2265
        %v2269 = vxor.u32 %v2268, 2147483648
        %v2270 = vsel %vm2149, %v2269, %v2268
        %v2271 = vsub.s32 4, %v2247
        %v2272 = vsel %vm2149, %v2271, %v2247
        %v2273 = vsel %vm2148, %v1991, %v2270
        %v2274 = vsel %vm2148, 0, %v2272
        %v2275 = vmul.f32 %v2273, %v2273
        %v2276 = vmul.f32 %v2275, -0.001358992
        %v2277 = vadd.f32 %v2276, 0.041655596
        %v2278 = vmul.f32 %v2275, %v2277
        %v2279 = vadd.f32 %v2278, -0.4999988
        %v2280 = vmul.f32 %v2275, %v2279
        %v2281 = vadd.f32 1.0, %v2280
        %v2282 = vmul.f32 %v2273, %v2273
        %v2283 = vmul.f32 %v2282, -0.00019511016
        %v2284 = vadd.f32 %v2283, 0.008332121
        %v2285 = vmul.f32 %v2282, %v2284
        %v2286 = vadd.f32 %v2285, -0.16666654
        %v2287 = vmul.f32 %v2282, %v2286
        %v2288 = vadd.f32 %v2287, 1.0
        %v2289 = vmul.f32 %v2288, %v2273
        %vm2290 = vweird.f32 %v1991
        %v2291 = vadd.s32 %v2274, 3
        %v2292 = vand.u32 %v2291, 3
        %vm2293 = vcmp.lt.s32.totalorder %v2292, 2
        %vm2294 = vcmp.eq.s32.totalorder %v2292, 0
        %v2295 = vxor.u32 %v2289, 2147483648
        %v2296 = vsel %vm2294, %v2281, %v2295
        %vm2297 = vcmp.eq.s32.totalorder %v2292, 2
        %v2298 = vxor.u32 %v2281, 2147483648
        %v2299 = vsel %vm2297, %v2298, %v2289
        %v2300 = vsel %vm2293, %v2296, %v2299
        %v2301 = vsel %vm2290, nan, %v2300
        %v2302 = vadd.f32 %v1978, %v2146
        %v2303 = vadd.f32 %v1979, %v2301
        %v2304 = vld [vmem:[%s328] sm:$0xff]
        %v2305 = vld [vmem:[%s328 + $0x8] sm:$0xff]
        %v2306 = vld [vmem:[%s328 + $0x10] sm:$0xff]
        %v2307 = vld [vmem:[%s328 + $0x18] sm:$0xff]
        %v2308 = vld [vmem:[#allocation2] sm:$0xff]
        %v2309 = vld [vmem:[#allocation2 + $0x8] sm:$0xff]
        %v2310 = vld [vmem:[#allocation2 + $0x10] sm:$0xff]
        %v2311 = vld [vmem:[#allocation2 + $0x18] sm:$0xff]
        %vm2312 = vcmask 261120
        %v2314 = vsel %vm2312, %v1648, 0
        %v2317 = vsel %vm2312, %v1649, 0
        %v2320 = vsel %vm2312, %v1650, 0
        %v2323 = vsel %vm2312, %v1651, 0
        %2325 = vmatpush.msra.mxu0 0.0
        %2326 = vmatpush.msra.mxu0 0.0
        %2327 = vmatpush.msra.mxu0 0.0
        %2328 = vmatpush.msra.mxu0 0.0
        %2329 = vmatpush.msra.mxu0 0.0
        %2330 = vmatpush.msra.mxu0 0.0
        %2331 = vmatpush.msra.mxu0 0.0
        %2332 = vmatpush.msra.mxu0 0.0
        %2333 = vmatpush.msra.mxu0 0.0
        %2334 = vmatpush.msra.mxu0 0.0
        %2335 = vmatpush.msra.mxu0 0.0
        %2336 = vmatpush.msra.mxu0 0.0
        %2337 = vmatpush.msra.mxu0 %v2311
        %2338 = vmatpush.msra.mxu0 %v2310
        %2339 = vmatpush.msra.mxu0 %v2309
        %2340 = vmatpush.msra.mxu0 %v2308
        %2341 = vmatmul.f32.gmra.mxu0 %v2314
        %v2342 = vpop.f32.mrf.mxu0
        %v2343 = vadd.f32 0.0, %v2342
        %2344 = vmatmul.f32.gmra.mxu0 %v2317
        %v2345 = vpop.f32.mrf.mxu0
        %v2346 = vadd.f32 0.0, %v2345
        %2347 = vmatmul.f32.gmra.mxu0 %v2320
        %v2348 = vpop.f32.mrf.mxu0
        %v2349 = vadd.f32 0.0, %v2348
        %2350 = vmatmul.f32.gmra.mxu0 %v2323
        %v2351 = vpop.f32.mrf.mxu0
        %v2352 = vadd.f32 0.0, %v2351
        %2353 = vdwg.mxu0
        %vm2354 = vcmask 130048
        %v2356 = vsel %vm2354, %v2304, 0
        %v2359 = vsel %vm2354, %v2305, 0
        %2361 = vmatpush.msra.mxu0 0.0
        %2362 = vmatpush.msra.mxu0 0.0
        %2363 = vmatpush.msra.mxu0 0.0
        %2364 = vmatpush.msra.mxu0 0.0
        %2365 = vmatpush.msra.mxu0 0.0
        %2366 = vmatpush.msra.mxu0 0.0
        %2367 = vmatpush.msra.mxu0 0.0
        %2368 = vmatpush.msra.mxu0 0.0
        %2369 = vmatpush.msra.mxu0 0.0
        %2370 = vmatpush.msra.mxu0 0.0
        %2371 = vmatpush.msra.mxu0 0.0
        %2372 = vmatpush.msra.mxu0 0.0
        %2373 = vmatpush.msra.mxu0 0.0
        %2374 = vmatpush.msra.mxu0 0.0
        %2375 = vmatpush.msra.mxu0 %v2346
        %2376 = vmatpush.msra.mxu0 %v2343
        %2377 = vmatmul.f32.gmra.mxu0 %v2356
        %v2378 = vpop.f32.mrf.mxu0
        %v2379 = vadd.f32 0.0, %v2378
        %2380 = vmatmul.f32.gmra.mxu0 %v2359
        %v2381 = vpop.f32.mrf.mxu0
        %v2382 = vadd.f32 0.0, %v2381
        %2383 = vdwg.mxu0
        %v2385 = vsel %vm2354, %v2306, 0
        %v2388 = vsel %vm2354, %v2307, 0
        %2390 = vmatpush.msra.mxu0 0.0
        %2391 = vmatpush.msra.mxu0 0.0
        %2392 = vmatpush.msra.mxu0 0.0
        %2393 = vmatpush.msra.mxu0 0.0
        %2394 = vmatpush.msra.mxu0 0.0
        %2395 = vmatpush.msra.mxu0 0.0
        %2396 = vmatpush.msra.mxu0 0.0
        %2397 = vmatpush.msra.mxu0 0.0
        %2398 = vmatpush.msra.mxu0 0.0
        %2399 = vmatpush.msra.mxu0 0.0
        %2400 = vmatpush.msra.mxu0 0.0
        %2401 = vmatpush.msra.mxu0 0.0
        %2402 = vmatpush.msra.mxu0 0.0
        %2403 = vmatpush.msra.mxu0 0.0
        %2404 = vmatpush.msra.mxu0 %v2352
        %2405 = vmatpush.msra.mxu0 %v2349
        %2406 = vmatmul.f32.gmra.mxu0 %v2385
        %v2407 = vpop.f32.mrf.mxu0
        %v2408 = vadd.f32 0.0, %v2407
        %2409 = vmatmul.f32.gmra.mxu0 %v2388
        %v2410 = vpop.f32.mrf.mxu0
        %v2411 = vadd.f32 0.0, %v2410
        %2412 = vdwg.mxu0
        %v2413 = vld [vmem:[#allocation5] sm:$0x1]
        %v2414 = vperm.slane %v2413, 0
        %v2415 = vadd.f32 %v2379, %v2414
        %v2416 = vadd.f32 %v2382, %v2414
        %v2417 = vadd.f32 %v2408, %v2414
        %v2418 = vadd.f32 %v2411, %v2414
        %v2419 = vmax.f32 %v2415, 0.0
        %v2420 = vmax.f32 %v2416, 0.0
        %v2421 = vmax.f32 %v2417, 0.0
        %v2422 = vmax.f32 %v2418, 0.0
        %s2423 = scalar_lea.vmem [#allocation2], 32
        %v2424 = vld [vmem:[%s2423] sm:$0xff]
        %v2425 = vld [vmem:[%s2423 + $0x8] sm:$0xff]
        %v2426 = vld [vmem:[%s2423 + $0x10] sm:$0xff]
        %v2427 = vld [vmem:[%s2423 + $0x18] sm:$0xff]
        %v2429 = vsel %vm2312, %v2419, 0
        %v2432 = vsel %vm2312, %v2420, 0
        %v2435 = vsel %vm2312, %v2421, 0
        %v2438 = vsel %vm2312, %v2422, 0
        %2440 = vmatpush.msra.mxu0 0.0
        %2441 = vmatpush.msra.mxu0 0.0
        %2442 = vmatpush.msra.mxu0 0.0
        %2443 = vmatpush.msra.mxu0 0.0
        %2444 = vmatpush.msra.mxu0 0.0
        %2445 = vmatpush.msra.mxu0 0.0
        %2446 = vmatpush.msra.mxu0 0.0
        %2447 = vmatpush.msra.mxu0 0.0
        %2448 = vmatpush.msra.mxu0 0.0
        %2449 = vmatpush.msra.mxu0 0.0
        %2450 = vmatpush.msra.mxu0 0.0
        %2451 = vmatpush.msra.mxu0 0.0
        %2452 = vmatpush.msra.mxu0 %v2427
        %2453 = vmatpush.msra.mxu0 %v2426
        %2454 = vmatpush.msra.mxu0 %v2425
        %2455 = vmatpush.msra.mxu0 %v2424
        %2456 = vmatmul.f32.gmra.mxu0 %v2429
        %v2457 = vpop.f32.mrf.mxu0
        %v2458 = vadd.f32 0.0, %v2457
        %2459 = vmatmul.f32.gmra.mxu0 %v2432
        %v2460 = vpop.f32.mrf.mxu0
        %v2461 = vadd.f32 0.0, %v2460
        %2462 = vmatmul.f32.gmra.mxu0 %v2435
        %v2463 = vpop.f32.mrf.mxu0
        %v2464 = vadd.f32 0.0, %v2463
        %2465 = vmatmul.f32.gmra.mxu0 %v2438
        %v2466 = vpop.f32.mrf.mxu0
        %v2467 = vadd.f32 0.0, %v2466
        %2468 = vdwg.mxu0
        %2469 = vmatpush.msra.mxu0 0.0
        %2470 = vmatpush.msra.mxu0 0.0
        %2471 = vmatpush.msra.mxu0 0.0
        %2472 = vmatpush.msra.mxu0 0.0
        %2473 = vmatpush.msra.mxu0 0.0
        %2474 = vmatpush.msra.mxu0 0.0
        %2475 = vmatpush.msra.mxu0 0.0
        %2476 = vmatpush.msra.mxu0 0.0
        %2477 = vmatpush.msra.mxu0 0.0
        %2478 = vmatpush.msra.mxu0 0.0
        %2479 = vmatpush.msra.mxu0 0.0
        %2480 = vmatpush.msra.mxu0 0.0
        %2481 = vmatpush.msra.mxu0 0.0
        %2482 = vmatpush.msra.mxu0 0.0
        %2483 = vmatpush.msra.mxu0 %v2461
        %2484 = vmatpush.msra.mxu0 %v2458
        %2485 = vmatmul.f32.gmra.mxu0 %v2356
        %v2486 = vpop.f32.mrf.mxu0
        %v2487 = vadd.f32 0.0, %v2486
        %2488 = vmatmul.f32.gmra.mxu0 %v2359
        %v2489 = vpop.f32.mrf.mxu0
        %v2490 = vadd.f32 0.0, %v2489
        %2491 = vdwg.mxu0
        %2492 = vmatpush.msra.mxu0 0.0
        %2493 = vmatpush.msra.mxu0 0.0
        %2494 = vmatpush.msra.mxu0 0.0
        %2495 = vmatpush.msra.mxu0 0.0
        %2496 = vmatpush.msra.mxu0 0.0
        %2497 = vmatpush.msra.mxu0 0.0
        %2498 = vmatpush.msra.mxu0 0.0
        %2499 = vmatpush.msra.mxu0 0.0
        %2500 = vmatpush.msra.mxu0 0.0
        %2501 = vmatpush.msra.mxu0 0.0
        %2502 = vmatpush.msra.mxu0 0.0
        %2503 = vmatpush.msra.mxu0 0.0
        %2504 = vmatpush.msra.mxu0 0.0
        %2505 = vmatpush.msra.mxu0 0.0
        %2506 = vmatpush.msra.mxu0 %v2467
        %2507 = vmatpush.msra.mxu0 %v2464
        %2508 = vmatmul.f32.gmra.mxu0 %v2385
        %v2509 = vpop.f32.mrf.mxu0
        %v2510 = vadd.f32 0.0, %v2509
        %2511 = vmatmul.f32.gmra.mxu0 %v2388
        %v2512 = vpop.f32.mrf.mxu0
        %v2513 = vadd.f32 0.0, %v2512
        %2514 = vdwg.mxu0
        %v2515 = vld [vmem:[#allocation5 + $0x1] sm:$0x1]
        %v2516 = vperm.slane %v2515, 0
        %v2517 = vadd.f32 %v2487, %v2516
        %v2518 = vadd.f32 %v2490, %v2516
        %v2519 = vadd.f32 %v2510, %v2516
        %v2520 = vadd.f32 %v2513, %v2516
        %v2521 = vmax.f32 %v2517, 0.0
        %v2522 = vmax.f32 %v2518, 0.0
        %v2523 = vmax.f32 %v2519, 0.0
        %v2524 = vmax.f32 %v2520, 0.0
        %s2525 = scalar_lea.vmem [#allocation2], 64
        %v2526 = vld [vmem:[%s2525] sm:$0xff]
        %v2527 = vld [vmem:[%s2525 + $0x8] sm:$0xff]
        %v2528 = vld [vmem:[%s2525 + $0x10] sm:$0xff]
        %v2529 = vld [vmem:[%s2525 + $0x18] sm:$0xff]
        %v2531 = vsel %vm2312, %v2521, 0
        %v2534 = vsel %vm2312, %v2522, 0
        %v2537 = vsel %vm2312, %v2523, 0
        %v2540 = vsel %vm2312, %v2524, 0
        %2542 = vmatpush.msra.mxu0 0.0
        %2543 = vmatpush.msra.mxu0 0.0
        %2544 = vmatpush.msra.mxu0 0.0
        %2545 = vmatpush.msra.mxu0 0.0
        %2546 = vmatpush.msra.mxu0 0.0
        %2547 = vmatpush.msra.mxu0 0.0
        %2548 = vmatpush.msra.mxu0 0.0
        %2549 = vmatpush.msra.mxu0 0.0
        %2550 = vmatpush.msra.mxu0 0.0
        %2551 = vmatpush.msra.mxu0 0.0
        %2552 = vmatpush.msra.mxu0 0.0
        %2553 = vmatpush.msra.mxu0 0.0
        %2554 = vmatpush.msra.mxu0 %v2529
        %2555 = vmatpush.msra.mxu0 %v2528
        %2556 = vmatpush.msra.mxu0 %v2527
        %2557 = vmatpush.msra.mxu0 %v2526
        %2558 = vmatmul.f32.gmra.mxu0 %v2531
        %v2559 = vpop.f32.mrf.mxu0
        %v2560 = vadd.f32 0.0, %v2559
        %2561 = vmatmul.f32.gmra.mxu0 %v2534
        %v2562 = vpop.f32.mrf.mxu0
        %v2563 = vadd.f32 0.0, %v2562
        %2564 = vmatmul.f32.gmra.mxu0 %v2537
        %v2565 = vpop.f32.mrf.mxu0
        %v2566 = vadd.f32 0.0, %v2565
        %2567 = vmatmul.f32.gmra.mxu0 %v2540
        %v2568 = vpop.f32.mrf.mxu0
        %v2569 = vadd.f32 0.0, %v2568
        %2570 = vdwg.mxu0
        %2571 = vmatpush.msra.mxu0 0.0
        %2572 = vmatpush.msra.mxu0 0.0
        %2573 = vmatpush.msra.mxu0 0.0
        %2574 = vmatpush.msra.mxu0 0.0
        %2575 = vmatpush.msra.mxu0 0.0
        %2576 = vmatpush.msra.mxu0 0.0
        %2577 = vmatpush.msra.mxu0 0.0
        %2578 = vmatpush.msra.mxu0 0.0
        %2579 = vmatpush.msra.mxu0 0.0
        %2580 = vmatpush.msra.mxu0 0.0
        %2581 = vmatpush.msra.mxu0 0.0
        %2582 = vmatpush.msra.mxu0 0.0
        %2583 = vmatpush.msra.mxu0 0.0
        %2584 = vmatpush.msra.mxu0 0.0
        %2585 = vmatpush.msra.mxu0 %v2563
        %2586 = vmatpush.msra.mxu0 %v2560
        %2587 = vmatmul.f32.gmra.mxu0 %v2356
        %v2588 = vpop.f32.mrf.mxu0
        %v2589 = vadd.f32 0.0, %v2588
        %2590 = vmatmul.f32.gmra.mxu0 %v2359
        %v2591 = vpop.f32.mrf.mxu0
        %v2592 = vadd.f32 0.0, %v2591
        %2593 = vdwg.mxu0
        %2594 = vmatpush.msra.mxu0 0.0
        %2595 = vmatpush.msra.mxu0 0.0
        %2596 = vmatpush.msra.mxu0 0.0
        %2597 = vmatpush.msra.mxu0 0.0
        %2598 = vmatpush.msra.mxu0 0.0
        %2599 = vmatpush.msra.mxu0 0.0
        %2600 = vmatpush.msra.mxu0 0.0
        %2601 = vmatpush.msra.mxu0 0.0
        %2602 = vmatpush.msra.mxu0 0.0
        %2603 = vmatpush.msra.mxu0 0.0
        %2604 = vmatpush.msra.mxu0 0.0
        %2605 = vmatpush.msra.mxu0 0.0
        %2606 = vmatpush.msra.mxu0 0.0
        %2607 = vmatpush.msra.mxu0 0.0
        %2608 = vmatpush.msra.mxu0 %v2569
        %2609 = vmatpush.msra.mxu0 %v2566
        %2610 = vmatmul.f32.gmra.mxu0 %v2385
        %v2611 = vpop.f32.mrf.mxu0
        %v2612 = vadd.f32 0.0, %v2611
        %2613 = vmatmul.f32.gmra.mxu0 %v2388
        %v2614 = vpop.f32.mrf.mxu0
        %v2615 = vadd.f32 0.0, %v2614
        %2616 = vdwg.mxu0
        %v2617 = vld [vmem:[#allocation5 + $0x2] sm:$0x1]
        %v2618 = vperm.slane %v2617, 0
        %v2619 = vadd.f32 %v2589, %v2618
        %v2620 = vadd.f32 %v2592, %v2618
        %v2621 = vadd.f32 %v2612, %v2618
        %v2622 = vadd.f32 %v2615, %v2618
        %s2623 = scalar_lea.vmem [#allocation2], 96
        %v2624 = vld [vmem:[%s2623] sm:$0xff]
        %v2625 = vld [vmem:[%s2623 + $0x8] sm:$0xff]
        %v2626 = vld [vmem:[%s2623 + $0x10] sm:$0xff]
        %v2627 = vld [vmem:[%s2623 + $0x18] sm:$0xff]
        %v2628 = vld [vmem:[#allocation5 + $0x3] sm:$0x1]
        %v2629 = vperm.slane %v2628, 0
        %v2631 = vsel %vm2312, %v2302, 0
        %v2634 = vsel %vm2312, %v2303, 0
        %2636 = vmatpush.msra.mxu0 0.0
        %2637 = vmatpush.msra.mxu0 0.0
        %2638 = vmatpush.msra.mxu0 0.0
        %2639 = vmatpush.msra.mxu0 0.0
        %2640 = vmatpush.msra.mxu0 0.0
        %2641 = vmatpush.msra.mxu0 0.0
        %2642 = vmatpush.msra.mxu0 0.0
        %2643 = vmatpush.msra.mxu0 0.0
        %2644 = vmatpush.msra.mxu0 0.0
        %2645 = vmatpush.msra.mxu0 0.0
        %2646 = vmatpush.msra.mxu0 0.0
        %2647 = vmatpush.msra.mxu0 0.0
        %2648 = vmatpush.msra.mxu0 %v2627
        %2649 = vmatpush.msra.mxu0 %v2626
        %2650 = vmatpush.msra.mxu0 %v2625
        %2651 = vmatpush.msra.mxu0 %v2624
        %2652 = vmatmul.f32.gmra.mxu0 %v2631
        %v2653 = vpop.f32.mrf.mxu0
        %v2654 = vadd.f32 %v2629, %v2653
        %2655 = vmatmul.f32.gmra.mxu0 %v2634
        %v2656 = vpop.f32.mrf.mxu0
        %v2657 = vadd.f32 %v2629, %v2656
        %2658 = vdwg.mxu0
        %v2659 = vmax.f32 %v2654, 0.0
        %v2660 = vmax.f32 %v2657, 0.0
        %s2661 = scalar_lea.vmem [#allocation2], 128
        %v2662 = vld [vmem:[%s2661] sm:$0xff]
        %v2663 = vld [vmem:[%s2661 + $0x8] sm:$0xff]
        %v2664 = vld [vmem:[%s2661 + $0x10] sm:$0xff]
        %v2665 = vld [vmem:[%s2661 + $0x18] sm:$0xff]
        %v2666 = vld [vmem:[#allocation5 + $0x4] sm:$0x1]
        %v2667 = vperm.slane %v2666, 0
        %v2669 = vsel %vm2312, %v2659, 0
        %v2672 = vsel %vm2312, %v2660, 0
        %2674 = vmatpush.msra.mxu0 0.0
        %2675 = vmatpush.msra.mxu0 0.0
        %2676 = vmatpush.msra.mxu0 0.0
        %2677 = vmatpush.msra.mxu0 0.0
        %2678 = vmatpush.msra.mxu0 0.0
        %2679 = vmatpush.msra.mxu0 0.0
        %2680 = vmatpush.msra.mxu0 0.0
        %2681 = vmatpush.msra.mxu0 0.0
        %2682 = vmatpush.msra.mxu0 0.0
        %2683 = vmatpush.msra.mxu0 0.0
        %2684 = vmatpush.msra.mxu0 0.0
        %2685 = vmatpush.msra.mxu0 0.0
        %2686 = vmatpush.msra.mxu0 %v2665
        %2687 = vmatpush.msra.mxu0 %v2664
        %2688 = vmatpush.msra.mxu0 %v2663
        %2689 = vmatpush.msra.mxu0 %v2662
        %2690 = vmatmul.f32.gmra.mxu0 %v2669
        %v2691 = vpop.f32.mrf.mxu0
        %v2692 = vadd.f32 %v2667, %v2691
        %2693 = vmatmul.f32.gmra.mxu0 %v2672
        %v2694 = vpop.f32.mrf.mxu0
        %v2695 = vadd.f32 %v2667, %v2694
        %2696 = vdwg.mxu0
        %v2697 = vmax.f32 %v2692, 0.0
        %v2698 = vmax.f32 %v2695, 0.0
        %s2699 = scalar_lea.vmem [#allocation2], 160
        %v2700 = vld [vmem:[%s2699] sm:$0xff]
        %v2701 = vld [vmem:[%s2699 + $0x8] sm:$0xff]
        %v2702 = vld [vmem:[%s2699 + $0x10] sm:$0xff]
        %v2703 = vld [vmem:[%s2699 + $0x18] sm:$0xff]
        %v2704 = vld [vmem:[#allocation5 + $0x5] sm:$0x1]
        %v2705 = vperm.slane %v2704, 0
        %v2707 = vsel %vm2312, %v2697, 0
        %v2710 = vsel %vm2312, %v2698, 0
        %2712 = vmatpush.msra.mxu0 0.0
        %2713 = vmatpush.msra.mxu0 0.0
        %2714 = vmatpush.msra.mxu0 0.0
        %2715 = vmatpush.msra.mxu0 0.0
        %2716 = vmatpush.msra.mxu0 0.0
        %2717 = vmatpush.msra.mxu0 0.0
        %2718 = vmatpush.msra.mxu0 0.0
        %2719 = vmatpush.msra.mxu0 0.0
        %2720 = vmatpush.msra.mxu0 0.0
        %2721 = vmatpush.msra.mxu0 0.0
        %2722 = vmatpush.msra.mxu0 0.0
        %2723 = vmatpush.msra.mxu0 0.0
        %2724 = vmatpush.msra.mxu0 %v2703
        %2725 = vmatpush.msra.mxu0 %v2702
        %2726 = vmatpush.msra.mxu0 %v2701
        %2727 = vmatpush.msra.mxu0 %v2700
        %2728 = vmatmul.f32.gmra.mxu0 %v2707
        %v2729 = vpop.f32.mrf.mxu0
        %v2730 = vadd.f32 %v2705, %v2729
        %2731 = vmatmul.f32.gmra.mxu0 %v2710
        %v2732 = vpop.f32.mrf.mxu0
        %v2733 = vadd.f32 %v2705, %v2732
        %2734 = vdwg.mxu0
        %s2735 = scalar_lea.vmem [#allocation2], 192
        %v2736 = vld [vmem:[%s2735] sm:$0xff]
        %v2737 = vld [vmem:[%s2735 + $0x8] sm:$0xff]
        %v2738 = vld [vmem:[%s2735 + $0x10] sm:$0xff]
        %v2739 = vld [vmem:[%s2735 + $0x18] sm:$0xff]
        %v2740 = vld [vmem:[#allocation5 + $0x6] sm:$0x1]
        %v2741 = vperm.slane %v2740, 0
        %v2743 = vsel %vm2312, %v2730, 0
        %v2746 = vsel %vm2312, %v2733, 0
        %2748 = vmatpush.msra.mxu0 0.0
        %2749 = vmatpush.msra.mxu0 0.0
        %2750 = vmatpush.msra.mxu0 0.0
        %2751 = vmatpush.msra.mxu0 0.0
        %2752 = vmatpush.msra.mxu0 0.0
        %2753 = vmatpush.msra.mxu0 0.0
        %2754 = vmatpush.msra.mxu0 0.0
        %2755 = vmatpush.msra.mxu0 0.0
        %2756 = vmatpush.msra.mxu0 0.0
        %2757 = vmatpush.msra.mxu0 0.0
        %2758 = vmatpush.msra.mxu0 0.0
        %2759 = vmatpush.msra.mxu0 0.0
        %2760 = vmatpush.msra.mxu0 %v2739
        %2761 = vmatpush.msra.mxu0 %v2738
        %2762 = vmatpush.msra.mxu0 %v2737
        %2763 = vmatpush.msra.mxu0 %v2736
        %2764 = vmatmul.f32.gmra.mxu0 %v2743
        %v2765 = vpop.f32.mrf.mxu0
        %v2766 = vadd.f32 %v2741, %v2765
        %2767 = vmatmul.f32.gmra.mxu0 %v2746
        %v2768 = vpop.f32.mrf.mxu0
        %v2769 = vadd.f32 %v2741, %v2768
        %2770 = vdwg.mxu0
        %s2771 = scalar_lea.vmem [#allocation2], 224
        %v2772 = vld [vmem:[%s2771] sm:$0xff]
        %v2773 = vld [vmem:[%s2771 + $0x8] sm:$0xff]
        %v2774 = vld [vmem:[%s2771 + $0x10] sm:$0xff]
        %v2775 = vld [vmem:[%s2771 + $0x18] sm:$0xff]
        %v2776 = vld [vmem:[#allocation5 + $0x7] sm:$0x1]
        %v2777 = vperm.slane %v2776, 0
        %v2779 = vsel %vm2312, %v2619, 0
        %v2782 = vsel %vm2312, %v2620, 0
        %v2785 = vsel %vm2312, %v2621, 0
        %v2788 = vsel %vm2312, %v2622, 0
        %2790 = vmatpush.msra.mxu0 0.0
        %2791 = vmatpush.msra.mxu0 0.0
        %2792 = vmatpush.msra.mxu0 0.0
        %2793 = vmatpush.msra.mxu0 0.0
        %2794 = vmatpush.msra.mxu0 0.0
        %2795 = vmatpush.msra.mxu0 0.0
        %2796 = vmatpush.msra.mxu0 0.0
        %2797 = vmatpush.msra.mxu0 0.0
        %2798 = vmatpush.msra.mxu0 0.0
        %2799 = vmatpush.msra.mxu0 0.0
        %2800 = vmatpush.msra.mxu0 0.0
        %2801 = vmatpush.msra.mxu0 0.0
        %2802 = vmatpush.msra.mxu0 %v2775
        %2803 = vmatpush.msra.mxu0 %v2774
        %2804 = vmatpush.msra.mxu0 %v2773
        %2805 = vmatpush.msra.mxu0 %v2772
        %2806 = vmatmul.f32.gmra.mxu0 %v2779
        %v2807 = vpop.f32.mrf.mxu0
        %v2808 = vadd.f32 %v2777, %v2807
        %2809 = vmatmul.f32.gmra.mxu0 %v2782
        %v2810 = vpop.f32.mrf.mxu0
        %v2811 = vadd.f32 %v2777, %v2810
        %2812 = vmatmul.f32.gmra.mxu0 %v2785
        %v2813 = vpop.f32.mrf.mxu0
        %v2814 = vadd.f32 %v2777, %v2813
        %2815 = vmatmul.f32.gmra.mxu0 %v2788
        %v2816 = vpop.f32.mrf.mxu0
        %v2817 = vadd.f32 %v2777, %v2816
        %2818 = vdwg.mxu0
        %s2819 = scalar_lea.vmem [#allocation2], 256
        %v2820 = vld [vmem:[%s2819] sm:$0xff]
        %v2821 = vld [vmem:[%s2819 + $0x8] sm:$0xff]
        %v2822 = vld [vmem:[%s2819 + $0x10] sm:$0xff]
        %v2823 = vld [vmem:[%s2819 + $0x18] sm:$0xff]
        %v2824 = vld [vmem:[#allocation5 + $0x8] sm:$0x1]
        %v2825 = vperm.slane %v2824, 0
        %2826 = vmatpush.msra.mxu0 0.0
        %2827 = vmatpush.msra.mxu0 0.0
        %2828 = vmatpush.msra.mxu0 0.0
        %2829 = vmatpush.msra.mxu0 0.0
        %2830 = vmatpush.msra.mxu0 0.0
        %2831 = vmatpush.msra.mxu0 0.0
        %2832 = vmatpush.msra.mxu0 0.0
        %2833 = vmatpush.msra.mxu0 0.0
        %2834 = vmatpush.msra.mxu0 0.0
        %2835 = vmatpush.msra.mxu0 0.0
        %2836 = vmatpush.msra.mxu0 0.0
        %2837 = vmatpush.msra.mxu0 0.0
        %2838 = vmatpush.msra.mxu0 %v2823
        %2839 = vmatpush.msra.mxu0 %v2822
        %2840 = vmatpush.msra.mxu0 %v2821
        %2841 = vmatpush.msra.mxu0 %v2820
        %2842 = vmatmul.f32.gmra.mxu0 %v2779
        %v2843 = vpop.f32.mrf.mxu0
        %v2844 = vadd.f32 %v2825, %v2843
        %2845 = vmatmul.f32.gmra.mxu0 %v2782
        %v2846 = vpop.f32.mrf.mxu0
        %v2847 = vadd.f32 %v2825, %v2846
        %2848 = vmatmul.f32.gmra.mxu0 %v2785
        %v2849 = vpop.f32.mrf.mxu0
        %v2850 = vadd.f32 %v2825, %v2849
        %2851 = vmatmul.f32.gmra.mxu0 %v2788
        %v2852 = vpop.f32.mrf.mxu0
        %v2853 = vadd.f32 %v2825, %v2852
        %2854 = vdwg.mxu0
        %v2856 = vsel %vm2312, %v2766, 0
        %v2859 = vsel %vm2312, %v2808, 0
        %v2862 = vsel %vm2312, %v2811, 0
        %2864 = vmatpush.xpose.msra.mxu0 0.0
        %2865 = vmatpush.xpose.msra.mxu0 0.0
        %2866 = vmatpush.xpose.msra.mxu0 0.0
        %2867 = vmatpush.xpose.msra.mxu0 0.0
        %2868 = vmatpush.xpose.msra.mxu0 0.0
        %2869 = vmatpush.xpose.msra.mxu0 0.0
        %2870 = vmatpush.xpose.msra.mxu0 0.0
        %2871 = vmatpush.xpose.msra.mxu0 0.0
        %2872 = vmatpush.xpose.msra.mxu0 0.0
        %2873 = vmatpush.xpose.msra.mxu0 0.0
        %2874 = vmatpush.xpose.msra.mxu0 0.0
        %2875 = vmatpush.xpose.msra.mxu0 0.0
        %2876 = vmatpush.xpose.msra.mxu0 0.0
        %2877 = vmatpush.xpose.msra.mxu0 0.0
        %2878 = vmatpush.xpose.msra.mxu0 %v2862
        %2879 = vmatpush.xpose.msra.mxu0 %v2859
        %2880 = vmatmul.f32.gmra.mxu0 %v2856
        %v2881 = vpop.f32.mrf.mxu0
        %v2882 = vadd.f32 0.0, %v2881
        %2883 = vdwg.mxu0
        %v2885 = vsel %vm2312, %v2769, 0
        %v2888 = vsel %vm2312, %v2814, 0
        %v2891 = vsel %vm2312, %v2817, 0
        %2893 = vmatpush.xpose.msra.mxu0 0.0
        %2894 = vmatpush.xpose.msra.mxu0 0.0
        %2895 = vmatpush.xpose.msra.mxu0 0.0
        %2896 = vmatpush.xpose.msra.mxu0 0.0
        %2897 = vmatpush.xpose.msra.mxu0 0.0
        %2898 = vmatpush.xpose.msra.mxu0 0.0
        %2899 = vmatpush.xpose.msra.mxu0 0.0
        %2900 = vmatpush.xpose.msra.mxu0 0.0
        %2901 = vmatpush.xpose.msra.mxu0 0.0
        %2902 = vmatpush.xpose.msra.mxu0 0.0
        %2903 = vmatpush.xpose.msra.mxu0 0.0
        %2904 = vmatpush.xpose.msra.mxu0 0.0
        %2905 = vmatpush.xpose.msra.mxu0 0.0
        %2906 = vmatpush.xpose.msra.mxu0 0.0
        %2907 = vmatpush.xpose.msra.mxu0 %v2891
        %2908 = vmatpush.xpose.msra.mxu0 %v2888
        %2909 = vmatmul.f32.gmra.mxu0 %v2885
        %v2910 = vpop.f32.mrf.mxu0
        %v2911 = vadd.f32 0.0, %v2910
        %2912 = vdwg.mxu0
        %v2913 = vmul.f32 %v2882, 0.17677669
        %v2914 = vmul.f32 %v2911, 0.17677669
        %v2915 = vsel %vm2354, %v2913, -inf
        %2916 = vmax.xlane.f32.xlu0 %v2915
        %v2917 = vpop.xlane.xlu0 %2916
        %v2918 = vsel %vm2354, %v2914, -inf
        %2919 = vmax.xlane.f32.xlu0 %v2918
        %v2920 = vpop.xlane.xlu0 %2919
        %v2921 = vsub.f32 %v2913, %v2917
        %v2922 = vsub.f32 %v2914, %v2920
        %v2923 = vmul.f32 %v2921, 1.442695
        %v2924 = vpow.pop %v2923
        %v2925 = vmul.f32 %v2922, 1.442695
        %v2926 = vpow.pop %v2925
        %v2927 = vsel %vm2354, %v2924, 0.0
        %2928 = vadd.xlane.f32.xlu0 %v2927
        %v2929 = vpop.xlane.xlu0 %2928
        %v2930 = vsel %vm2354, %v2926, 0.0
        %2931 = vadd.xlane.f32.xlu0 %v2930
        %v2932 = vpop.xlane.xlu0 %2931
        %v2933 = vrcp.pop %v2929
        %v2934 = vrcp.pop %v2932
        %v2935 = vmul.f32 %v2924, %v2933
        %v2936 = vmul.f32 %v2926, %v2934
        %v2938 = vsel %vm2354, %v2935, 0
        %2940 = vmatpush.msra.mxu0 0.0
        %2941 = vmatpush.msra.mxu0 0.0
        %2942 = vmatpush.msra.mxu0 0.0
        %2943 = vmatpush.msra.mxu0 0.0
        %2944 = vmatpush.msra.mxu0 0.0
        %2945 = vmatpush.msra.mxu0 0.0
        %2946 = vmatpush.msra.mxu0 0.0
        %2947 = vmatpush.msra.mxu0 0.0
        %2948 = vmatpush.msra.mxu0 0.0
        %2949 = vmatpush.msra.mxu0 0.0
        %2950 = vmatpush.msra.mxu0 0.0
        %2951 = vmatpush.msra.mxu0 0.0
        %2952 = vmatpush.msra.mxu0 0.0
        %2953 = vmatpush.msra.mxu0 0.0
        %2954 = vmatpush.msra.mxu0 %v2847
        %2955 = vmatpush.msra.mxu0 %v2844
        %2956 = vmatmul.f32.gmra.mxu0 %v2938
        %v2957 = vpop.f32.mrf.mxu0
        %v2958 = vadd.f32 0.0, %v2957
        %2959 = vdwg.mxu0
        %v2961 = vsel %vm2354, %v2936, 0
        %2963 = vmatpush.msra.mxu0 0.0
        %2964 = vmatpush.msra.mxu0 0.0
        %2965 = vmatpush.msra.mxu0 0.0
        %2966 = vmatpush.msra.mxu0 0.0
        %2967 = vmatpush.msra.mxu0 0.0
        %2968 = vmatpush.msra.mxu0 0.0
        %2969 = vmatpush.msra.mxu0 0.0
        %2970 = vmatpush.msra.mxu0 0.0
        %2971 = vmatpush.msra.mxu0 0.0
        %2972 = vmatpush.msra.mxu0 0.0
        %2973 = vmatpush.msra.mxu0 0.0
        %2974 = vmatpush.msra.mxu0 0.0
        %2975 = vmatpush.msra.mxu0 0.0
        %2976 = vmatpush.msra.mxu0 0.0
        %2977 = vmatpush.msra.mxu0 %v2853
        %2978 = vmatpush.msra.mxu0 %v2850
        %2979 = vmatmul.f32.gmra.mxu0 %v2961
        %v2980 = vpop.f32.mrf.mxu0
        %v2981 = vadd.f32 0.0, %v2980
        %2982 = vdwg.mxu0
        %s2983 = scalar_lea.vmem [#allocation2], 288
        %v2984 = vld [vmem:[%s2983] sm:$0xff]
        %v2985 = vld [vmem:[%s2983 + $0x8] sm:$0xff]
        %v2986 = vld [vmem:[%s2983 + $0x10] sm:$0xff]
        %v2987 = vld [vmem:[%s2983 + $0x18] sm:$0xff]
        %v2988 = vld [vmem:[#allocation5 + $0x9] sm:$0x1]
        %v2989 = vperm.slane %v2988, 0
        %v2991 = vsel %vm2312, %v2958, 0
        %v2994 = vsel %vm2312, %v2981, 0
        %2996 = vmatpush.msra.mxu0 0.0
        %2997 = vmatpush.msra.mxu0 0.0
        %2998 = vmatpush.msra.mxu0 0.0
        %2999 = vmatpush.msra.mxu0 0.0
        %3000 = vmatpush.msra.mxu0 0.0
        %3001 = vmatpush.msra.mxu0 0.0
        %3002 = vmatpush.msra.mxu0 0.0
        %3003 = vmatpush.msra.mxu0 0.0
        %3004 = vmatpush.msra.mxu0 0.0
        %3005 = vmatpush.msra.mxu0 0.0
        %3006 = vmatpush.msra.mxu0 0.0
        %3007 = vmatpush.msra.mxu0 0.0
        %3008 = vmatpush.msra.mxu0 %v2987
        %3009 = vmatpush.msra.mxu0 %v2986
        %3010 = vmatpush.msra.mxu0 %v2985
        %3011 = vmatpush.msra.mxu0 %v2984
        %3012 = vmatmul.f32.gmra.mxu0 %v2991
        %v3013 = vpop.f32.mrf.mxu0
        %v3014 = vadd.f32 %v2989, %v3013
        %3015 = vmatmul.f32.gmra.mxu0 %v2994
        %v3016 = vpop.f32.mrf.mxu0
        %v3017 = vadd.f32 %v2989, %v3016
        %3018 = vdwg.mxu0
        %s3019 = scalar_lea.vmem [#allocation2], 320
        %v3020 = vld [vmem:[%s3019] sm:$0xff]
        %v3021 = vld [vmem:[%s3019 + $0x8] sm:$0xff]
        %v3022 = vld [vmem:[%s3019 + $0x10] sm:$0xff]
        %v3023 = vld [vmem:[%s3019 + $0x18] sm:$0xff]
        %v3024 = vld [vmem:[#allocation5 + $0xa] sm:$0x1]
        %v3025 = vperm.slane %v3024, 0
        %v3027 = vsel %vm2312, %v3014, 0
        %v3030 = vsel %vm2312, %v3017, 0
        %3032 = vmatpush.msra.mxu0 0.0
        %3033 = vmatpush.msra.mxu0 0.0
        %3034 = vmatpush.msra.mxu0 0.0
        %3035 = vmatpush.msra.mxu0 0.0
        %3036 = vmatpush.msra.mxu0 0.0
        %3037 = vmatpush.msra.mxu0 0.0
        %3038 = vmatpush.msra.mxu0 0.0
        %3039 = vmatpush.msra.mxu0 0.0
        %3040 = vmatpush.msra.mxu0 0.0
        %3041 = vmatpush.msra.mxu0 0.0
        %3042 = vmatpush.msra.mxu0 0.0
        %3043 = vmatpush.msra.mxu0 0.0
        %3044 = vmatpush.msra.mxu0 %v3023
        %3045 = vmatpush.msra.mxu0 %v3022
        %3046 = vmatpush.msra.mxu0 %v3021
        %3047 = vmatpush.msra.mxu0 %v3020
        %3048 = vmatmul.f32.gmra.mxu0 %v3027
        %v3049 = vpop.f32.mrf.mxu0
        %v3050 = vadd.f32 %v3025, %v3049
        %3051 = vmatmul.f32.gmra.mxu0 %v3030
        %v3052 = vpop.f32.mrf.mxu0
        %v3053 = vadd.f32 %v3025, %v3052
        %3054 = vdwg.mxu0
        %v3055 = vmax.f32 %v3050, 0.0
        %v3056 = vmax.f32 %v3053, 0.0
        %s3057 = scalar_lea.vmem [#allocation2], 352
        %v3058 = vld [vmem:[%s3057] sm:$0xff]
        %v3059 = vld [vmem:[%s3057 + $0x8] sm:$0xff]
        %v3060 = vld [vmem:[%s3057 + $0x10] sm:$0xff]
        %v3061 = vld [vmem:[%s3057 + $0x18] sm:$0xff]
        %v3062 = vld [vmem:[#allocation5 + $0xb] sm:$0x1]
        %v3063 = vperm.slane %v3062, 0
        %v3065 = vsel %vm2312, %v3055, 0
        %v3068 = vsel %vm2312, %v3056, 0
        %3070 = vmatpush.msra.mxu0 0.0
        %3071 = vmatpush.msra.mxu0 0.0
        %3072 = vmatpush.msra.mxu0 0.0
        %3073 = vmatpush.msra.mxu0 0.0
        %3074 = vmatpush.msra.mxu0 0.0
        %3075 = vmatpush.msra.mxu0 0.0
        %3076 = vmatpush.msra.mxu0 0.0
        %3077 = vmatpush.msra.mxu0 0.0
        %3078 = vmatpush.msra.mxu0 0.0
        %3079 = vmatpush.msra.mxu0 0.0
        %3080 = vmatpush.msra.mxu0 0.0
        %3081 = vmatpush.msra.mxu0 0.0
        %3082 = vmatpush.msra.mxu0 %v3061
        %3083 = vmatpush.msra.mxu0 %v3060
        %3084 = vmatpush.msra.mxu0 %v3059
        %3085 = vmatpush.msra.mxu0 %v3058
        %3086 = vmatmul.f32.gmra.mxu0 %v3065
        %v3087 = vpop.f32.mrf.mxu0
        %v3088 = vadd.f32 %v3063, %v3087
        %3089 = vmatmul.f32.gmra.mxu0 %v3068
        %v3090 = vpop.f32.mrf.mxu0
        %v3091 = vadd.f32 %v3063, %v3090
        %3092 = vdwg.mxu0
        %v3093 = vmax.f32 %v3088, 0.0
        %v3094 = vmax.f32 %v3091, 0.0
        %v3095 = vld [vmem:[%s5] sm:$0xff]
        %v3096 = vld [vmem:[%s5 + $0x8] sm:$0xff]
        %v3097 = vld [vmem:[%s5 + $0x10] sm:$0xff]
        %v3098 = vld [vmem:[%s5 + $0x18] sm:$0xff]
        %v3100 = vsel %vm2312, %v3093, 0
        %v3103 = vsel %vm2312, %v3094, 0
        %3105 = vmatpush.msra.mxu0 0.0
        %3106 = vmatpush.msra.mxu0 0.0
        %3107 = vmatpush.msra.mxu0 0.0
        %3108 = vmatpush.msra.mxu0 0.0
        %3109 = vmatpush.msra.mxu0 0.0
        %3110 = vmatpush.msra.mxu0 0.0
        %3111 = vmatpush.msra.mxu0 0.0
        %3112 = vmatpush.msra.mxu0 0.0
        %3113 = vmatpush.msra.mxu0 0.0
        %3114 = vmatpush.msra.mxu0 0.0
        %3115 = vmatpush.msra.mxu0 0.0
        %3116 = vmatpush.msra.mxu0 0.0
        %3117 = vmatpush.msra.mxu0 %v3098
        %3118 = vmatpush.msra.mxu0 %v3097
        %3119 = vmatpush.msra.mxu0 %v3096
        %3120 = vmatpush.msra.mxu0 %v3095
        %3121 = vmatmul.f32.gmra.mxu0 %v3100
        %v3122 = vpop.f32.mrf.mxu0
        %v3123 = vadd.f32 0.0, %v3122
        %3124 = vmatmul.f32.gmra.mxu0 %v3103
        %v3125 = vpop.f32.mrf.mxu0
        %v3126 = vadd.f32 0.0, %v3125
        %3127 = vdwg.mxu0
        %3128 = vst [vmem:[%s315] sm:$0xff] %v3123
        %3129 = vst [vmem:[%s315 + $0x8] sm:$0xff] %v3126
        %s3130 = sand.u32 %s171, 1
        %s3131 = scalar_lea.sflag [#allocation4], %s3130
        %s3132 = sand.u32 %s171, 1
        %s3133 = smul.addr %s3132, 16
        %s3134 = scalar_lea.vmem [#allocation7], %s3133
        // Predicated region
        $region53: #{tpu_custom_call.1} parent=43 // pred_check
          %p3135 = pneg %p181
        $region54: #{tpu_custom_call.1} parent=43 // pred_check_branch
          %3137 = sbr.rel (%p3135) target = $region56
        $region55: #{tpu_custom_call.1} parent=43 // pred_region
          %s3138 = smul.u32 2, %s22
          %3140 = vsyncadd %s3131, 0
          %s3141 = smul.addr %s3138, 8
          %s3142 = scalar_lea.hbm %s6, %s3141
          %s3143 = sshll.u32 %s3134, 4
          %s3144 = int_to_ptr.vmem [resolvable:$true] %s3143
          %s3145 = sshll.u32 %s3142, 4
          %s3146 = int_to_ptr.hbm [resolvable:$true] %s3145
          %3151 = dma.vmem_to_hbm [thread:$0]  %s3144, 256, %s3146, %s3131, 128, 128, 8
        $region56: #{tpu_custom_call.1} parent=43 // pred_fallthru
          _
      $region44: #{tpu_custom_call.1} parent=5 // pred_fallthru
        _
      %p3152 = scmp.le.s32.totalorder 2, %s17
      // Predicated region
      $region57: #{tpu_custom_call.1} parent=5 // pred_check
        %p3153 = pneg %p3152
      $region58: #{tpu_custom_call.1} parent=5 // pred_check_branch
        %3155 = sbr.rel (%p3153) target = $region60
      $region59: #{tpu_custom_call.1} parent=5 // pred_region
        %s3156 = ssub.s32 %s17, 2
        // Predicated region
        $region61: #{tpu_custom_call.1} parent=59 // pred_check
          %p3157 = pneg %p187
        $region62: #{tpu_custom_call.1} parent=59 // pred_check_branch
          %3159 = sbr.rel (%p3157) target = $region64
        $region63: #{tpu_custom_call.1} parent=59 // pred_region
          %s3160 = sand.u32 %s172, 1
          %s3161 = scalar_lea.sflag [#allocation4], %s3160
          %s3162 = sand.u32 %s172, 1
          %s3163 = smul.addr %s3162, 16
          %s3164 = scalar_lea.vmem [#allocation7], %s3163
          %3166 = dma.done %s3161, 256
        $region64: #{tpu_custom_call.1} parent=59 // pred_fallthru
          _
      $region60: #{tpu_custom_call.1} parent=5 // pred_fallthru
        _
    $region6: #{tpu_custom_call.1} parent=1 // loop_footer
      %s21 = sadd.s32 1, %s17
    $region7: #{tpu_custom_call.1} parent=1 // loop_footer_branch
      %16 = sbr.rel target = $region3
    $region8: #{tpu_custom_call.1} parent=1 // loop_exit
      _
    %3167 = vsyncpa [#allocation3], 1
    %s3168 = scalar_lea.sflag [#allocation3], 1
    %3169 = vsyncpa %s3168, 1
    %3170 = vsyncpa [#allocation6], 1
    %3171 = vsyncpa [#allocation4], 1
    %s3172 = scalar_lea.sflag [#allocation4], 1
    %3173 = vsyncpa %s3172, 1

</llo_original>
